<compile_context>
chip_gen: v6e
topology: v6e:2x2x1
jax: 0.10.0
libtpu: 0.0.40
codegen_flags: <defaults>
</compile_context>

<pallas_src>
import jax
import jax.numpy as jnp
from jax import lax
from jax.experimental import pallas as pl
from jax.experimental.pallas import tpu as pltpu


# ----------------------------------------------------------------------------
# In-kernel building blocks.  Activations are (C, H*W) f32 values: channels on
# sublanes, row-major flattened spatial (m = h*W + w) on lanes.
# ----------------------------------------------------------------------------
def _edge_masks(W, M):
    """Lane masks marking columns whose w-1 / w+1 neighbour is in-row."""
    w_idx = lax.broadcasted_iota(jnp.int32, (1, M), 1) & (W - 1)
    return (w_idx >= 1), (w_idx < (W - 1))


def _conv3x3_relu(xf, wf, b, W, masks):
    """3x3 'same' conv + bias + ReLU.

    xf: (Cin, H*W)    wf: (Cout, 9*Cin), column = (kh*3 + kw)*Cin + cin
    b:  (Cout, 1)     masks: (not_left, not_right) lane masks for this W.
    """
    Cin, M = xf.shape
    Cout = wf.shape[0]
    not_left, not_right = masks
    P = W + 1                                    # covers the largest |dh*W + dw|
    zpad = jnp.zeros((Cin, P), xf.dtype)
    xpad = jnp.concatenate([zpad, xf, zpad], axis=1)             # (Cin, M + 2P)

    taps = []
    for kh in range(3):
        for kw in range(3):
            dh, dw = kh - 1, kw - 1
            s = dh * W + dw
            tap = xpad[:, P + s:P + s + M]                       # (Cin, M)
            # Zero columns whose w-neighbour falls outside the image row
            # (h-out-of-range taps already land entirely in the zero padding).
            if dw == 1:
                tap = jnp.where(not_right, tap, 0.0)
            elif dw == -1:
                tap = jnp.where(not_left, tap, 0.0)
            taps.append(tap)

    if Cin == 1:
        # VPU broadcast path for the 1-channel input conv.
        acc = jnp.zeros((Cout, M), jnp.float32)
        for t, tap in enumerate(taps):
            acc = acc + wf[:, t:t + 1] * tap
        y = acc + b
    else:
        # Single MXU contraction over all 9 taps at once.
        stacked = jnp.concatenate(taps, axis=0)                  # (9*Cin, M)
        y = jnp.dot(wf, stacked, preferred_element_type=jnp.float32) + b
    return jnp.maximum(y, 0.0)


def _maxpool2x2(a, sel, W):
    """2x2 / stride-2 max pool: (C, H*W) -> (C, H*W/4).

    sel: (H*W, H*W/4) one-hot selector for the even-(h, w) window anchors.
    """
    C, M = a.shape
    P = W + 1
    zpad = jnp.zeros((C, P), a.dtype)
    apad = jnp.concatenate([zpad, a, zpad], axis=1)
    t01 = apad[:, P + 1:P + 1 + M]              # (h,   w+1)
    t10 = apad[:, P + W:P + W + M]              # (h+1, w)
    t11 = apad[:, P + W + 1:P + W + 1 + M]      # (h+1, w+1)
    wmax = jnp.maximum(jnp.maximum(a, t01), jnp.maximum(t10, t11))
    # Selected anchors (even h, even w) always have all 4 taps in bounds, so
    # no boundary masking is needed before the exact one-hot selection matmul.
    return jnp.dot(wmax, sel, preferred_element_type=jnp.float32)


def _upsample2x(x, up):
    """Zero-insert 2x upsample: (C, Ms) -> (C, 4*Ms) via a one-hot matmul."""
    return jnp.dot(x, up, preferred_element_type=jnp.float32)


# ----------------------------------------------------------------------------
# The fused UNet kernel: one grid step == full forward pass for one image.
# ----------------------------------------------------------------------------
def _unet_kernel(x_ref,
                 w1, b1, w2, b2, w3, b3, w4, b4, w5, b5, w6, b6, w7, b7,
                 s16, u16, s8, u8, s4, u4,
                 o_ref):
    x = x_ref[0]                                                 # (1, 256)

    # Boundary masks, built once per resolution (no redundant iotas).
    m16 = _edge_masks(16, 256)
    m8 = _edge_masks(8, 64)
    m4 = _edge_masks(4, 16)

    # Encoder.
    c1 = _conv3x3_relu(x, w1[...], b1[...], 16, m16)             # (8, 256)
    p1 = _maxpool2x2(c1, s16[...], 16)                           # (8, 64)
    c2 = _conv3x3_relu(p1, w2[...], b2[...], 8, m8)              # (16, 64)
    p2 = _maxpool2x2(c2, s8[...], 8)                             # (16, 16)
    c3 = _conv3x3_relu(p2, w3[...], b3[...], 4, m4)              # (32, 16)
    p3 = _maxpool2x2(c3, s4[...], 4)                             # (32, 4)

    # Decoder.  ConvTranspose2d(3, stride=2, pad=1, output_padding=1) ==
    # zero-insert upsample + 3x3 same-conv with flipped / swapped weights.
    # TODO(synk): sub-pixel decomposition would cut the transposed-conv MXU
    # work ~4x at larger resolutions; not worth the complexity at 16x16.
    t4 = _upsample2x(p3, u4[...])                                # (32, 16)
    c4 = _conv3x3_relu(t4, w4[...], b4[...], 4, m4)              # (16, 16)
    cat4 = jnp.concatenate([c4, c3], axis=0)                     # (48, 16)
    t5 = _upsample2x(cat4, u8[...])                              # (48, 64)
    c5 = _conv3x3_relu(t5, w5[...], b5[...], 8, m8)              # (8, 64)
    cat5 = jnp.concatenate([c5, c2], axis=0)                     # (24, 64)
    t6 = _upsample2x(cat5, u16[...])                             # (24, 256)
    c6 = _conv3x3_relu(t6, w6[...], b6[...], 16, m16)            # (8, 256)
    cat6 = jnp.concatenate([c6, c1], axis=0)                     # (16, 256)
    c7 = _conv3x3_relu(cat6, w7[...], b7[...], 16, m16)          # (2, 256)

    o_ref[0] = c7.astype(o_ref.dtype)


# ----------------------------------------------------------------------------
# Host-side weight / selector prep and the pallas_call wrapper.
# ----------------------------------------------------------------------------
def _prep_conv(w_oihw, b):
    # (Cout, Cin, 3, 3) -> (Cout, 9*Cin), column index = (kh*3 + kw)*Cin + cin.
    cout, cin = w_oihw.shape[0], w_oihw.shape[1]
    wf = jnp.transpose(w_oihw, (0, 2, 3, 1)).reshape(cout, 9 * cin)
    return wf, b.reshape(-1, 1)


def _prep_convT(w_iohw, b):
    # ConvTranspose2d weight (Cin, Cout, 3, 3): flip spatially, swap in/out,
    # then the same flattened tap-major layout as a forward conv.
    wc = jnp.transpose(w_iohw[:, :, ::-1, ::-1], (1, 0, 2, 3))   # (Cout, Cin, 3, 3)
    return _prep_conv(wc, b)


def _selectors(H, W):
    # S (H*W, H*W/4): pooling selector (picks even-(h,w) anchors).
    # U (H*W/4, H*W) = S^T: zero-insert 2x upsample operator.
    Ho, Wo = H // 2, W // 2
    hs, ws = jnp.arange(Ho), jnp.arange(Wo)
    mb = (2 * hs)[:, None] * W + (2 * ws)[None, :]                # (Ho, Wo)
    U = jax.nn.one_hot(mb.reshape(-1), H * W, dtype=jnp.float32)  # (Ms, Mb)
    return U.T, U


def unet_forward(params, x_nchw):
    N, Cin, H, W = x_nchw.shape
    assert (Cin, H, W) == (1, 16, 16), "kernel is specialized to 1x16x16 inputs"
    M = H * W
    x_flat = x_nchw.reshape(N, 1, M).astype(jnp.float32)

    w1, b1 = _prep_conv(*params["conv1"])
    w2, b2 = _prep_conv(*params["conv2"])
    w3, b3 = _prep_conv(*params["conv3"])
    w4, b4 = _prep_convT(*params["conv4"])
    w5, b5 = _prep_convT(*params["conv5"])
    w6, b6 = _prep_convT(*params["conv6"])
    w7, b7 = _prep_conv(*params["conv7"])
    s16, u16 = _selectors(16, 16)
    s8, u8 = _selectors(8, 8)
    s4, u4 = _selectors(4, 4)

    operands = (x_flat, w1, b1, w2, b2, w3, b3, w4, b4, w5, b5, w6, b6,
                w7, b7, s16, u16, s8, u8, s4, u4)

    def bcast_spec(a):
        nd = a.ndim
        return pl.BlockSpec(a.shape, lambda n, _nd=nd: (0,) * _nd)

    in_specs = [pl.BlockSpec((1, 1, M), lambda n: (n, 0, 0))]
    in_specs += [bcast_spec(a) for a in operands[1:]]

    out = pl.pallas_call(
        _unet_kernel,
        out_shape=jax.ShapeDtypeStruct((N, 2, M), jnp.float32),
        grid=(N,),
        in_specs=in_specs,
        out_specs=pl.BlockSpec((1, 2, M), lambda n: (n, 0, 0)),
        compiler_params=pltpu.CompilerParams(dimension_semantics=("parallel",)),
    )(*operands)
    return out.reshape(N, 2, H, W)


unet_forward = jax.jit(unet_forward)


# ----------------------------------------------------------------------------
# Parameters (deterministic, PyTorch default-style uniform init).
# ----------------------------------------------------------------------------
def init_params(key):
    def conv_p(k, cout, cin, ksz):
        k1, k2 = jax.random.split(k)
        bound = 1.0 / (cin * ksz * ksz) ** 0.5
        w = jax.random.uniform(k1, (cout, cin, ksz, ksz), jnp.float32, -bound, bound)
        b = jax.random.uniform(k2, (cout,), jnp.float32, -bound, bound)
        return w, b

    def convT_p(k, cin, cout, ksz):
        k1, k2 = jax.random.split(k)
        bound = 1.0 / (cin * ksz * ksz) ** 0.5
        w = jax.random.uniform(k1, (cin, cout, ksz, ksz), jnp.float32, -bound, bound)
        b = jax.random.uniform(k2, (cout,), jnp.float32, -bound, bound)
        return w, b

    keys = jax.random.split(key, 8)
    return {
        "conv1": conv_p(keys[0], 8, 1, 3),
        "conv2": conv_p(keys[1], 16, 8, 3),
        "conv3": conv_p(keys[2], 32, 16, 3),
        "conv4": convT_p(keys[3], 32, 16, 3),
        "conv5": convT_p(keys[4], 48, 8, 3),
        "conv6": convT_p(keys[5], 24, 8, 3),
        "conv7": conv_p(keys[6], 2, 16, 3),
        "conv8": conv_p(keys[7], 2, 2, 1),   # defined in __init__, unused in forward
    }


# ----------------------------------------------------------------------------
# Pure-JAX reference (lax convolutions) for correctness checking.
# ----------------------------------------------------------------------------
def _ref_forward(params, x):
    dn = ("NCHW", "OIHW", "NCHW")
    hi = lax.Precision.HIGHEST

    def conv(v, w, b):
        y = lax.conv_general_dilated(v, w, (1, 1), ((1, 1), (1, 1)),
                                     dimension_numbers=dn, precision=hi)
        return jax.nn.relu(y + b.reshape(1, -1, 1, 1))

    def convT(v, w, b):
        wc = jnp.transpose(w[:, :, ::-1, ::-1], (1, 0, 2, 3))
        y = lax.conv_general_dilated(v, wc, (1, 1), ((1, 2), (1, 2)),
                                     lhs_dilation=(2, 2),
                                     dimension_numbers=dn, precision=hi)
        return jax.nn.relu(y + b.reshape(1, -1, 1, 1))

    def pool(v):
        return lax.reduce_window(v, -jnp.inf, lax.max,
                                 (1, 1, 2, 2), (1, 1, 2, 2), "VALID")

    c1 = conv(x, *params["conv1"]); p1 = pool(c1)
    c2 = conv(p1, *params["conv2"]); p2 = pool(c2)
    c3 = conv(p2, *params["conv3"]); p3 = pool(c3)
    c4 = convT(p3, *params["conv4"])
    c5 = convT(jnp.concatenate([c4, c3], axis=1), *params["conv5"])
    c6 = convT(jnp.concatenate([c5, c2], axis=1), *params["conv6"])
    c7 = conv(jnp.concatenate([c6, c1], axis=1), *params["conv7"])
    return c7


if __name__ == "__main__":
    key = jax.random.PRNGKey(0)
    pkey, xkey = jax.random.split(key)
    params = init_params(pkey)

    # Small NCHW input consistent with the module: batch=2, 1 channel, 16x16.
    x = jax.random.normal(xkey, (2, 1, 16, 16), dtype=jnp.float32)

    out = jax.block_until_ready(unet_forward(params, x))

    assert out.shape == (2, 2, 16, 16), out.shape
    assert bool(jnp.all(jnp.isfinite(out)))
    assert bool(jnp.all(out >= 0.0))          # final ReLU

    ref = jax.block_until_ready(_ref_forward(params, x))
    err = float(jnp.max(jnp.abs(out - ref)))
    assert err < 5e-3, f"max |pallas - reference| = {err}"

    print("KERNEL_OK")
</pallas_src>

<mosaic_0001>
module attributes {stable_mosaic.version = 11 : i64} {
  func.func @_unet_kernel(%arg0: i32, %arg1: memref<1x1x256xf32, #tpu.memory_space<vmem>>, %arg2: memref<8x9xf32, #tpu.memory_space<vmem>>, %arg3: memref<8x1xf32, #tpu.memory_space<vmem>>, %arg4: memref<16x72xf32, #tpu.memory_space<vmem>>, %arg5: memref<16x1xf32, #tpu.memory_space<vmem>>, %arg6: memref<32x144xf32, #tpu.memory_space<vmem>>, %arg7: memref<32x1xf32, #tpu.memory_space<vmem>>, %arg8: memref<16x288xf32, #tpu.memory_space<vmem>>, %arg9: memref<16x1xf32, #tpu.memory_space<vmem>>, %arg10: memref<8x432xf32, #tpu.memory_space<vmem>>, %arg11: memref<8x1xf32, #tpu.memory_space<vmem>>, %arg12: memref<8x216xf32, #tpu.memory_space<vmem>>, %arg13: memref<8x1xf32, #tpu.memory_space<vmem>>, %arg14: memref<2x144xf32, #tpu.memory_space<vmem>>, %arg15: memref<2x1xf32, #tpu.memory_space<vmem>>, %arg16: memref<256x64xf32, #tpu.memory_space<vmem>>, %arg17: memref<64x256xf32, #tpu.memory_space<vmem>>, %arg18: memref<64x16xf32, #tpu.memory_space<vmem>>, %arg19: memref<16x64xf32, #tpu.memory_space<vmem>>, %arg20: memref<16x4xf32, #tpu.memory_space<vmem>>, %arg21: memref<4x16xf32, #tpu.memory_space<vmem>>, %arg22: memref<1x2x256xf32, #tpu.memory_space<vmem>>) attributes {dimension_semantics = [#tpu.dimension_semantics<parallel>], iteration_bounds = array<i64: 2>, scalar_prefetch = 0 : i64, scratch_operands = 0 : i64, tpu.core_type = #tpu.core_type<tc>, window_params = [{transform_indices = @transform_0, window_bounds = array<i64: 1, 1, 256>}, {pipeline_mode = #tpu.pipeline_mode<synchronous>, transform_indices = @transform_1, window_bounds = array<i64: 8, 9>}, {pipeline_mode = #tpu.pipeline_mode<synchronous>, transform_indices = @transform_2, window_bounds = array<i64: 8, 1>}, {pipeline_mode = #tpu.pipeline_mode<synchronous>, transform_indices = @transform_3, window_bounds = array<i64: 16, 72>}, {pipeline_mode = #tpu.pipeline_mode<synchronous>, transform_indices = @transform_4, window_bounds = array<i64: 16, 1>}, {pipeline_mode = #tpu.pipeline_mode<synchronous>, transform_indices = @transform_5, window_bounds = array<i64: 32, 144>}, {pipeline_mode = #tpu.pipeline_mode<synchronous>, transform_indices = @transform_6, window_bounds = array<i64: 32, 1>}, {pipeline_mode = #tpu.pipeline_mode<synchronous>, transform_indices = @transform_7, window_bounds = array<i64: 16, 288>}, {pipeline_mode = #tpu.pipeline_mode<synchronous>, transform_indices = @transform_8, window_bounds = array<i64: 16, 1>}, {pipeline_mode = #tpu.pipeline_mode<synchronous>, transform_indices = @transform_9, window_bounds = array<i64: 8, 432>}, {pipeline_mode = #tpu.pipeline_mode<synchronous>, transform_indices = @transform_10, window_bounds = array<i64: 8, 1>}, {pipeline_mode = #tpu.pipeline_mode<synchronous>, transform_indices = @transform_11, window_bounds = array<i64: 8, 216>}, {pipeline_mode = #tpu.pipeline_mode<synchronous>, transform_indices = @transform_12, window_bounds = array<i64: 8, 1>}, {pipeline_mode = #tpu.pipeline_mode<synchronous>, transform_indices = @transform_13, window_bounds = array<i64: 2, 144>}, {pipeline_mode = #tpu.pipeline_mode<synchronous>, transform_indices = @transform_14, window_bounds = array<i64: 2, 1>}, {pipeline_mode = #tpu.pipeline_mode<synchronous>, transform_indices = @transform_15, window_bounds = array<i64: 256, 64>}, {pipeline_mode = #tpu.pipeline_mode<synchronous>, transform_indices = @transform_16, window_bounds = array<i64: 64, 256>}, {pipeline_mode = #tpu.pipeline_mode<synchronous>, transform_indices = @transform_17, window_bounds = array<i64: 64, 16>}, {pipeline_mode = #tpu.pipeline_mode<synchronous>, transform_indices = @transform_18, window_bounds = array<i64: 16, 64>}, {pipeline_mode = #tpu.pipeline_mode<synchronous>, transform_indices = @transform_19, window_bounds = array<i64: 16, 4>}, {pipeline_mode = #tpu.pipeline_mode<synchronous>, transform_indices = @transform_20, window_bounds = array<i64: 4, 16>}, {transform_indices = @transform_21, window_bounds = array<i64: 1, 2, 256>}]} {
    %c0 = arith.constant 0 : index
    %c0_0 = arith.constant 0 : index
    %c0_1 = arith.constant 0 : index
    %0 = vector.load %arg1[%c0, %c0_0, %c0_1] : memref<1x1x256xf32, #tpu.memory_space<vmem>>, vector<1x1x256xf32>
    %1 = vector.shape_cast %0 : vector<1x1x256xf32> to vector<1x256xf32>
    %2 = tpu.iota {dimensions = array<i32: 1>} : vector<1x256xi32>
    %c15_i32 = arith.constant 15 : i32
    %3 = vector.broadcast %c15_i32 : i32 to vector<1x256xi32>
    %4 = arith.andi %2, %3 : vector<1x256xi32>
    %c1_i32 = arith.constant 1 : i32
    %5 = vector.broadcast %c1_i32 : i32 to vector<1x256xi32>
    %6 = arith.cmpi sge, %4, %5 : vector<1x256xi32>
    %c15_i32_2 = arith.constant 15 : i32
    %7 = vector.broadcast %c15_i32_2 : i32 to vector<1x256xi32>
    %8 = arith.cmpi slt, %4, %7 : vector<1x256xi32>
    %9 = tpu.iota {dimensions = array<i32: 1>} : vector<1x64xi32>
    %c7_i32 = arith.constant 7 : i32
    %10 = vector.broadcast %c7_i32 : i32 to vector<1x64xi32>
    %11 = arith.andi %9, %10 : vector<1x64xi32>
    %c1_i32_3 = arith.constant 1 : i32
    %12 = vector.broadcast %c1_i32_3 : i32 to vector<1x64xi32>
    %13 = arith.cmpi sge, %11, %12 : vector<1x64xi32>
    %c7_i32_4 = arith.constant 7 : i32
    %14 = vector.broadcast %c7_i32_4 : i32 to vector<1x64xi32>
    %15 = arith.cmpi slt, %11, %14 : vector<1x64xi32>
    %16 = tpu.iota {dimensions = array<i32: 1>} : vector<1x16xi32>
    %c3_i32 = arith.constant 3 : i32
    %17 = vector.broadcast %c3_i32 : i32 to vector<1x16xi32>
    %18 = arith.andi %16, %17 : vector<1x16xi32>
    %c1_i32_5 = arith.constant 1 : i32
    %19 = vector.broadcast %c1_i32_5 : i32 to vector<1x16xi32>
    %20 = arith.cmpi sge, %18, %19 : vector<1x16xi32>
    %c3_i32_6 = arith.constant 3 : i32
    %21 = vector.broadcast %c3_i32_6 : i32 to vector<1x16xi32>
    %22 = arith.cmpi slt, %18, %21 : vector<1x16xi32>
    %c0_7 = arith.constant 0 : index
    %c0_8 = arith.constant 0 : index
    %23 = vector.load %arg2[%c0_7, %c0_8] : memref<8x9xf32, #tpu.memory_space<vmem>>, vector<8x9xf32>
    %c0_9 = arith.constant 0 : index
    %c0_10 = arith.constant 0 : index
    %24 = vector.load %arg3[%c0_9, %c0_10] : memref<8x1xf32, #tpu.memory_space<vmem>>, vector<8x1xf32>
    %cst = arith.constant 0.000000e+00 : f32
    %25 = vector.broadcast %cst : f32 to vector<1x17xf32>
    %26 = tpu.concatenate %25, %1, %25 in 1 : vector<1x17xf32>, vector<1x256xf32>, vector<1x17xf32> -> vector<1x290xf32>
    %27 = vector.extract_strided_slice %26 {offsets = [0, 0], sizes = [1, 256], strides = [1, 1]} : vector<1x290xf32> to vector<1x256xf32>
    %cst_11 = arith.constant 0.000000e+00 : f32
    %28 = vector.broadcast %cst_11 : f32 to vector<1x256xf32>
    %29 = arith.select %6, %27, %28 : vector<1x256xi1>, vector<1x256xf32>
    %30 = vector.extract_strided_slice %26 {offsets = [0, 1], sizes = [1, 256], strides = [1, 1]} : vector<1x290xf32> to vector<1x256xf32>
    %31 = vector.extract_strided_slice %26 {offsets = [0, 2], sizes = [1, 256], strides = [1, 1]} : vector<1x290xf32> to vector<1x256xf32>
    %cst_12 = arith.constant 0.000000e+00 : f32
    %32 = vector.broadcast %cst_12 : f32 to vector<1x256xf32>
    %33 = arith.select %8, %31, %32 : vector<1x256xi1>, vector<1x256xf32>
    %34 = vector.extract_strided_slice %26 {offsets = [0, 16], sizes = [1, 256], strides = [1, 1]} : vector<1x290xf32> to vector<1x256xf32>
    %cst_13 = arith.constant 0.000000e+00 : f32
    %35 = vector.broadcast %cst_13 : f32 to vector<1x256xf32>
    %36 = arith.select %6, %34, %35 : vector<1x256xi1>, vector<1x256xf32>
    %37 = vector.extract_strided_slice %26 {offsets = [0, 17], sizes = [1, 256], strides = [1, 1]} : vector<1x290xf32> to vector<1x256xf32>
    %38 = vector.extract_strided_slice %26 {offsets = [0, 18], sizes = [1, 256], strides = [1, 1]} : vector<1x290xf32> to vector<1x256xf32>
    %cst_14 = arith.constant 0.000000e+00 : f32
    %39 = vector.broadcast %cst_14 : f32 to vector<1x256xf32>
    %40 = arith.select %8, %38, %39 : vector<1x256xi1>, vector<1x256xf32>
    %41 = vector.extract_strided_slice %26 {offsets = [0, 32], sizes = [1, 256], strides = [1, 1]} : vector<1x290xf32> to vector<1x256xf32>
    %cst_15 = arith.constant 0.000000e+00 : f32
    %42 = vector.broadcast %cst_15 : f32 to vector<1x256xf32>
    %43 = arith.select %6, %41, %42 : vector<1x256xi1>, vector<1x256xf32>
    %44 = vector.extract_strided_slice %26 {offsets = [0, 33], sizes = [1, 256], strides = [1, 1]} : vector<1x290xf32> to vector<1x256xf32>
    %45 = vector.extract_strided_slice %26 {offsets = [0, 34], sizes = [1, 256], strides = [1, 1]} : vector<1x290xf32> to vector<1x256xf32>
    %cst_16 = arith.constant 0.000000e+00 : f32
    %46 = vector.broadcast %cst_16 : f32 to vector<1x256xf32>
    %47 = arith.select %8, %45, %46 : vector<1x256xi1>, vector<1x256xf32>
    %cst_17 = arith.constant 0.000000e+00 : f32
    %48 = vector.broadcast %cst_17 : f32 to vector<8x256xf32>
    %49 = vector.extract_strided_slice %23 {offsets = [0, 0], sizes = [8, 1], strides = [1, 1]} : vector<8x9xf32> to vector<8x1xf32>
    %50 = vector.broadcast %49 : vector<8x1xf32> to vector<8x256xf32>
    %51 = vector.broadcast %29 : vector<1x256xf32> to vector<8x256xf32>
    %52 = arith.mulf %50, %51 : vector<8x256xf32>
    %53 = arith.addf %48, %52 : vector<8x256xf32>
    %54 = vector.extract_strided_slice %23 {offsets = [0, 1], sizes = [8, 1], strides = [1, 1]} : vector<8x9xf32> to vector<8x1xf32>
    %55 = vector.broadcast %54 : vector<8x1xf32> to vector<8x256xf32>
    %56 = vector.broadcast %30 : vector<1x256xf32> to vector<8x256xf32>
    %57 = arith.mulf %55, %56 : vector<8x256xf32>
    %58 = arith.addf %53, %57 : vector<8x256xf32>
    %59 = vector.extract_strided_slice %23 {offsets = [0, 2], sizes = [8, 1], strides = [1, 1]} : vector<8x9xf32> to vector<8x1xf32>
    %60 = vector.broadcast %59 : vector<8x1xf32> to vector<8x256xf32>
    %61 = vector.broadcast %33 : vector<1x256xf32> to vector<8x256xf32>
    %62 = arith.mulf %60, %61 : vector<8x256xf32>
    %63 = arith.addf %58, %62 : vector<8x256xf32>
    %64 = vector.extract_strided_slice %23 {offsets = [0, 3], sizes = [8, 1], strides = [1, 1]} : vector<8x9xf32> to vector<8x1xf32>
    %65 = vector.broadcast %64 : vector<8x1xf32> to vector<8x256xf32>
    %66 = vector.broadcast %36 : vector<1x256xf32> to vector<8x256xf32>
    %67 = arith.mulf %65, %66 : vector<8x256xf32>
    %68 = arith.addf %63, %67 : vector<8x256xf32>
    %69 = vector.extract_strided_slice %23 {offsets = [0, 4], sizes = [8, 1], strides = [1, 1]} : vector<8x9xf32> to vector<8x1xf32>
    %70 = vector.broadcast %69 : vector<8x1xf32> to vector<8x256xf32>
    %71 = vector.broadcast %37 : vector<1x256xf32> to vector<8x256xf32>
    %72 = arith.mulf %70, %71 : vector<8x256xf32>
    %73 = arith.addf %68, %72 : vector<8x256xf32>
    %74 = vector.extract_strided_slice %23 {offsets = [0, 5], sizes = [8, 1], strides = [1, 1]} : vector<8x9xf32> to vector<8x1xf32>
    %75 = vector.broadcast %74 : vector<8x1xf32> to vector<8x256xf32>
    %76 = vector.broadcast %40 : vector<1x256xf32> to vector<8x256xf32>
    %77 = arith.mulf %75, %76 : vector<8x256xf32>
    %78 = arith.addf %73, %77 : vector<8x256xf32>
    %79 = vector.extract_strided_slice %23 {offsets = [0, 6], sizes = [8, 1], strides = [1, 1]} : vector<8x9xf32> to vector<8x1xf32>
    %80 = vector.broadcast %79 : vector<8x1xf32> to vector<8x256xf32>
    %81 = vector.broadcast %43 : vector<1x256xf32> to vector<8x256xf32>
    %82 = arith.mulf %80, %81 : vector<8x256xf32>
    %83 = arith.addf %78, %82 : vector<8x256xf32>
    %84 = vector.extract_strided_slice %23 {offsets = [0, 7], sizes = [8, 1], strides = [1, 1]} : vector<8x9xf32> to vector<8x1xf32>
    %85 = vector.broadcast %84 : vector<8x1xf32> to vector<8x256xf32>
    %86 = vector.broadcast %44 : vector<1x256xf32> to vector<8x256xf32>
    %87 = arith.mulf %85, %86 : vector<8x256xf32>
    %88 = arith.addf %83, %87 : vector<8x256xf32>
    %89 = vector.extract_strided_slice %23 {offsets = [0, 8], sizes = [8, 1], strides = [1, 1]} : vector<8x9xf32> to vector<8x1xf32>
    %90 = vector.broadcast %89 : vector<8x1xf32> to vector<8x256xf32>
    %91 = vector.broadcast %47 : vector<1x256xf32> to vector<8x256xf32>
    %92 = arith.mulf %90, %91 : vector<8x256xf32>
    %93 = arith.addf %88, %92 : vector<8x256xf32>
    %94 = vector.broadcast %24 : vector<8x1xf32> to vector<8x256xf32>
    %95 = arith.addf %93, %94 : vector<8x256xf32>
    %cst_18 = arith.constant 0.000000e+00 : f32
    %96 = vector.broadcast %cst_18 : f32 to vector<8x256xf32>
    %97 = arith.maximumf %95, %96 : vector<8x256xf32>
    %c0_19 = arith.constant 0 : index
    %c0_20 = arith.constant 0 : index
    %98 = vector.load %arg16[%c0_19, %c0_20] : memref<256x64xf32, #tpu.memory_space<vmem>>, vector<256x64xf32>
    %cst_21 = arith.constant 0.000000e+00 : f32
    %99 = vector.broadcast %cst_21 : f32 to vector<8x17xf32>
    %100 = tpu.concatenate %99, %97, %99 in 1 : vector<8x17xf32>, vector<8x256xf32>, vector<8x17xf32> -> vector<8x290xf32>
    %101 = vector.extract_strided_slice %100 {offsets = [0, 18], sizes = [8, 256], strides = [1, 1]} : vector<8x290xf32> to vector<8x256xf32>
    %102 = vector.extract_strided_slice %100 {offsets = [0, 33], sizes = [8, 256], strides = [1, 1]} : vector<8x290xf32> to vector<8x256xf32>
    %103 = vector.extract_strided_slice %100 {offsets = [0, 34], sizes = [8, 256], strides = [1, 1]} : vector<8x290xf32> to vector<8x256xf32>
    %104 = arith.maximumf %97, %101 : vector<8x256xf32>
    %105 = arith.maximumf %102, %103 : vector<8x256xf32>
    %106 = arith.maximumf %104, %105 : vector<8x256xf32>
    %cst_22 = arith.constant dense<0.000000e+00> : vector<8x64xf32>
    %107 = tpu.matmul %106, %98, %cst_22 {dimension_numbers = #tpu.dot_dimension_numbers<[1], [0], [0], [1], [0, 0, 1, 1], [], []>} : vector<8x256xf32>, vector<256x64xf32>, vector<8x64xf32> -> vector<8x64xf32>
    %c0_23 = arith.constant 0 : index
    %c0_24 = arith.constant 0 : index
    %108 = vector.load %arg4[%c0_23, %c0_24] : memref<16x72xf32, #tpu.memory_space<vmem>>, vector<16x72xf32>
    %c0_25 = arith.constant 0 : index
    %c0_26 = arith.constant 0 : index
    %109 = vector.load %arg5[%c0_25, %c0_26] : memref<16x1xf32, #tpu.memory_space<vmem>>, vector<16x1xf32>
    %cst_27 = arith.constant 0.000000e+00 : f32
    %110 = vector.broadcast %cst_27 : f32 to vector<8x9xf32>
    %111 = tpu.concatenate %110, %107, %110 in 1 : vector<8x9xf32>, vector<8x64xf32>, vector<8x9xf32> -> vector<8x82xf32>
    %112 = vector.extract_strided_slice %111 {offsets = [0, 0], sizes = [8, 64], strides = [1, 1]} : vector<8x82xf32> to vector<8x64xf32>
    %cst_28 = arith.constant 0.000000e+00 : f32
    %113 = vector.shape_cast %13 : vector<1x64xi1> to vector<1x64xi1>
    %114 = vector.broadcast %113 : vector<1x64xi1> to vector<8x64xi1>
    %115 = vector.broadcast %cst_28 : f32 to vector<8x64xf32>
    %116 = arith.select %114, %112, %115 : vector<8x64xi1>, vector<8x64xf32>
    %117 = vector.extract_strided_slice %111 {offsets = [0, 1], sizes = [8, 64], strides = [1, 1]} : vector<8x82xf32> to vector<8x64xf32>
    %118 = vector.extract_strided_slice %111 {offsets = [0, 2], sizes = [8, 64], strides = [1, 1]} : vector<8x82xf32> to vector<8x64xf32>
    %cst_29 = arith.constant 0.000000e+00 : f32
    %119 = vector.shape_cast %15 : vector<1x64xi1> to vector<1x64xi1>
    %120 = vector.broadcast %119 : vector<1x64xi1> to vector<8x64xi1>
    %121 = vector.broadcast %cst_29 : f32 to vector<8x64xf32>
    %122 = arith.select %120, %118, %121 : vector<8x64xi1>, vector<8x64xf32>
    %123 = vector.extract_strided_slice %111 {offsets = [0, 8], sizes = [8, 64], strides = [1, 1]} : vector<8x82xf32> to vector<8x64xf32>
    %cst_30 = arith.constant 0.000000e+00 : f32
    %124 = vector.shape_cast %13 : vector<1x64xi1> to vector<1x64xi1>
    %125 = vector.broadcast %124 : vector<1x64xi1> to vector<8x64xi1>
    %126 = vector.broadcast %cst_30 : f32 to vector<8x64xf32>
    %127 = arith.select %125, %123, %126 : vector<8x64xi1>, vector<8x64xf32>
    %128 = vector.extract_strided_slice %111 {offsets = [0, 9], sizes = [8, 64], strides = [1, 1]} : vector<8x82xf32> to vector<8x64xf32>
    %129 = vector.extract_strided_slice %111 {offsets = [0, 10], sizes = [8, 64], strides = [1, 1]} : vector<8x82xf32> to vector<8x64xf32>
    %cst_31 = arith.constant 0.000000e+00 : f32
    %130 = vector.shape_cast %15 : vector<1x64xi1> to vector<1x64xi1>
    %131 = vector.broadcast %130 : vector<1x64xi1> to vector<8x64xi1>
    %132 = vector.broadcast %cst_31 : f32 to vector<8x64xf32>
    %133 = arith.select %131, %129, %132 : vector<8x64xi1>, vector<8x64xf32>
    %134 = vector.extract_strided_slice %111 {offsets = [0, 16], sizes = [8, 64], strides = [1, 1]} : vector<8x82xf32> to vector<8x64xf32>
    %cst_32 = arith.constant 0.000000e+00 : f32
    %135 = vector.shape_cast %13 : vector<1x64xi1> to vector<1x64xi1>
    %136 = vector.broadcast %135 : vector<1x64xi1> to vector<8x64xi1>
    %137 = vector.broadcast %cst_32 : f32 to vector<8x64xf32>
    %138 = arith.select %136, %134, %137 : vector<8x64xi1>, vector<8x64xf32>
    %139 = vector.extract_strided_slice %111 {offsets = [0, 17], sizes = [8, 64], strides = [1, 1]} : vector<8x82xf32> to vector<8x64xf32>
    %140 = vector.extract_strided_slice %111 {offsets = [0, 18], sizes = [8, 64], strides = [1, 1]} : vector<8x82xf32> to vector<8x64xf32>
    %cst_33 = arith.constant 0.000000e+00 : f32
    %141 = vector.shape_cast %15 : vector<1x64xi1> to vector<1x64xi1>
    %142 = vector.broadcast %141 : vector<1x64xi1> to vector<8x64xi1>
    %143 = vector.broadcast %cst_33 : f32 to vector<8x64xf32>
    %144 = arith.select %142, %140, %143 : vector<8x64xi1>, vector<8x64xf32>
    %145 = tpu.concatenate %116, %117, %122, %127, %128, %133, %138, %139, %144 in 0 : vector<8x64xf32>, vector<8x64xf32>, vector<8x64xf32>, vector<8x64xf32>, vector<8x64xf32>, vector<8x64xf32>, vector<8x64xf32>, vector<8x64xf32>, vector<8x64xf32> -> vector<72x64xf32>
    %cst_34 = arith.constant dense<0.000000e+00> : vector<16x64xf32>
    %146 = tpu.matmul %108, %145, %cst_34 {dimension_numbers = #tpu.dot_dimension_numbers<[1], [0], [0], [1], [0, 0, 1, 1], [], []>} : vector<16x72xf32>, vector<72x64xf32>, vector<16x64xf32> -> vector<16x64xf32>
    %147 = vector.broadcast %109 : vector<16x1xf32> to vector<16x64xf32>
    %148 = arith.addf %146, %147 : vector<16x64xf32>
    %cst_35 = arith.constant 0.000000e+00 : f32
    %149 = vector.broadcast %cst_35 : f32 to vector<16x64xf32>
    %150 = arith.maximumf %148, %149 : vector<16x64xf32>
    %c0_36 = arith.constant 0 : index
    %c0_37 = arith.constant 0 : index
    %151 = vector.load %arg18[%c0_36, %c0_37] : memref<64x16xf32, #tpu.memory_space<vmem>>, vector<64x16xf32>
    %cst_38 = arith.constant 0.000000e+00 : f32
    %152 = vector.broadcast %cst_38 : f32 to vector<16x9xf32>
    %153 = tpu.concatenate %152, %150, %152 in 1 : vector<16x9xf32>, vector<16x64xf32>, vector<16x9xf32> -> vector<16x82xf32>
    %154 = vector.extract_strided_slice %153 {offsets = [0, 10], sizes = [16, 64], strides = [1, 1]} : vector<16x82xf32> to vector<16x64xf32>
    %155 = vector.extract_strided_slice %153 {offsets = [0, 17], sizes = [16, 64], strides = [1, 1]} : vector<16x82xf32> to vector<16x64xf32>
    %156 = vector.extract_strided_slice %153 {offsets = [0, 18], sizes = [16, 64], strides = [1, 1]} : vector<16x82xf32> to vector<16x64xf32>
    %157 = arith.maximumf %150, %154 : vector<16x64xf32>
    %158 = arith.maximumf %155, %156 : vector<16x64xf32>
    %159 = arith.maximumf %157, %158 : vector<16x64xf32>
    %cst_39 = arith.constant dense<0.000000e+00> : vector<16x16xf32>
    %160 = tpu.matmul %159, %151, %cst_39 {dimension_numbers = #tpu.dot_dimension_numbers<[1], [0], [0], [1], [0, 0, 1, 1], [], []>} : vector<16x64xf32>, vector<64x16xf32>, vector<16x16xf32> -> vector<16x16xf32>
    %c0_40 = arith.constant 0 : index
    %c0_41 = arith.constant 0 : index
    %161 = vector.load %arg6[%c0_40, %c0_41] : memref<32x144xf32, #tpu.memory_space<vmem>>, vector<32x144xf32>
    %c0_42 = arith.constant 0 : index
    %c0_43 = arith.constant 0 : index
    %162 = vector.load %arg7[%c0_42, %c0_43] : memref<32x1xf32, #tpu.memory_space<vmem>>, vector<32x1xf32>
    %cst_44 = arith.constant 0.000000e+00 : f32
    %163 = vector.broadcast %cst_44 : f32 to vector<16x5xf32>
    %164 = tpu.concatenate %163, %160, %163 in 1 : vector<16x5xf32>, vector<16x16xf32>, vector<16x5xf32> -> vector<16x26xf32>
    %165 = vector.extract_strided_slice %164 {offsets = [0, 0], sizes = [16, 16], strides = [1, 1]} : vector<16x26xf32> to vector<16x16xf32>
    %cst_45 = arith.constant 0.000000e+00 : f32
    %166 = vector.shape_cast %20 : vector<1x16xi1> to vector<1x16xi1>
    %167 = vector.broadcast %166 : vector<1x16xi1> to vector<16x16xi1>
    %168 = vector.broadcast %cst_45 : f32 to vector<16x16xf32>
    %169 = arith.select %167, %165, %168 : vector<16x16xi1>, vector<16x16xf32>
    %170 = vector.extract_strided_slice %164 {offsets = [0, 1], sizes = [16, 16], strides = [1, 1]} : vector<16x26xf32> to vector<16x16xf32>
    %171 = vector.extract_strided_slice %164 {offsets = [0, 2], sizes = [16, 16], strides = [1, 1]} : vector<16x26xf32> to vector<16x16xf32>
    %cst_46 = arith.constant 0.000000e+00 : f32
    %172 = vector.shape_cast %22 : vector<1x16xi1> to vector<1x16xi1>
    %173 = vector.broadcast %172 : vector<1x16xi1> to vector<16x16xi1>
    %174 = vector.broadcast %cst_46 : f32 to vector<16x16xf32>
    %175 = arith.select %173, %171, %174 : vector<16x16xi1>, vector<16x16xf32>
    %176 = vector.extract_strided_slice %164 {offsets = [0, 4], sizes = [16, 16], strides = [1, 1]} : vector<16x26xf32> to vector<16x16xf32>
    %cst_47 = arith.constant 0.000000e+00 : f32
    %177 = vector.shape_cast %20 : vector<1x16xi1> to vector<1x16xi1>
    %178 = vector.broadcast %177 : vector<1x16xi1> to vector<16x16xi1>
    %179 = vector.broadcast %cst_47 : f32 to vector<16x16xf32>
    %180 = arith.select %178, %176, %179 : vector<16x16xi1>, vector<16x16xf32>
    %181 = vector.extract_strided_slice %164 {offsets = [0, 5], sizes = [16, 16], strides = [1, 1]} : vector<16x26xf32> to vector<16x16xf32>
    %182 = vector.extract_strided_slice %164 {offsets = [0, 6], sizes = [16, 16], strides = [1, 1]} : vector<16x26xf32> to vector<16x16xf32>
    %cst_48 = arith.constant 0.000000e+00 : f32
    %183 = vector.shape_cast %22 : vector<1x16xi1> to vector<1x16xi1>
    %184 = vector.broadcast %183 : vector<1x16xi1> to vector<16x16xi1>
    %185 = vector.broadcast %cst_48 : f32 to vector<16x16xf32>
    %186 = arith.select %184, %182, %185 : vector<16x16xi1>, vector<16x16xf32>
    %187 = vector.extract_strided_slice %164 {offsets = [0, 8], sizes = [16, 16], strides = [1, 1]} : vector<16x26xf32> to vector<16x16xf32>
    %cst_49 = arith.constant 0.000000e+00 : f32
    %188 = vector.shape_cast %20 : vector<1x16xi1> to vector<1x16xi1>
    %189 = vector.broadcast %188 : vector<1x16xi1> to vector<16x16xi1>
    %190 = vector.broadcast %cst_49 : f32 to vector<16x16xf32>
    %191 = arith.select %189, %187, %190 : vector<16x16xi1>, vector<16x16xf32>
    %192 = vector.extract_strided_slice %164 {offsets = [0, 9], sizes = [16, 16], strides = [1, 1]} : vector<16x26xf32> to vector<16x16xf32>
    %193 = vector.extract_strided_slice %164 {offsets = [0, 10], sizes = [16, 16], strides = [1, 1]} : vector<16x26xf32> to vector<16x16xf32>
    %cst_50 = arith.constant 0.000000e+00 : f32
    %194 = vector.shape_cast %22 : vector<1x16xi1> to vector<1x16xi1>
    %195 = vector.broadcast %194 : vector<1x16xi1> to vector<16x16xi1>
    %196 = vector.broadcast %cst_50 : f32 to vector<16x16xf32>
    %197 = arith.select %195, %193, %196 : vector<16x16xi1>, vector<16x16xf32>
    %198 = tpu.concatenate %169, %170, %175, %180, %181, %186, %191, %192, %197 in 0 : vector<16x16xf32>, vector<16x16xf32>, vector<16x16xf32>, vector<16x16xf32>, vector<16x16xf32>, vector<16x16xf32>, vector<16x16xf32>, vector<16x16xf32>, vector<16x16xf32> -> vector<144x16xf32>
    %cst_51 = arith.constant dense<0.000000e+00> : vector<32x16xf32>
    %199 = tpu.matmul %161, %198, %cst_51 {dimension_numbers = #tpu.dot_dimension_numbers<[1], [0], [0], [1], [0, 0, 1, 1], [], []>} : vector<32x144xf32>, vector<144x16xf32>, vector<32x16xf32> -> vector<32x16xf32>
    %200 = vector.broadcast %162 : vector<32x1xf32> to vector<32x16xf32>
    %201 = arith.addf %199, %200 : vector<32x16xf32>
    %cst_52 = arith.constant 0.000000e+00 : f32
    %202 = vector.broadcast %cst_52 : f32 to vector<32x16xf32>
    %203 = arith.maximumf %201, %202 : vector<32x16xf32>
    %c0_53 = arith.constant 0 : index
    %c0_54 = arith.constant 0 : index
    %204 = vector.load %arg20[%c0_53, %c0_54] : memref<16x4xf32, #tpu.memory_space<vmem>>, vector<16x4xf32>
    %cst_55 = arith.constant 0.000000e+00 : f32
    %205 = vector.broadcast %cst_55 : f32 to vector<32x5xf32>
    %206 = tpu.concatenate %205, %203, %205 in 1 : vector<32x5xf32>, vector<32x16xf32>, vector<32x5xf32> -> vector<32x26xf32>
    %207 = vector.extract_strided_slice %206 {offsets = [0, 6], sizes = [32, 16], strides = [1, 1]} : vector<32x26xf32> to vector<32x16xf32>
    %208 = vector.extract_strided_slice %206 {offsets = [0, 9], sizes = [32, 16], strides = [1, 1]} : vector<32x26xf32> to vector<32x16xf32>
    %209 = vector.extract_strided_slice %206 {offsets = [0, 10], sizes = [32, 16], strides = [1, 1]} : vector<32x26xf32> to vector<32x16xf32>
    %210 = arith.maximumf %203, %207 : vector<32x16xf32>
    %211 = arith.maximumf %208, %209 : vector<32x16xf32>
    %212 = arith.maximumf %210, %211 : vector<32x16xf32>
    %cst_56 = arith.constant dense<0.000000e+00> : vector<32x4xf32>
    %213 = tpu.matmul %212, %204, %cst_56 {dimension_numbers = #tpu.dot_dimension_numbers<[1], [0], [0], [1], [0, 0, 1, 1], [], []>} : vector<32x16xf32>, vector<16x4xf32>, vector<32x4xf32> -> vector<32x4xf32>
    %c0_57 = arith.constant 0 : index
    %c0_58 = arith.constant 0 : index
    %214 = vector.load %arg21[%c0_57, %c0_58] : memref<4x16xf32, #tpu.memory_space<vmem>>, vector<4x16xf32>
    %cst_59 = arith.constant dense<0.000000e+00> : vector<32x16xf32>
    %215 = tpu.matmul %213, %214, %cst_59 {dimension_numbers = #tpu.dot_dimension_numbers<[1], [0], [0], [1], [0, 0, 1, 1], [], []>} : vector<32x4xf32>, vector<4x16xf32>, vector<32x16xf32> -> vector<32x16xf32>
    %c0_60 = arith.constant 0 : index
    %c0_61 = arith.constant 0 : index
    %216 = vector.load %arg8[%c0_60, %c0_61] : memref<16x288xf32, #tpu.memory_space<vmem>>, vector<16x288xf32>
    %c0_62 = arith.constant 0 : index
    %c0_63 = arith.constant 0 : index
    %217 = vector.load %arg9[%c0_62, %c0_63] : memref<16x1xf32, #tpu.memory_space<vmem>>, vector<16x1xf32>
    %cst_64 = arith.constant 0.000000e+00 : f32
    %218 = vector.broadcast %cst_64 : f32 to vector<32x5xf32>
    %219 = tpu.concatenate %218, %215, %218 in 1 : vector<32x5xf32>, vector<32x16xf32>, vector<32x5xf32> -> vector<32x26xf32>
    %220 = vector.extract_strided_slice %219 {offsets = [0, 0], sizes = [32, 16], strides = [1, 1]} : vector<32x26xf32> to vector<32x16xf32>
    %cst_65 = arith.constant 0.000000e+00 : f32
    %221 = vector.shape_cast %20 : vector<1x16xi1> to vector<1x16xi1>
    %222 = vector.broadcast %221 : vector<1x16xi1> to vector<32x16xi1>
    %223 = vector.broadcast %cst_65 : f32 to vector<32x16xf32>
    %224 = arith.select %222, %220, %223 : vector<32x16xi1>, vector<32x16xf32>
    %225 = vector.extract_strided_slice %219 {offsets = [0, 1], sizes = [32, 16], strides = [1, 1]} : vector<32x26xf32> to vector<32x16xf32>
    %226 = vector.extract_strided_slice %219 {offsets = [0, 2], sizes = [32, 16], strides = [1, 1]} : vector<32x26xf32> to vector<32x16xf32>
    %cst_66 = arith.constant 0.000000e+00 : f32
    %227 = vector.shape_cast %22 : vector<1x16xi1> to vector<1x16xi1>
    %228 = vector.broadcast %227 : vector<1x16xi1> to vector<32x16xi1>
    %229 = vector.broadcast %cst_66 : f32 to vector<32x16xf32>
    %230 = arith.select %228, %226, %229 : vector<32x16xi1>, vector<32x16xf32>
    %231 = vector.extract_strided_slice %219 {offsets = [0, 4], sizes = [32, 16], strides = [1, 1]} : vector<32x26xf32> to vector<32x16xf32>
    %cst_67 = arith.constant 0.000000e+00 : f32
    %232 = vector.shape_cast %20 : vector<1x16xi1> to vector<1x16xi1>
    %233 = vector.broadcast %232 : vector<1x16xi1> to vector<32x16xi1>
    %234 = vector.broadcast %cst_67 : f32 to vector<32x16xf32>
    %235 = arith.select %233, %231, %234 : vector<32x16xi1>, vector<32x16xf32>
    %236 = vector.extract_strided_slice %219 {offsets = [0, 5], sizes = [32, 16], strides = [1, 1]} : vector<32x26xf32> to vector<32x16xf32>
    %237 = vector.extract_strided_slice %219 {offsets = [0, 6], sizes = [32, 16], strides = [1, 1]} : vector<32x26xf32> to vector<32x16xf32>
    %cst_68 = arith.constant 0.000000e+00 : f32
    %238 = vector.shape_cast %22 : vector<1x16xi1> to vector<1x16xi1>
    %239 = vector.broadcast %238 : vector<1x16xi1> to vector<32x16xi1>
    %240 = vector.broadcast %cst_68 : f32 to vector<32x16xf32>
    %241 = arith.select %239, %237, %240 : vector<32x16xi1>, vector<32x16xf32>
    %242 = vector.extract_strided_slice %219 {offsets = [0, 8], sizes = [32, 16], strides = [1, 1]} : vector<32x26xf32> to vector<32x16xf32>
    %cst_69 = arith.constant 0.000000e+00 : f32
    %243 = vector.shape_cast %20 : vector<1x16xi1> to vector<1x16xi1>
    %244 = vector.broadcast %243 : vector<1x16xi1> to vector<32x16xi1>
    %245 = vector.broadcast %cst_69 : f32 to vector<32x16xf32>
    %246 = arith.select %244, %242, %245 : vector<32x16xi1>, vector<32x16xf32>
    %247 = vector.extract_strided_slice %219 {offsets = [0, 9], sizes = [32, 16], strides = [1, 1]} : vector<32x26xf32> to vector<32x16xf32>
    %248 = vector.extract_strided_slice %219 {offsets = [0, 10], sizes = [32, 16], strides = [1, 1]} : vector<32x26xf32> to vector<32x16xf32>
    %cst_70 = arith.constant 0.000000e+00 : f32
    %249 = vector.shape_cast %22 : vector<1x16xi1> to vector<1x16xi1>
    %250 = vector.broadcast %249 : vector<1x16xi1> to vector<32x16xi1>
    %251 = vector.broadcast %cst_70 : f32 to vector<32x16xf32>
    %252 = arith.select %250, %248, %251 : vector<32x16xi1>, vector<32x16xf32>
    %253 = tpu.concatenate %224, %225, %230, %235, %236, %241, %246, %247, %252 in 0 : vector<32x16xf32>, vector<32x16xf32>, vector<32x16xf32>, vector<32x16xf32>, vector<32x16xf32>, vector<32x16xf32>, vector<32x16xf32>, vector<32x16xf32>, vector<32x16xf32> -> vector<288x16xf32>
    %cst_71 = arith.constant dense<0.000000e+00> : vector<16x16xf32>
    %254 = tpu.matmul %216, %253, %cst_71 {dimension_numbers = #tpu.dot_dimension_numbers<[1], [0], [0], [1], [0, 0, 1, 1], [], []>} : vector<16x288xf32>, vector<288x16xf32>, vector<16x16xf32> -> vector<16x16xf32>
    %255 = vector.broadcast %217 : vector<16x1xf32> to vector<16x16xf32>
    %256 = arith.addf %254, %255 : vector<16x16xf32>
    %cst_72 = arith.constant 0.000000e+00 : f32
    %257 = vector.broadcast %cst_72 : f32 to vector<16x16xf32>
    %258 = arith.maximumf %256, %257 : vector<16x16xf32>
    %259 = tpu.concatenate %258, %203 in 0 : vector<16x16xf32>, vector<32x16xf32> -> vector<48x16xf32>
    %c0_73 = arith.constant 0 : index
    %c0_74 = arith.constant 0 : index
    %260 = vector.load %arg19[%c0_73, %c0_74] : memref<16x64xf32, #tpu.memory_space<vmem>>, vector<16x64xf32>
    %cst_75 = arith.constant dense<0.000000e+00> : vector<48x64xf32>
    %261 = tpu.matmul %259, %260, %cst_75 {dimension_numbers = #tpu.dot_dimension_numbers<[1], [0], [0], [1], [0, 0, 1, 1], [], []>} : vector<48x16xf32>, vector<16x64xf32>, vector<48x64xf32> -> vector<48x64xf32>
    %c0_76 = arith.constant 0 : index
    %c0_77 = arith.constant 0 : index
    %262 = vector.load %arg10[%c0_76, %c0_77] : memref<8x432xf32, #tpu.memory_space<vmem>>, vector<8x432xf32>
    %c0_78 = arith.constant 0 : index
    %c0_79 = arith.constant 0 : index
    %263 = vector.load %arg11[%c0_78, %c0_79] : memref<8x1xf32, #tpu.memory_space<vmem>>, vector<8x1xf32>
    %cst_80 = arith.constant 0.000000e+00 : f32
    %264 = vector.broadcast %cst_80 : f32 to vector<48x9xf32>
    %265 = tpu.concatenate %264, %261, %264 in 1 : vector<48x9xf32>, vector<48x64xf32>, vector<48x9xf32> -> vector<48x82xf32>
    %266 = vector.extract_strided_slice %265 {offsets = [0, 0], sizes = [48, 64], strides = [1, 1]} : vector<48x82xf32> to vector<48x64xf32>
    %cst_81 = arith.constant 0.000000e+00 : f32
    %267 = vector.shape_cast %13 : vector<1x64xi1> to vector<1x64xi1>
    %268 = vector.broadcast %267 : vector<1x64xi1> to vector<48x64xi1>
    %269 = vector.broadcast %cst_81 : f32 to vector<48x64xf32>
    %270 = arith.select %268, %266, %269 : vector<48x64xi1>, vector<48x64xf32>
    %271 = vector.extract_strided_slice %265 {offsets = [0, 1], sizes = [48, 64], strides = [1, 1]} : vector<48x82xf32> to vector<48x64xf32>
    %272 = vector.extract_strided_slice %265 {offsets = [0, 2], sizes = [48, 64], strides = [1, 1]} : vector<48x82xf32> to vector<48x64xf32>
    %cst_82 = arith.constant 0.000000e+00 : f32
    %273 = vector.shape_cast %15 : vector<1x64xi1> to vector<1x64xi1>
    %274 = vector.broadcast %273 : vector<1x64xi1> to vector<48x64xi1>
    %275 = vector.broadcast %cst_82 : f32 to vector<48x64xf32>
    %276 = arith.select %274, %272, %275 : vector<48x64xi1>, vector<48x64xf32>
    %277 = vector.extract_strided_slice %265 {offsets = [0, 8], sizes = [48, 64], strides = [1, 1]} : vector<48x82xf32> to vector<48x64xf32>
    %cst_83 = arith.constant 0.000000e+00 : f32
    %278 = vector.shape_cast %13 : vector<1x64xi1> to vector<1x64xi1>
    %279 = vector.broadcast %278 : vector<1x64xi1> to vector<48x64xi1>
    %280 = vector.broadcast %cst_83 : f32 to vector<48x64xf32>
    %281 = arith.select %279, %277, %280 : vector<48x64xi1>, vector<48x64xf32>
    %282 = vector.extract_strided_slice %265 {offsets = [0, 9], sizes = [48, 64], strides = [1, 1]} : vector<48x82xf32> to vector<48x64xf32>
    %283 = vector.extract_strided_slice %265 {offsets = [0, 10], sizes = [48, 64], strides = [1, 1]} : vector<48x82xf32> to vector<48x64xf32>
    %cst_84 = arith.constant 0.000000e+00 : f32
    %284 = vector.shape_cast %15 : vector<1x64xi1> to vector<1x64xi1>
    %285 = vector.broadcast %284 : vector<1x64xi1> to vector<48x64xi1>
    %286 = vector.broadcast %cst_84 : f32 to vector<48x64xf32>
    %287 = arith.select %285, %283, %286 : vector<48x64xi1>, vector<48x64xf32>
    %288 = vector.extract_strided_slice %265 {offsets = [0, 16], sizes = [48, 64], strides = [1, 1]} : vector<48x82xf32> to vector<48x64xf32>
    %cst_85 = arith.constant 0.000000e+00 : f32
    %289 = vector.shape_cast %13 : vector<1x64xi1> to vector<1x64xi1>
    %290 = vector.broadcast %289 : vector<1x64xi1> to vector<48x64xi1>
    %291 = vector.broadcast %cst_85 : f32 to vector<48x64xf32>
    %292 = arith.select %290, %288, %291 : vector<48x64xi1>, vector<48x64xf32>
    %293 = vector.extract_strided_slice %265 {offsets = [0, 17], sizes = [48, 64], strides = [1, 1]} : vector<48x82xf32> to vector<48x64xf32>
    %294 = vector.extract_strided_slice %265 {offsets = [0, 18], sizes = [48, 64], strides = [1, 1]} : vector<48x82xf32> to vector<48x64xf32>
    %cst_86 = arith.constant 0.000000e+00 : f32
    %295 = vector.shape_cast %15 : vector<1x64xi1> to vector<1x64xi1>
    %296 = vector.broadcast %295 : vector<1x64xi1> to vector<48x64xi1>
    %297 = vector.broadcast %cst_86 : f32 to vector<48x64xf32>
    %298 = arith.select %296, %294, %297 : vector<48x64xi1>, vector<48x64xf32>
    %299 = tpu.concatenate %270, %271, %276, %281, %282, %287, %292, %293, %298 in 0 : vector<48x64xf32>, vector<48x64xf32>, vector<48x64xf32>, vector<48x64xf32>, vector<48x64xf32>, vector<48x64xf32>, vector<48x64xf32>, vector<48x64xf32>, vector<48x64xf32> -> vector<432x64xf32>
    %cst_87 = arith.constant dense<0.000000e+00> : vector<8x64xf32>
    %300 = tpu.matmul %262, %299, %cst_87 {dimension_numbers = #tpu.dot_dimension_numbers<[1], [0], [0], [1], [0, 0, 1, 1], [], []>} : vector<8x432xf32>, vector<432x64xf32>, vector<8x64xf32> -> vector<8x64xf32>
    %301 = vector.broadcast %263 : vector<8x1xf32> to vector<8x64xf32>
    %302 = arith.addf %300, %301 : vector<8x64xf32>
    %cst_88 = arith.constant 0.000000e+00 : f32
    %303 = vector.broadcast %cst_88 : f32 to vector<8x64xf32>
    %304 = arith.maximumf %302, %303 : vector<8x64xf32>
    %305 = tpu.concatenate %304, %150 in 0 : vector<8x64xf32>, vector<16x64xf32> -> vector<24x64xf32>
    %c0_89 = arith.constant 0 : index
    %c0_90 = arith.constant 0 : index
    %306 = vector.load %arg17[%c0_89, %c0_90] : memref<64x256xf32, #tpu.memory_space<vmem>>, vector<64x256xf32>
    %cst_91 = arith.constant dense<0.000000e+00> : vector<24x256xf32>
    %307 = tpu.matmul %305, %306, %cst_91 {dimension_numbers = #tpu.dot_dimension_numbers<[1], [0], [0], [1], [0, 0, 1, 1], [], []>} : vector<24x64xf32>, vector<64x256xf32>, vector<24x256xf32> -> vector<24x256xf32>
    %c0_92 = arith.constant 0 : index
    %c0_93 = arith.constant 0 : index
    %308 = vector.load %arg12[%c0_92, %c0_93] : memref<8x216xf32, #tpu.memory_space<vmem>>, vector<8x216xf32>
    %c0_94 = arith.constant 0 : index
    %c0_95 = arith.constant 0 : index
    %309 = vector.load %arg13[%c0_94, %c0_95] : memref<8x1xf32, #tpu.memory_space<vmem>>, vector<8x1xf32>
    %cst_96 = arith.constant 0.000000e+00 : f32
    %310 = vector.broadcast %cst_96 : f32 to vector<24x17xf32>
    %311 = tpu.concatenate %310, %307, %310 in 1 : vector<24x17xf32>, vector<24x256xf32>, vector<24x17xf32> -> vector<24x290xf32>
    %312 = vector.extract_strided_slice %311 {offsets = [0, 0], sizes = [24, 256], strides = [1, 1]} : vector<24x290xf32> to vector<24x256xf32>
    %cst_97 = arith.constant 0.000000e+00 : f32
    %313 = vector.shape_cast %6 : vector<1x256xi1> to vector<1x256xi1>
    %314 = vector.broadcast %313 : vector<1x256xi1> to vector<24x256xi1>
    %315 = vector.broadcast %cst_97 : f32 to vector<24x256xf32>
    %316 = arith.select %314, %312, %315 : vector<24x256xi1>, vector<24x256xf32>
    %317 = vector.extract_strided_slice %311 {offsets = [0, 1], sizes = [24, 256], strides = [1, 1]} : vector<24x290xf32> to vector<24x256xf32>
    %318 = vector.extract_strided_slice %311 {offsets = [0, 2], sizes = [24, 256], strides = [1, 1]} : vector<24x290xf32> to vector<24x256xf32>
    %cst_98 = arith.constant 0.000000e+00 : f32
    %319 = vector.shape_cast %8 : vector<1x256xi1> to vector<1x256xi1>
    %320 = vector.broadcast %319 : vector<1x256xi1> to vector<24x256xi1>
    %321 = vector.broadcast %cst_98 : f32 to vector<24x256xf32>
    %322 = arith.select %320, %318, %321 : vector<24x256xi1>, vector<24x256xf32>
    %323 = vector.extract_strided_slice %311 {offsets = [0, 16], sizes = [24, 256], strides = [1, 1]} : vector<24x290xf32> to vector<24x256xf32>
    %cst_99 = arith.constant 0.000000e+00 : f32
    %324 = vector.shape_cast %6 : vector<1x256xi1> to vector<1x256xi1>
    %325 = vector.broadcast %324 : vector<1x256xi1> to vector<24x256xi1>
    %326 = vector.broadcast %cst_99 : f32 to vector<24x256xf32>
    %327 = arith.select %325, %323, %326 : vector<24x256xi1>, vector<24x256xf32>
    %328 = vector.extract_strided_slice %311 {offsets = [0, 17], sizes = [24, 256], strides = [1, 1]} : vector<24x290xf32> to vector<24x256xf32>
    %329 = vector.extract_strided_slice %311 {offsets = [0, 18], sizes = [24, 256], strides = [1, 1]} : vector<24x290xf32> to vector<24x256xf32>
    %cst_100 = arith.constant 0.000000e+00 : f32
    %330 = vector.shape_cast %8 : vector<1x256xi1> to vector<1x256xi1>
    %331 = vector.broadcast %330 : vector<1x256xi1> to vector<24x256xi1>
    %332 = vector.broadcast %cst_100 : f32 to vector<24x256xf32>
    %333 = arith.select %331, %329, %332 : vector<24x256xi1>, vector<24x256xf32>
    %334 = vector.extract_strided_slice %311 {offsets = [0, 32], sizes = [24, 256], strides = [1, 1]} : vector<24x290xf32> to vector<24x256xf32>
    %cst_101 = arith.constant 0.000000e+00 : f32
    %335 = vector.shape_cast %6 : vector<1x256xi1> to vector<1x256xi1>
    %336 = vector.broadcast %335 : vector<1x256xi1> to vector<24x256xi1>
    %337 = vector.broadcast %cst_101 : f32 to vector<24x256xf32>
    %338 = arith.select %336, %334, %337 : vector<24x256xi1>, vector<24x256xf32>
    %339 = vector.extract_strided_slice %311 {offsets = [0, 33], sizes = [24, 256], strides = [1, 1]} : vector<24x290xf32> to vector<24x256xf32>
    %340 = vector.extract_strided_slice %311 {offsets = [0, 34], sizes = [24, 256], strides = [1, 1]} : vector<24x290xf32> to vector<24x256xf32>
    %cst_102 = arith.constant 0.000000e+00 : f32
    %341 = vector.shape_cast %8 : vector<1x256xi1> to vector<1x256xi1>
    %342 = vector.broadcast %341 : vector<1x256xi1> to vector<24x256xi1>
    %343 = vector.broadcast %cst_102 : f32 to vector<24x256xf32>
    %344 = arith.select %342, %340, %343 : vector<24x256xi1>, vector<24x256xf32>
    %345 = tpu.concatenate %316, %317, %322, %327, %328, %333, %338, %339, %344 in 0 : vector<24x256xf32>, vector<24x256xf32>, vector<24x256xf32>, vector<24x256xf32>, vector<24x256xf32>, vector<24x256xf32>, vector<24x256xf32>, vector<24x256xf32>, vector<24x256xf32> -> vector<216x256xf32>
    %cst_103 = arith.constant dense<0.000000e+00> : vector<8x256xf32>
    %346 = tpu.matmul %308, %345, %cst_103 {dimension_numbers = #tpu.dot_dimension_numbers<[1], [0], [0], [1], [0, 0, 1, 1], [], []>} : vector<8x216xf32>, vector<216x256xf32>, vector<8x256xf32> -> vector<8x256xf32>
    %347 = vector.broadcast %309 : vector<8x1xf32> to vector<8x256xf32>
    %348 = arith.addf %346, %347 : vector<8x256xf32>
    %cst_104 = arith.constant 0.000000e+00 : f32
    %349 = vector.broadcast %cst_104 : f32 to vector<8x256xf32>
    %350 = arith.maximumf %348, %349 : vector<8x256xf32>
    %351 = tpu.concatenate %350, %97 in 0 : vector<8x256xf32>, vector<8x256xf32> -> vector<16x256xf32>
    %c0_105 = arith.constant 0 : index
    %c0_106 = arith.constant 0 : index
    %352 = vector.load %arg14[%c0_105, %c0_106] : memref<2x144xf32, #tpu.memory_space<vmem>>, vector<2x144xf32>
    %c0_107 = arith.constant 0 : index
    %c0_108 = arith.constant 0 : index
    %353 = vector.load %arg15[%c0_107, %c0_108] : memref<2x1xf32, #tpu.memory_space<vmem>>, vector<2x1xf32>
    %cst_109 = arith.constant 0.000000e+00 : f32
    %354 = vector.broadcast %cst_109 : f32 to vector<16x17xf32>
    %355 = tpu.concatenate %354, %351, %354 in 1 : vector<16x17xf32>, vector<16x256xf32>, vector<16x17xf32> -> vector<16x290xf32>
    %356 = vector.extract_strided_slice %355 {offsets = [0, 0], sizes = [16, 256], strides = [1, 1]} : vector<16x290xf32> to vector<16x256xf32>
    %cst_110 = arith.constant 0.000000e+00 : f32
    %357 = vector.shape_cast %6 : vector<1x256xi1> to vector<1x256xi1>
    %358 = vector.broadcast %357 : vector<1x256xi1> to vector<16x256xi1>
    %359 = vector.broadcast %cst_110 : f32 to vector<16x256xf32>
    %360 = arith.select %358, %356, %359 : vector<16x256xi1>, vector<16x256xf32>
    %361 = vector.extract_strided_slice %355 {offsets = [0, 1], sizes = [16, 256], strides = [1, 1]} : vector<16x290xf32> to vector<16x256xf32>
    %362 = vector.extract_strided_slice %355 {offsets = [0, 2], sizes = [16, 256], strides = [1, 1]} : vector<16x290xf32> to vector<16x256xf32>
    %cst_111 = arith.constant 0.000000e+00 : f32
    %363 = vector.shape_cast %8 : vector<1x256xi1> to vector<1x256xi1>
    %364 = vector.broadcast %363 : vector<1x256xi1> to vector<16x256xi1>
    %365 = vector.broadcast %cst_111 : f32 to vector<16x256xf32>
    %366 = arith.select %364, %362, %365 : vector<16x256xi1>, vector<16x256xf32>
    %367 = vector.extract_strided_slice %355 {offsets = [0, 16], sizes = [16, 256], strides = [1, 1]} : vector<16x290xf32> to vector<16x256xf32>
    %cst_112 = arith.constant 0.000000e+00 : f32
    %368 = vector.shape_cast %6 : vector<1x256xi1> to vector<1x256xi1>
    %369 = vector.broadcast %368 : vector<1x256xi1> to vector<16x256xi1>
    %370 = vector.broadcast %cst_112 : f32 to vector<16x256xf32>
    %371 = arith.select %369, %367, %370 : vector<16x256xi1>, vector<16x256xf32>
    %372 = vector.extract_strided_slice %355 {offsets = [0, 17], sizes = [16, 256], strides = [1, 1]} : vector<16x290xf32> to vector<16x256xf32>
    %373 = vector.extract_strided_slice %355 {offsets = [0, 18], sizes = [16, 256], strides = [1, 1]} : vector<16x290xf32> to vector<16x256xf32>
    %cst_113 = arith.constant 0.000000e+00 : f32
    %374 = vector.shape_cast %8 : vector<1x256xi1> to vector<1x256xi1>
    %375 = vector.broadcast %374 : vector<1x256xi1> to vector<16x256xi1>
    %376 = vector.broadcast %cst_113 : f32 to vector<16x256xf32>
    %377 = arith.select %375, %373, %376 : vector<16x256xi1>, vector<16x256xf32>
    %378 = vector.extract_strided_slice %355 {offsets = [0, 32], sizes = [16, 256], strides = [1, 1]} : vector<16x290xf32> to vector<16x256xf32>
    %cst_114 = arith.constant 0.000000e+00 : f32
    %379 = vector.shape_cast %6 : vector<1x256xi1> to vector<1x256xi1>
    %380 = vector.broadcast %379 : vector<1x256xi1> to vector<16x256xi1>
    %381 = vector.broadcast %cst_114 : f32 to vector<16x256xf32>
    %382 = arith.select %380, %378, %381 : vector<16x256xi1>, vector<16x256xf32>
    %383 = vector.extract_strided_slice %355 {offsets = [0, 33], sizes = [16, 256], strides = [1, 1]} : vector<16x290xf32> to vector<16x256xf32>
    %384 = vector.extract_strided_slice %355 {offsets = [0, 34], sizes = [16, 256], strides = [1, 1]} : vector<16x290xf32> to vector<16x256xf32>
    %cst_115 = arith.constant 0.000000e+00 : f32
    %385 = vector.shape_cast %8 : vector<1x256xi1> to vector<1x256xi1>
    %386 = vector.broadcast %385 : vector<1x256xi1> to vector<16x256xi1>
    %387 = vector.broadcast %cst_115 : f32 to vector<16x256xf32>
    %388 = arith.select %386, %384, %387 : vector<16x256xi1>, vector<16x256xf32>
    %389 = tpu.concatenate %360, %361, %366, %371, %372, %377, %382, %383, %388 in 0 : vector<16x256xf32>, vector<16x256xf32>, vector<16x256xf32>, vector<16x256xf32>, vector<16x256xf32>, vector<16x256xf32>, vector<16x256xf32>, vector<16x256xf32>, vector<16x256xf32> -> vector<144x256xf32>
    %cst_116 = arith.constant dense<0.000000e+00> : vector<2x256xf32>
    %390 = tpu.matmul %352, %389, %cst_116 {dimension_numbers = #tpu.dot_dimension_numbers<[1], [0], [0], [1], [0, 0, 1, 1], [], []>} : vector<2x144xf32>, vector<144x256xf32>, vector<2x256xf32> -> vector<2x256xf32>
    %391 = vector.broadcast %353 : vector<2x1xf32> to vector<2x256xf32>
    %392 = arith.addf %390, %391 : vector<2x256xf32>
    %cst_117 = arith.constant 0.000000e+00 : f32
    %393 = vector.broadcast %cst_117 : f32 to vector<2x256xf32>
    %394 = arith.maximumf %392, %393 : vector<2x256xf32>
    %c0_118 = arith.constant 0 : index
    %c0_119 = arith.constant 0 : index
    %c0_120 = arith.constant 0 : index
    %395 = vector.load %arg22[%c0_118, %c0_119, %c0_120] : memref<1x2x256xf32, #tpu.memory_space<vmem>>, vector<1x2x256xf32>
    %396 = vector.shape_cast %395 : vector<1x2x256xf32> to vector<2x256xf32>
    %397 = vector.shape_cast %394 : vector<2x256xf32> to vector<1x2x256xf32>
    tpu.vector_store %arg22[%c0_118, %c0_119, %c0_120], %397 {strides = array<i32>} : memref<1x2x256xf32, #tpu.memory_space<vmem>>, vector<1x2x256xf32>,
    return
  }
  func.func @transform_0(%arg0: i32) -> (i32, i32, i32) {
    %c0_i32 = arith.constant 0 : i32
    %c0_i32_0 = arith.constant 0 : i32
    %c0_i32_1 = arith.constant 0 : i32
    return %arg0, %c0_i32, %c0_i32_0 : i32, i32, i32
  }
  func.func @transform_1(%arg0: i32) -> (i32, i32) {
    %c0_i32 = arith.constant 0 : i32
    %c0_i32_0 = arith.constant 0 : i32
    %c0_i32_1 = arith.constant 0 : i32
    return %c0_i32, %c0_i32_0 : i32, i32
  }
  func.func @transform_2(%arg0: i32) -> (i32, i32) {
    %c0_i32 = arith.constant 0 : i32
    %c0_i32_0 = arith.constant 0 : i32
    %c0_i32_1 = arith.constant 0 : i32
    return %c0_i32, %c0_i32_0 : i32, i32
  }
  func.func @transform_3(%arg0: i32) -> (i32, i32) {
    %c0_i32 = arith.constant 0 : i32
    %c0_i32_0 = arith.constant 0 : i32
    %c0_i32_1 = arith.constant 0 : i32
    return %c0_i32, %c0_i32_0 : i32, i32
  }
  func.func @transform_4(%arg0: i32) -> (i32, i32) {
    %c0_i32 = arith.constant 0 : i32
    %c0_i32_0 = arith.constant 0 : i32
    %c0_i32_1 = arith.constant 0 : i32
    return %c0_i32, %c0_i32_0 : i32, i32
  }
  func.func @transform_5(%arg0: i32) -> (i32, i32) {
    %c0_i32 = arith.constant 0 : i32
    %c0_i32_0 = arith.constant 0 : i32
    %c0_i32_1 = arith.constant 0 : i32
    return %c0_i32, %c0_i32_0 : i32, i32
  }
  func.func @transform_6(%arg0: i32) -> (i32, i32) {
    %c0_i32 = arith.constant 0 : i32
    %c0_i32_0 = arith.constant 0 : i32
    %c0_i32_1 = arith.constant 0 : i32
    return %c0_i32, %c0_i32_0 : i32, i32
  }
  func.func @transform_7(%arg0: i32) -> (i32, i32) {
    %c0_i32 = arith.constant 0 : i32
    %c0_i32_0 = arith.constant 0 : i32
    %c0_i32_1 = arith.constant 0 : i32
    return %c0_i32, %c0_i32_0 : i32, i32
  }
  func.func @transform_8(%arg0: i32) -> (i32, i32) {
    %c0_i32 = arith.constant 0 : i32
    %c0_i32_0 = arith.constant 0 : i32
    %c0_i32_1 = arith.constant 0 : i32
    return %c0_i32, %c0_i32_0 : i32, i32
  }
  func.func @transform_9(%arg0: i32) -> (i32, i32) {
    %c0_i32 = arith.constant 0 : i32
    %c0_i32_0 = arith.constant 0 : i32
    %c0_i32_1 = arith.constant 0 : i32
    return %c0_i32, %c0_i32_0 : i32, i32
  }
  func.func @transform_10(%arg0: i32) -> (i32, i32) {
    %c0_i32 = arith.constant 0 : i32
    %c0_i32_0 = arith.constant 0 : i32
    %c0_i32_1 = arith.constant 0 : i32
    return %c0_i32, %c0_i32_0 : i32, i32
  }
  func.func @transform_11(%arg0: i32) -> (i32, i32) {
    %c0_i32 = arith.constant 0 : i32
    %c0_i32_0 = arith.constant 0 : i32
    %c0_i32_1 = arith.constant 0 : i32
    return %c0_i32, %c0_i32_0 : i32, i32
  }
  func.func @transform_12(%arg0: i32) -> (i32, i32) {
    %c0_i32 = arith.constant 0 : i32
    %c0_i32_0 = arith.constant 0 : i32
    %c0_i32_1 = arith.constant 0 : i32
    return %c0_i32, %c0_i32_0 : i32, i32
  }
  func.func @transform_13(%arg0: i32) -> (i32, i32) {
    %c0_i32 = arith.constant 0 : i32
    %c0_i32_0 = arith.constant 0 : i32
    %c0_i32_1 = arith.constant 0 : i32
    return %c0_i32, %c0_i32_0 : i32, i32
  }
  func.func @transform_14(%arg0: i32) -> (i32, i32) {
    %c0_i32 = arith.constant 0 : i32
    %c0_i32_0 = arith.constant 0 : i32
    %c0_i32_1 = arith.constant 0 : i32
    return %c0_i32, %c0_i32_0 : i32, i32
  }
  func.func @transform_15(%arg0: i32) -> (i32, i32) {
    %c0_i32 = arith.constant 0 : i32
    %c0_i32_0 = arith.constant 0 : i32
    %c0_i32_1 = arith.constant 0 : i32
    return %c0_i32, %c0_i32_0 : i32, i32
  }
  func.func @transform_16(%arg0: i32) -> (i32, i32) {
    %c0_i32 = arith.constant 0 : i32
    %c0_i32_0 = arith.constant 0 : i32
    %c0_i32_1 = arith.constant 0 : i32
    return %c0_i32, %c0_i32_0 : i32, i32
  }
  func.func @transform_17(%arg0: i32) -> (i32, i32) {
    %c0_i32 = arith.constant 0 : i32
    %c0_i32_0 = arith.constant 0 : i32
    %c0_i32_1 = arith.constant 0 : i32
    return %c0_i32, %c0_i32_0 : i32, i32
  }
  func.func @transform_18(%arg0: i32) -> (i32, i32) {
    %c0_i32 = arith.constant 0 : i32
    %c0_i32_0 = arith.constant 0 : i32
    %c0_i32_1 = arith.constant 0 : i32
    return %c0_i32, %c0_i32_0 : i32, i32
  }
  func.func @transform_19(%arg0: i32) -> (i32, i32) {
    %c0_i32 = arith.constant 0 : i32
    %c0_i32_0 = arith.constant 0 : i32
    %c0_i32_1 = arith.constant 0 : i32
    return %c0_i32, %c0_i32_0 : i32, i32
  }
  func.func @transform_20(%arg0: i32) -> (i32, i32) {
    %c0_i32 = arith.constant 0 : i32
    %c0_i32_0 = arith.constant 0 : i32
    %c0_i32_1 = arith.constant 0 : i32
    return %c0_i32, %c0_i32_0 : i32, i32
  }
  func.func @transform_21(%arg0: i32) -> (i32, i32, i32) {
    %c0_i32 = arith.constant 0 : i32
    %c0_i32_0 = arith.constant 0 : i32
    %c0_i32_1 = arith.constant 0 : i32
    return %arg0, %c0_i32, %c0_i32_0 : i32, i32, i32
  }
}

</mosaic_0001>

<llo_original>
// kernel: unet_forward.1
$region0: #{unet_forward.1}
  #allocation0 [shape = 'u32[]', space=smem, size = 0x4, offset = 0x4, fixed_abs, tag = 'smem constant byte address 0x4 - core index']
  #allocation1 [shape = 'u32[144,128]{1,0:T(1,128)}', space=vmem, size = 0x12000, scoped, tag = 'internal scratch']
  %s0 = inlined_call_operand.vmem [shape: f32[2,1,256], index: 0, kind: input, shape index: {}]
  %s1 = inlined_call_operand.vmem [shape: f32[8,9], index: 1, kind: input, shape index: {}]
  %s2 = inlined_call_operand.vmem [shape: f32[8,1], index: 2, kind: input, shape index: {}]
  %s3 = inlined_call_operand.vmem [shape: f32[16,72], index: 3, kind: input, shape index: {}]
  %s4 = inlined_call_operand.vmem [shape: f32[16,1], index: 4, kind: input, shape index: {}]
  %s5 = inlined_call_operand.vmem [shape: f32[32,144], index: 5, kind: input, shape index: {}]
  %s6 = inlined_call_operand.vmem [shape: f32[32,1], index: 6, kind: input, shape index: {}]
  %s7 = inlined_call_operand.vmem [shape: f32[16,288], index: 7, kind: input, shape index: {}]
  %s8 = inlined_call_operand.vmem [shape: f32[16,1], index: 8, kind: input, shape index: {}]
  %s9 = inlined_call_operand.vmem [shape: f32[8,432], index: 9, kind: input, shape index: {}]
  %s10 = inlined_call_operand.vmem [shape: f32[8,1], index: 10, kind: input, shape index: {}]
  %s11 = inlined_call_operand.vmem [shape: f32[8,216], index: 11, kind: input, shape index: {}]
  %s12 = inlined_call_operand.vmem [shape: f32[8,1], index: 12, kind: input, shape index: {}]
  %s13 = inlined_call_operand.vmem [shape: f32[2,144], index: 13, kind: input, shape index: {}]
  %s14 = inlined_call_operand.vmem [shape: f32[2,1], index: 14, kind: input, shape index: {}]
  %s15 = inlined_call_operand.vmem [shape: f32[256,64], index: 15, kind: input, shape index: {}]
  %s16 = inlined_call_operand.vmem [shape: f32[64,256], index: 16, kind: input, shape index: {}]
  %s17 = inlined_call_operand.vmem [shape: f32[64,16], index: 17, kind: input, shape index: {}]
  %s18 = inlined_call_operand.vmem [shape: f32[16,64], index: 18, kind: input, shape index: {}]
  %s19 = inlined_call_operand.vmem [shape: f32[16,4], index: 19, kind: input, shape index: {}]
  %s20 = inlined_call_operand.vmem [shape: f32[4,16], index: 20, kind: input, shape index: {}]
  %s21 = inlined_call_operand.vmem [shape: f32[2,2,256], index: 21, kind: output, shape index: {}]
  %s22 = sld [smem:[#allocation0]]
  $region117: #{unet_forward.1} parent=0
    _
  %s24 = ssub.s32 1, %s22
  %s25 = scalar_select 0, %s24, %s22
  loop: start=0, step=1, limit=4
  $region2: #{unet_forward.1} parent=0 // loop_pre_header
    _
  $region3: #{unet_forward.1} parent=0 // loop_header
    %s27 = sphi 0, %s31
    %p28 = scmp.ge.s32.totalorder %s27, 4
    %s37 = sphi 0, %s39
    %s40 = sphi 0, %s37
    %s41 = sphi 0, %s40
    %s57 = sphi 0, %s41
    %s61 = sphi 0, %s61
    %s63 = sphi 0, %s61
    %s64 = sphi 0, %s63
    %s78 = sphi 0, %s64
    %s82 = sphi 0, %s82
    %s84 = sphi 0, %s82
    %s85 = sphi 0, %s84
    %s99 = sphi 0, %s85
    %s103 = sphi 0, %s103
    %s105 = sphi 0, %s103
    %s106 = sphi 0, %s105
    %s120 = sphi 0, %s106
    %s124 = sphi 0, %s124
    %s126 = sphi 0, %s124
    %s127 = sphi 0, %s126
    %s141 = sphi 0, %s127
    %s145 = sphi 0, %s145
    %s147 = sphi 0, %s145
    %s148 = sphi 0, %s147
    %s162 = sphi 0, %s148
    %s166 = sphi 0, %s166
    %s168 = sphi 0, %s166
    %s169 = sphi 0, %s168
    %s183 = sphi 0, %s169
    %s187 = sphi 0, %s187
    %s189 = sphi 0, %s187
    %s190 = sphi 0, %s189
    %s204 = sphi 0, %s190
    %s208 = sphi 0, %s208
    %s210 = sphi 0, %s208
    %s211 = sphi 0, %s210
    %s225 = sphi 0, %s211
    %s229 = sphi 0, %s229
    %s231 = sphi 0, %s229
    %s232 = sphi 0, %s231
    %s246 = sphi 0, %s232
    %s250 = sphi 0, %s250
    %s252 = sphi 0, %s250
    %s253 = sphi 0, %s252
    %s267 = sphi 0, %s253
    %s271 = sphi 0, %s271
    %s273 = sphi 0, %s271
    %s274 = sphi 0, %s273
    %s288 = sphi 0, %s274
    %s292 = sphi 0, %s292
    %s294 = sphi 0, %s292
    %s295 = sphi 0, %s294
    %s309 = sphi 0, %s295
    %s313 = sphi 0, %s313
    %s315 = sphi 0, %s313
    %s316 = sphi 0, %s315
    %s330 = sphi 0, %s316
    %s334 = sphi 0, %s334
    %s336 = sphi 0, %s334
    %s337 = sphi 0, %s336
    %s351 = sphi 0, %s337
    %s355 = sphi 0, %s355
    %s357 = sphi 0, %s355
    %s358 = sphi 0, %s357
    %s372 = sphi 0, %s358
    %s376 = sphi 0, %s376
    %s378 = sphi 0, %s376
    %s379 = sphi 0, %s378
    %s393 = sphi 0, %s379
    %s397 = sphi 0, %s397
    %s399 = sphi 0, %s397
    %s400 = sphi 0, %s399
    %s414 = sphi 0, %s400
    %s418 = sphi 0, %s418
    %s420 = sphi 0, %s418
    %s421 = sphi 0, %s420
    %s435 = sphi 0, %s421
    %s439 = sphi 0, %s439
    %s441 = sphi 0, %s439
    %s442 = sphi 0, %s441
    %s456 = sphi 0, %s442
    %s460 = sphi 0, %s460
    %s462 = sphi 0, %s460
    %s463 = sphi 0, %s462
    %s477 = sphi 0, %s463
    %s483 = sphi 0, %s485
    %s486 = sphi 0, %s483
    %s487 = sphi 0, %s486
    %s503 = sphi 0, %s487
  $region4: #{unet_forward.1} parent=0 // loop_header_branch
    %30 = sbr.rel (%p28) target = $region8
  $region5: #{unet_forward.1} parent=0 // loop_body
    %s32 = ssub.s32 %s27, 1
    %s33 = ssub.s32 %s27, 2
    %s34 = sadd.s32 %s27, 1
    %s35 = ssub.s32 %s27, %s34
    %p36 = scmp.eq.s32.totalorder %s35, 0
    %s38 = sadd.s32 %s37, 1
    %s39 = scalar_select %p36, %s37, %s38
    %p42 = pneg %p36
    %p43 = scmp.eq.s32.totalorder %s27, 1
    %p44 = por %p42, %p43
    %p45 = scmp.ne.s32.totalorder %s37, %s40
    %p46 = scmp.eq.s32.totalorder %s27, 0
    %p47 = por %p45, %p46
    %p48 = scmp.ne.s32.totalorder %s37, %s40
    %p49 = scmp.eq.s32.totalorder %s32, 1
    %p50 = por %p48, %p49
    %p51 = scmp.ne.s32.totalorder %s40, %s41
    %p52 = scmp.eq.s32.totalorder %s32, 0
    %p53 = por %p51, %p52
    %p54 = scmp.ne.s32.totalorder %s40, %s41
    %p55 = scmp.eq.s32.totalorder %s33, 1
    %p56 = por %p54, %p55
    %p58 = scmp.ne.s32.totalorder %s41, %s57
    %p59 = scmp.eq.s32.totalorder %s33, 0
    %p60 = por %p58, %p59
    %s62 = sadd.s32 %s61, 1
    %p65 = scmp.eq.s32.totalorder %s27, 1
    %p66 = scmp.ne.s32.totalorder %s61, %s63
    %p67 = scmp.eq.s32.totalorder %s27, 0
    %p68 = por %p66, %p67
    %p69 = scmp.ne.s32.totalorder %s61, %s63
    %p70 = scmp.eq.s32.totalorder %s32, 1
    %p71 = por %p69, %p70
    %p72 = scmp.ne.s32.totalorder %s63, %s64
    %p73 = scmp.eq.s32.totalorder %s32, 0
    %p74 = por %p72, %p73
    %p75 = scmp.ne.s32.totalorder %s63, %s64
    %p76 = scmp.eq.s32.totalorder %s33, 1
    %p77 = por %p75, %p76
    %p79 = scmp.ne.s32.totalorder %s64, %s78
    %p80 = scmp.eq.s32.totalorder %s33, 0
    %p81 = por %p79, %p80
    %s83 = sadd.s32 %s82, 1
    %p86 = scmp.eq.s32.totalorder %s27, 1
    %p87 = scmp.ne.s32.totalorder %s82, %s84
    %p88 = scmp.eq.s32.totalorder %s27, 0
    %p89 = por %p87, %p88
    %p90 = scmp.ne.s32.totalorder %s82, %s84
    %p91 = scmp.eq.s32.totalorder %s32, 1
    %p92 = por %p90, %p91
    %p93 = scmp.ne.s32.totalorder %s84, %s85
    %p94 = scmp.eq.s32.totalorder %s32, 0
    %p95 = por %p93, %p94
    %p96 = scmp.ne.s32.totalorder %s84, %s85
    %p97 = scmp.eq.s32.totalorder %s33, 1
    %p98 = por %p96, %p97
    %p100 = scmp.ne.s32.totalorder %s85, %s99
    %p101 = scmp.eq.s32.totalorder %s33, 0
    %p102 = por %p100, %p101
    %s104 = sadd.s32 %s103, 1
    %p107 = scmp.eq.s32.totalorder %s27, 1
    %p108 = scmp.ne.s32.totalorder %s103, %s105
    %p109 = scmp.eq.s32.totalorder %s27, 0
    %p110 = por %p108, %p109
    %p111 = scmp.ne.s32.totalorder %s103, %s105
    %p112 = scmp.eq.s32.totalorder %s32, 1
    %p113 = por %p111, %p112
    %p114 = scmp.ne.s32.totalorder %s105, %s106
    %p115 = scmp.eq.s32.totalorder %s32, 0
    %p116 = por %p114, %p115
    %p117 = scmp.ne.s32.totalorder %s105, %s106
    %p118 = scmp.eq.s32.totalorder %s33, 1
    %p119 = por %p117, %p118
    %p121 = scmp.ne.s32.totalorder %s106, %s120
    %p122 = scmp.eq.s32.totalorder %s33, 0
    %p123 = por %p121, %p122
    %s125 = sadd.s32 %s124, 1
    %p128 = scmp.eq.s32.totalorder %s27, 1
    %p129 = scmp.ne.s32.totalorder %s124, %s126
    %p130 = scmp.eq.s32.totalorder %s27, 0
    %p131 = por %p129, %p130
    %p132 = scmp.ne.s32.totalorder %s124, %s126
    %p133 = scmp.eq.s32.totalorder %s32, 1
    %p134 = por %p132, %p133
    %p135 = scmp.ne.s32.totalorder %s126, %s127
    %p136 = scmp.eq.s32.totalorder %s32, 0
    %p137 = por %p135, %p136
    %p138 = scmp.ne.s32.totalorder %s126, %s127
    %p139 = scmp.eq.s32.totalorder %s33, 1
    %p140 = por %p138, %p139
    %p142 = scmp.ne.s32.totalorder %s127, %s141
    %p143 = scmp.eq.s32.totalorder %s33, 0
    %p144 = por %p142, %p143
    %s146 = sadd.s32 %s145, 1
    %p149 = scmp.eq.s32.totalorder %s27, 1
    %p150 = scmp.ne.s32.totalorder %s145, %s147
    %p151 = scmp.eq.s32.totalorder %s27, 0
    %p152 = por %p150, %p151
    %p153 = scmp.ne.s32.totalorder %s145, %s147
    %p154 = scmp.eq.s32.totalorder %s32, 1
    %p155 = por %p153, %p154
    %p156 = scmp.ne.s32.totalorder %s147, %s148
    %p157 = scmp.eq.s32.totalorder %s32, 0
    %p158 = por %p156, %p157
    %p159 = scmp.ne.s32.totalorder %s147, %s148
    %p160 = scmp.eq.s32.totalorder %s33, 1
    %p161 = por %p159, %p160
    %p163 = scmp.ne.s32.totalorder %s148, %s162
    %p164 = scmp.eq.s32.totalorder %s33, 0
    %p165 = por %p163, %p164
    %s167 = sadd.s32 %s166, 1
    %p170 = scmp.eq.s32.totalorder %s27, 1
    %p171 = scmp.ne.s32.totalorder %s166, %s168
    %p172 = scmp.eq.s32.totalorder %s27, 0
    %p173 = por %p171, %p172
    %p174 = scmp.ne.s32.totalorder %s166, %s168
    %p175 = scmp.eq.s32.totalorder %s32, 1
    %p176 = por %p174, %p175
    %p177 = scmp.ne.s32.totalorder %s168, %s169
    %p178 = scmp.eq.s32.totalorder %s32, 0
    %p179 = por %p177, %p178
    %p180 = scmp.ne.s32.totalorder %s168, %s169
    %p181 = scmp.eq.s32.totalorder %s33, 1
    %p182 = por %p180, %p181
    %p184 = scmp.ne.s32.totalorder %s169, %s183
    %p185 = scmp.eq.s32.totalorder %s33, 0
    %p186 = por %p184, %p185
    %s188 = sadd.s32 %s187, 1
    %p191 = scmp.eq.s32.totalorder %s27, 1
    %p192 = scmp.ne.s32.totalorder %s187, %s189
    %p193 = scmp.eq.s32.totalorder %s27, 0
    %p194 = por %p192, %p193
    %p195 = scmp.ne.s32.totalorder %s187, %s189
    %p196 = scmp.eq.s32.totalorder %s32, 1
    %p197 = por %p195, %p196
    %p198 = scmp.ne.s32.totalorder %s189, %s190
    %p199 = scmp.eq.s32.totalorder %s32, 0
    %p200 = por %p198, %p199
    %p201 = scmp.ne.s32.totalorder %s189, %s190
    %p202 = scmp.eq.s32.totalorder %s33, 1
    %p203 = por %p201, %p202
    %p205 = scmp.ne.s32.totalorder %s190, %s204
    %p206 = scmp.eq.s32.totalorder %s33, 0
    %p207 = por %p205, %p206
    %s209 = sadd.s32 %s208, 1
    %p212 = scmp.eq.s32.totalorder %s27, 1
    %p213 = scmp.ne.s32.totalorder %s208, %s210
    %p214 = scmp.eq.s32.totalorder %s27, 0
    %p215 = por %p213, %p214
    %p216 = scmp.ne.s32.totalorder %s208, %s210
    %p217 = scmp.eq.s32.totalorder %s32, 1
    %p218 = por %p216, %p217
    %p219 = scmp.ne.s32.totalorder %s210, %s211
    %p220 = scmp.eq.s32.totalorder %s32, 0
    %p221 = por %p219, %p220
    %p222 = scmp.ne.s32.totalorder %s210, %s211
    %p223 = scmp.eq.s32.totalorder %s33, 1
    %p224 = por %p222, %p223
    %p226 = scmp.ne.s32.totalorder %s211, %s225
    %p227 = scmp.eq.s32.totalorder %s33, 0
    %p228 = por %p226, %p227
    %s230 = sadd.s32 %s229, 1
    %p233 = scmp.eq.s32.totalorder %s27, 1
    %p234 = scmp.ne.s32.totalorder %s229, %s231
    %p235 = scmp.eq.s32.totalorder %s27, 0
    %p236 = por %p234, %p235
    %p237 = scmp.ne.s32.totalorder %s229, %s231
    %p238 = scmp.eq.s32.totalorder %s32, 1
    %p239 = por %p237, %p238
    %p240 = scmp.ne.s32.totalorder %s231, %s232
    %p241 = scmp.eq.s32.totalorder %s32, 0
    %p242 = por %p240, %p241
    %p243 = scmp.ne.s32.totalorder %s231, %s232
    %p244 = scmp.eq.s32.totalorder %s33, 1
    %p245 = por %p243, %p244
    %p247 = scmp.ne.s32.totalorder %s232, %s246
    %p248 = scmp.eq.s32.totalorder %s33, 0
    %p249 = por %p247, %p248
    %s251 = sadd.s32 %s250, 1
    %p254 = scmp.eq.s32.totalorder %s27, 1
    %p255 = scmp.ne.s32.totalorder %s250, %s252
    %p256 = scmp.eq.s32.totalorder %s27, 0
    %p257 = por %p255, %p256
    %p258 = scmp.ne.s32.totalorder %s250, %s252
    %p259 = scmp.eq.s32.totalorder %s32, 1
    %p260 = por %p258, %p259
    %p261 = scmp.ne.s32.totalorder %s252, %s253
    %p262 = scmp.eq.s32.totalorder %s32, 0
    %p263 = por %p261, %p262
    %p264 = scmp.ne.s32.totalorder %s252, %s253
    %p265 = scmp.eq.s32.totalorder %s33, 1
    %p266 = por %p264, %p265
    %p268 = scmp.ne.s32.totalorder %s253, %s267
    %p269 = scmp.eq.s32.totalorder %s33, 0
    %p270 = por %p268, %p269
    %s272 = sadd.s32 %s271, 1
    %p275 = scmp.eq.s32.totalorder %s27, 1
    %p276 = scmp.ne.s32.totalorder %s271, %s273
    %p277 = scmp.eq.s32.totalorder %s27, 0
    %p278 = por %p276, %p277
    %p279 = scmp.ne.s32.totalorder %s271, %s273
    %p280 = scmp.eq.s32.totalorder %s32, 1
    %p281 = por %p279, %p280
    %p282 = scmp.ne.s32.totalorder %s273, %s274
    %p283 = scmp.eq.s32.totalorder %s32, 0
    %p284 = por %p282, %p283
    %p285 = scmp.ne.s32.totalorder %s273, %s274
    %p286 = scmp.eq.s32.totalorder %s33, 1
    %p287 = por %p285, %p286
    %p289 = scmp.ne.s32.totalorder %s274, %s288
    %p290 = scmp.eq.s32.totalorder %s33, 0
    %p291 = por %p289, %p290
    %s293 = sadd.s32 %s292, 1
    %p296 = scmp.eq.s32.totalorder %s27, 1
    %p297 = scmp.ne.s32.totalorder %s292, %s294
    %p298 = scmp.eq.s32.totalorder %s27, 0
    %p299 = por %p297, %p298
    %p300 = scmp.ne.s32.totalorder %s292, %s294
    %p301 = scmp.eq.s32.totalorder %s32, 1
    %p302 = por %p300, %p301
    %p303 = scmp.ne.s32.totalorder %s294, %s295
    %p304 = scmp.eq.s32.totalorder %s32, 0
    %p305 = por %p303, %p304
    %p306 = scmp.ne.s32.totalorder %s294, %s295
    %p307 = scmp.eq.s32.totalorder %s33, 1
    %p308 = por %p306, %p307
    %p310 = scmp.ne.s32.totalorder %s295, %s309
    %p311 = scmp.eq.s32.totalorder %s33, 0
    %p312 = por %p310, %p311
    %s314 = sadd.s32 %s313, 1
    %p317 = scmp.eq.s32.totalorder %s27, 1
    %p318 = scmp.ne.s32.totalorder %s313, %s315
    %p319 = scmp.eq.s32.totalorder %s27, 0
    %p320 = por %p318, %p319
    %p321 = scmp.ne.s32.totalorder %s313, %s315
    %p322 = scmp.eq.s32.totalorder %s32, 1
    %p323 = por %p321, %p322
    %p324 = scmp.ne.s32.totalorder %s315, %s316
    %p325 = scmp.eq.s32.totalorder %s32, 0
    %p326 = por %p324, %p325
    %p327 = scmp.ne.s32.totalorder %s315, %s316
    %p328 = scmp.eq.s32.totalorder %s33, 1
    %p329 = por %p327, %p328
    %p331 = scmp.ne.s32.totalorder %s316, %s330
    %p332 = scmp.eq.s32.totalorder %s33, 0
    %p333 = por %p331, %p332
    %s335 = sadd.s32 %s334, 1
    %p338 = scmp.eq.s32.totalorder %s27, 1
    %p339 = scmp.ne.s32.totalorder %s334, %s336
    %p340 = scmp.eq.s32.totalorder %s27, 0
    %p341 = por %p339, %p340
    %p342 = scmp.ne.s32.totalorder %s334, %s336
    %p343 = scmp.eq.s32.totalorder %s32, 1
    %p344 = por %p342, %p343
    %p345 = scmp.ne.s32.totalorder %s336, %s337
    %p346 = scmp.eq.s32.totalorder %s32, 0
    %p347 = por %p345, %p346
    %p348 = scmp.ne.s32.totalorder %s336, %s337
    %p349 = scmp.eq.s32.totalorder %s33, 1
    %p350 = por %p348, %p349
    %p352 = scmp.ne.s32.totalorder %s337, %s351
    %p353 = scmp.eq.s32.totalorder %s33, 0
    %p354 = por %p352, %p353
    %s356 = sadd.s32 %s355, 1
    %p359 = scmp.eq.s32.totalorder %s27, 1
    %p360 = scmp.ne.s32.totalorder %s355, %s357
    %p361 = scmp.eq.s32.totalorder %s27, 0
    %p362 = por %p360, %p361
    %p363 = scmp.ne.s32.totalorder %s355, %s357
    %p364 = scmp.eq.s32.totalorder %s32, 1
    %p365 = por %p363, %p364
    %p366 = scmp.ne.s32.totalorder %s357, %s358
    %p367 = scmp.eq.s32.totalorder %s32, 0
    %p368 = por %p366, %p367
    %p369 = scmp.ne.s32.totalorder %s357, %s358
    %p370 = scmp.eq.s32.totalorder %s33, 1
    %p371 = por %p369, %p370
    %p373 = scmp.ne.s32.totalorder %s358, %s372
    %p374 = scmp.eq.s32.totalorder %s33, 0
    %p375 = por %p373, %p374
    %s377 = sadd.s32 %s376, 1
    %p380 = scmp.eq.s32.totalorder %s27, 1
    %p381 = scmp.ne.s32.totalorder %s376, %s378
    %p382 = scmp.eq.s32.totalorder %s27, 0
    %p383 = por %p381, %p382
    %p384 = scmp.ne.s32.totalorder %s376, %s378
    %p385 = scmp.eq.s32.totalorder %s32, 1
    %p386 = por %p384, %p385
    %p387 = scmp.ne.s32.totalorder %s378, %s379
    %p388 = scmp.eq.s32.totalorder %s32, 0
    %p389 = por %p387, %p388
    %p390 = scmp.ne.s32.totalorder %s378, %s379
    %p391 = scmp.eq.s32.totalorder %s33, 1
    %p392 = por %p390, %p391
    %p394 = scmp.ne.s32.totalorder %s379, %s393
    %p395 = scmp.eq.s32.totalorder %s33, 0
    %p396 = por %p394, %p395
    %s398 = sadd.s32 %s397, 1
    %p401 = scmp.eq.s32.totalorder %s27, 1
    %p402 = scmp.ne.s32.totalorder %s397, %s399
    %p403 = scmp.eq.s32.totalorder %s27, 0
    %p404 = por %p402, %p403
    %p405 = scmp.ne.s32.totalorder %s397, %s399
    %p406 = scmp.eq.s32.totalorder %s32, 1
    %p407 = por %p405, %p406
    %p408 = scmp.ne.s32.totalorder %s399, %s400
    %p409 = scmp.eq.s32.totalorder %s32, 0
    %p410 = por %p408, %p409
    %p411 = scmp.ne.s32.totalorder %s399, %s400
    %p412 = scmp.eq.s32.totalorder %s33, 1
    %p413 = por %p411, %p412
    %p415 = scmp.ne.s32.totalorder %s400, %s414
    %p416 = scmp.eq.s32.totalorder %s33, 0
    %p417 = por %p415, %p416
    %s419 = sadd.s32 %s418, 1
    %p422 = scmp.eq.s32.totalorder %s27, 1
    %p423 = scmp.ne.s32.totalorder %s418, %s420
    %p424 = scmp.eq.s32.totalorder %s27, 0
    %p425 = por %p423, %p424
    %p426 = scmp.ne.s32.totalorder %s418, %s420
    %p427 = scmp.eq.s32.totalorder %s32, 1
    %p428 = por %p426, %p427
    %p429 = scmp.ne.s32.totalorder %s420, %s421
    %p430 = scmp.eq.s32.totalorder %s32, 0
    %p431 = por %p429, %p430
    %p432 = scmp.ne.s32.totalorder %s420, %s421
    %p433 = scmp.eq.s32.totalorder %s33, 1
    %p434 = por %p432, %p433
    %p436 = scmp.ne.s32.totalorder %s421, %s435
    %p437 = scmp.eq.s32.totalorder %s33, 0
    %p438 = por %p436, %p437
    %s440 = sadd.s32 %s439, 1
    %p443 = scmp.eq.s32.totalorder %s27, 1
    %p444 = scmp.ne.s32.totalorder %s439, %s441
    %p445 = scmp.eq.s32.totalorder %s27, 0
    %p446 = por %p444, %p445
    %p447 = scmp.ne.s32.totalorder %s439, %s441
    %p448 = scmp.eq.s32.totalorder %s32, 1
    %p449 = por %p447, %p448
    %p450 = scmp.ne.s32.totalorder %s441, %s442
    %p451 = scmp.eq.s32.totalorder %s32, 0
    %p452 = por %p450, %p451
    %p453 = scmp.ne.s32.totalorder %s441, %s442
    %p454 = scmp.eq.s32.totalorder %s33, 1
    %p455 = por %p453, %p454
    %p457 = scmp.ne.s32.totalorder %s442, %s456
    %p458 = scmp.eq.s32.totalorder %s33, 0
    %p459 = por %p457, %p458
    %s461 = sadd.s32 %s460, 1
    %p464 = scmp.eq.s32.totalorder %s27, 1
    %p465 = scmp.ne.s32.totalorder %s460, %s462
    %p466 = scmp.eq.s32.totalorder %s27, 0
    %p467 = por %p465, %p466
    %p468 = scmp.ne.s32.totalorder %s460, %s462
    %p469 = scmp.eq.s32.totalorder %s32, 1
    %p470 = por %p468, %p469
    %p471 = scmp.ne.s32.totalorder %s462, %s463
    %p472 = scmp.eq.s32.totalorder %s32, 0
    %p473 = por %p471, %p472
    %p474 = scmp.ne.s32.totalorder %s462, %s463
    %p475 = scmp.eq.s32.totalorder %s33, 1
    %p476 = por %p474, %p475
    %p478 = scmp.ne.s32.totalorder %s463, %s477
    %p479 = scmp.eq.s32.totalorder %s33, 0
    %p480 = por %p478, %p479
    %s481 = ssub.s32 %s27, %s34
    %p482 = scmp.eq.s32.totalorder %s481, 0
    %s484 = sadd.s32 %s483, 1
    %s485 = scalar_select %p482, %s483, %s484
    %p488 = pneg %p482
    %p489 = scmp.eq.s32.totalorder %s27, 1
    %p490 = por %p488, %p489
    %p491 = scmp.ne.s32.totalorder %s483, %s486
    %p492 = scmp.eq.s32.totalorder %s27, 0
    %p493 = por %p491, %p492
    %p494 = scmp.ne.s32.totalorder %s483, %s486
    %p495 = scmp.eq.s32.totalorder %s32, 1
    %p496 = por %p494, %p495
    %p497 = scmp.ne.s32.totalorder %s486, %s487
    %p498 = scmp.eq.s32.totalorder %s32, 0
    %p499 = por %p497, %p498
    %p500 = scmp.ne.s32.totalorder %s486, %s487
    %p501 = scmp.eq.s32.totalorder %s33, 1
    %p502 = por %p500, %p501
    %p504 = scmp.ne.s32.totalorder %s487, %s503
    %p505 = scmp.eq.s32.totalorder %s33, 0
    %p506 = por %p504, %p505
    %p507 = scmp.le.s32.totalorder 1, %s27
    %p508 = scmp.lt.s32.totalorder %s27, 3
    %p509 = pnand %p507, %p508
    %p510 = pneg %p509
    // Predicated region
    $region9: #{unet_forward.1} parent=5 // pred_check
      _
    $region10: #{unet_forward.1} parent=5 // pred_check_branch
      %512 = sbr.rel (%p509) target = $region12
    $region11: #{unet_forward.1} parent=5 // pred_region
      %s513 = ssub.s32 %s27, 1
      // Predicated region
      $region13: #{unet_forward.1} parent=11 // pred_check
        %p514 = pneg %p74
      $region14: #{unet_forward.1} parent=11 // pred_check_branch
        %516 = sbr.rel (%p514) target = $region16
      $region15: #{unet_forward.1} parent=11 // pred_region
        _
      $region16: #{unet_forward.1} parent=11 // pred_fallthru
        _
      // Predicated region
      $region17: #{unet_forward.1} parent=11 // pred_check
        %p517 = pneg %p95
      $region18: #{unet_forward.1} parent=11 // pred_check_branch
        %519 = sbr.rel (%p517) target = $region20
      $region19: #{unet_forward.1} parent=11 // pred_region
        _
      $region20: #{unet_forward.1} parent=11 // pred_fallthru
        _
      // Predicated region
      $region21: #{unet_forward.1} parent=11 // pred_check
        %p520 = pneg %p116
      $region22: #{unet_forward.1} parent=11 // pred_check_branch
        %522 = sbr.rel (%p520) target = $region24
      $region23: #{unet_forward.1} parent=11 // pred_region
        _
      $region24: #{unet_forward.1} parent=11 // pred_fallthru
        _
      // Predicated region
      $region25: #{unet_forward.1} parent=11 // pred_check
        %p523 = pneg %p137
      $region26: #{unet_forward.1} parent=11 // pred_check_branch
        %525 = sbr.rel (%p523) target = $region28
      $region27: #{unet_forward.1} parent=11 // pred_region
        _
      $region28: #{unet_forward.1} parent=11 // pred_fallthru
        _
      // Predicated region
      $region29: #{unet_forward.1} parent=11 // pred_check
        %p526 = pneg %p158
      $region30: #{unet_forward.1} parent=11 // pred_check_branch
        %528 = sbr.rel (%p526) target = $region32
      $region31: #{unet_forward.1} parent=11 // pred_region
        _
      $region32: #{unet_forward.1} parent=11 // pred_fallthru
        _
      // Predicated region
      $region33: #{unet_forward.1} parent=11 // pred_check
        %p529 = pneg %p179
      $region34: #{unet_forward.1} parent=11 // pred_check_branch
        %531 = sbr.rel (%p529) target = $region36
      $region35: #{unet_forward.1} parent=11 // pred_region
        _
      $region36: #{unet_forward.1} parent=11 // pred_fallthru
        _
      // Predicated region
      $region37: #{unet_forward.1} parent=11 // pred_check
        %p532 = pneg %p200
      $region38: #{unet_forward.1} parent=11 // pred_check_branch
        %534 = sbr.rel (%p532) target = $region40
      $region39: #{unet_forward.1} parent=11 // pred_region
        _
      $region40: #{unet_forward.1} parent=11 // pred_fallthru
        _
      // Predicated region
      $region41: #{unet_forward.1} parent=11 // pred_check
        %p535 = pneg %p221
      $region42: #{unet_forward.1} parent=11 // pred_check_branch
        %537 = sbr.rel (%p535) target = $region44
      $region43: #{unet_forward.1} parent=11 // pred_region
        _
      $region44: #{unet_forward.1} parent=11 // pred_fallthru
        _
      // Predicated region
      $region45: #{unet_forward.1} parent=11 // pred_check
        %p538 = pneg %p242
      $region46: #{unet_forward.1} parent=11 // pred_check_branch
        %540 = sbr.rel (%p538) target = $region48
      $region47: #{unet_forward.1} parent=11 // pred_region
        _
      $region48: #{unet_forward.1} parent=11 // pred_fallthru
        _
      // Predicated region
      $region49: #{unet_forward.1} parent=11 // pred_check
        %p541 = pneg %p263
      $region50: #{unet_forward.1} parent=11 // pred_check_branch
        %543 = sbr.rel (%p541) target = $region52
      $region51: #{unet_forward.1} parent=11 // pred_region
        _
      $region52: #{unet_forward.1} parent=11 // pred_fallthru
        _
      // Predicated region
      $region53: #{unet_forward.1} parent=11 // pred_check
        %p544 = pneg %p284
      $region54: #{unet_forward.1} parent=11 // pred_check_branch
        %546 = sbr.rel (%p544) target = $region56
      $region55: #{unet_forward.1} parent=11 // pred_region
        _
      $region56: #{unet_forward.1} parent=11 // pred_fallthru
        _
      // Predicated region
      $region57: #{unet_forward.1} parent=11 // pred_check
        %p547 = pneg %p305
      $region58: #{unet_forward.1} parent=11 // pred_check_branch
        %549 = sbr.rel (%p547) target = $region60
      $region59: #{unet_forward.1} parent=11 // pred_region
        _
      $region60: #{unet_forward.1} parent=11 // pred_fallthru
        _
      // Predicated region
      $region61: #{unet_forward.1} parent=11 // pred_check
        %p550 = pneg %p326
      $region62: #{unet_forward.1} parent=11 // pred_check_branch
        %552 = sbr.rel (%p550) target = $region64
      $region63: #{unet_forward.1} parent=11 // pred_region
        _
      $region64: #{unet_forward.1} parent=11 // pred_fallthru
        _
      // Predicated region
      $region65: #{unet_forward.1} parent=11 // pred_check
        %p553 = pneg %p347
      $region66: #{unet_forward.1} parent=11 // pred_check_branch
        %555 = sbr.rel (%p553) target = $region68
      $region67: #{unet_forward.1} parent=11 // pred_region
        _
      $region68: #{unet_forward.1} parent=11 // pred_fallthru
        _
      // Predicated region
      $region69: #{unet_forward.1} parent=11 // pred_check
        %p556 = pneg %p368
      $region70: #{unet_forward.1} parent=11 // pred_check_branch
        %558 = sbr.rel (%p556) target = $region72
      $region71: #{unet_forward.1} parent=11 // pred_region
        _
      $region72: #{unet_forward.1} parent=11 // pred_fallthru
        _
      // Predicated region
      $region73: #{unet_forward.1} parent=11 // pred_check
        %p559 = pneg %p389
      $region74: #{unet_forward.1} parent=11 // pred_check_branch
        %561 = sbr.rel (%p559) target = $region76
      $region75: #{unet_forward.1} parent=11 // pred_region
        _
      $region76: #{unet_forward.1} parent=11 // pred_fallthru
        _
      // Predicated region
      $region77: #{unet_forward.1} parent=11 // pred_check
        %p562 = pneg %p410
      $region78: #{unet_forward.1} parent=11 // pred_check_branch
        %564 = sbr.rel (%p562) target = $region80
      $region79: #{unet_forward.1} parent=11 // pred_region
        _
      $region80: #{unet_forward.1} parent=11 // pred_fallthru
        _
      // Predicated region
      $region81: #{unet_forward.1} parent=11 // pred_check
        %p565 = pneg %p431
      $region82: #{unet_forward.1} parent=11 // pred_check_branch
        %567 = sbr.rel (%p565) target = $region84
      $region83: #{unet_forward.1} parent=11 // pred_region
        _
      $region84: #{unet_forward.1} parent=11 // pred_fallthru
        _
      // Predicated region
      $region85: #{unet_forward.1} parent=11 // pred_check
        %p568 = pneg %p452
      $region86: #{unet_forward.1} parent=11 // pred_check_branch
        %570 = sbr.rel (%p568) target = $region88
      $region87: #{unet_forward.1} parent=11 // pred_region
        _
      $region88: #{unet_forward.1} parent=11 // pred_fallthru
        _
      // Predicated region
      $region89: #{unet_forward.1} parent=11 // pred_check
        %p571 = pneg %p473
      $region90: #{unet_forward.1} parent=11 // pred_check_branch
        %573 = sbr.rel (%p571) target = $region92
      $region91: #{unet_forward.1} parent=11 // pred_region
        _
      $region92: #{unet_forward.1} parent=11 // pred_fallthru
        _
    $region12: #{unet_forward.1} parent=5 // pred_fallthru
      _
    %p574 = scmp.lt.s32.totalorder %s27, 2
    // Predicated region
    $region93: #{unet_forward.1} parent=5 // pred_check
      %p575 = pneg %p574
    $region94: #{unet_forward.1} parent=5 // pred_check_branch
      %577 = sbr.rel (%p575) target = $region96
    $region95: #{unet_forward.1} parent=5 // pred_region
      // Predicated region
      $region97: #{unet_forward.1} parent=95 // pred_check
        %p578 = pneg %p47
      $region98: #{unet_forward.1} parent=95 // pred_check_branch
        %580 = sbr.rel (%p578) target = $region100
      $region99: #{unet_forward.1} parent=95 // pred_region
        %p581 = scmp.lt.s32.totalorder %s27, 1
        %s582 = scalar_select %p581, %s27, 1
        %s583 = smul.addr %s582, 2
        %s584 = scalar_lea.vmem %s0, %s583
      $region100: #{unet_forward.1} parent=95 // pred_fallthru
        _
    $region96: #{unet_forward.1} parent=5 // pred_fallthru
      _
    %p585 = scmp.le.s32.totalorder 1, %s27
    %p586 = scmp.lt.s32.totalorder %s27, 3
    %p587 = pnand %p585, %p586
    %p588 = pneg %p587
    // Predicated region
    $region101: #{unet_forward.1} parent=5 // pred_check
      _
    $region102: #{unet_forward.1} parent=5 // pred_check_branch
      %590 = sbr.rel (%p587) target = $region104
    $region103: #{unet_forward.1} parent=5 // pred_region
      %s591 = ssub.s32 %s27, 1
      %p592 = scmp.lt.s32.totalorder %s32, 1
      %s593 = scalar_select %p592, %s32, 1
      %s594 = smul.addr %s593, 2
      %s595 = scalar_lea.vmem %s0, %s594
      %p596 = pneg %p53
      %p597 = pneg %p50
      %p598 = pneg %p74
      %p599 = pneg %p71
      %p600 = pneg %p95
      %p601 = pneg %p92
      %p602 = pneg %p116
      %p603 = pneg %p113
      %p604 = pneg %p137
      %p605 = pneg %p134
      %p606 = pneg %p158
      %p607 = pneg %p155
      %p608 = pneg %p179
      %p609 = pneg %p176
      %p610 = pneg %p200
      %p611 = pneg %p197
      %p612 = pneg %p221
      %p613 = pneg %p218
      %p614 = pneg %p242
      %p615 = pneg %p239
      %p616 = pneg %p263
      %p617 = pneg %p260
      %p618 = pneg %p284
      %p619 = pneg %p281
      %p620 = pneg %p305
      %p621 = pneg %p302
      %p622 = pneg %p326
      %p623 = pneg %p323
      %p624 = pneg %p347
      %p625 = pneg %p344
      %p626 = pneg %p368
      %p627 = pneg %p365
      %p628 = pneg %p389
      %p629 = pneg %p386
      %p630 = pneg %p410
      %p631 = pneg %p407
      %p632 = pneg %p431
      %p633 = pneg %p428
      %p634 = pneg %p452
      %p635 = pneg %p449
      %p636 = pneg %p473
      %p637 = pneg %p470
      %p638 = pneg %p499
      %p639 = pneg %p496
      %p640 = scmp.lt.s32.totalorder %s32, 1
      %s641 = scalar_select %p640, %s32, 1
      %s642 = smul.addr %s641, 2
      %s643 = smul.addr %s642, 2
      %s644 = scalar_lea.vmem %s21, %s643
      %p645 = scmp.lt.s32.totalorder %s32, 1
      %s646 = scalar_select %p645, %s32, 1
      %s647 = smul.addr %s646, 2
      %s648 = scalar_lea.vmem %s0, %s647
      %p649 = scmp.lt.s32.totalorder %s32, 1
      %s650 = scalar_select %p649, %s32, 1
      %s651 = smul.addr %s650, 2
      %s652 = smul.addr %s651, 2
      %s653 = scalar_lea.vmem %s21, %s652
      %v654 = vld [vmem:[%s648] sm:$0x3]
      %v655 = vlaneseq
      %v656 = vand.u32 %v655, 127
      %v657 = vadd.s32 %v656, 128
      %v658 = vand.u32 %v656, 15
      %v659 = vand.u32 %v657, 15
      %vm660 = vcmp.ge.s32.totalorder %v658, 1
      %vm661 = vcmp.ge.s32.totalorder %v659, 1
      %vm662 = vcmp.lt.s32.totalorder %v658, 15
      %vm663 = vcmp.lt.s32.totalorder %v659, 15
      %v664 = vand.u32 %v656, 7
      %vm665 = vcmp.ge.s32.totalorder %v664, 1
      %vm666 = vcmp.lt.s32.totalorder %v664, 7
      %v667 = vand.u32 %v656, 3
      %vm668 = vcmp.ge.s32.totalorder %v667, 1
      %vm669 = vcmp.lt.s32.totalorder %v667, 3
      %v670 = vld [vmem:[%s1] sm:$0xff]
      %v671 = vld [vmem:[%s2] sm:$0xff]
      %v673 = vlaneseq
      %v674 = vshrl.u32 %v673, 7
      %v675 = vsub.s32 0, %v674
      %v676 = vrot.slane %v654, %v675
      %v677 = vlaneseq
      %v678 = vshrl.u32 %v677, 7
      %v679 = vsub.s32 1, %v678
      %v680 = vrot.slane %v654, %v679
      %681 = vrot.lane.b32.xlu0 %v676, 17
      %v682 = vpop.permute.xlu0 %681
      %683 = vrot.lane.b32.xlu0 %v680, 17
      %v684 = vpop.permute.xlu0 %683
      %vm685 = vcmask 138240
      %v686 = vsel %vm685, %v682, %v684
      %v690 = vsel %vm685, 0.0, %v682
      %v691 = vsel %vm685, %v684, 0.0
      %v692 = vsel %vm660, %v690, 0.0
      %v693 = vsel %vm661, %v686, 0.0
      %696 = vrot.lane.b32.xlu0 %v690, 126
      %v697 = vpop.permute.xlu0 %696
      %698 = vrot.lane.b32.xlu0 %v686, 126
      %v699 = vpop.permute.xlu0 %698
      %700 = vrot.lane.b32.xlu0 %v691, 126
      %v701 = vpop.permute.xlu0 %700
      %vm702 = vcmask 1031168
      %v703 = vsel %vm702, %v697, %v699
      %v704 = vsel %vm702, %v699, %v701
      %v707 = vsel %vm662, %v703, 0.0
      %v708 = vsel %vm663, %v704, 0.0
      %709 = vrot.lane.b32.xlu0 %v690, 112
      %v710 = vpop.permute.xlu0 %709
      %711 = vrot.lane.b32.xlu0 %v686, 112
      %v712 = vpop.permute.xlu0 %711
      %713 = vrot.lane.b32.xlu0 %v691, 112
      %v714 = vpop.permute.xlu0 %713
      %vm715 = vcmask 916480
      %v716 = vsel %vm715, %v710, %v712
      %v717 = vsel %vm715, %v712, %v714
      %v720 = vsel %vm660, %v716, 0.0
      %v721 = vsel %vm661, %v717, 0.0
      %722 = vrot.lane.b32.xlu0 %v690, 110
      %v723 = vpop.permute.xlu0 %722
      %724 = vrot.lane.b32.xlu0 %v686, 110
      %v725 = vpop.permute.xlu0 %724
      %726 = vrot.lane.b32.xlu0 %v691, 110
      %v727 = vpop.permute.xlu0 %726
      %vm728 = vcmask 900096
      %v729 = vsel %vm728, %v723, %v725
      %v730 = vsel %vm728, %v725, %v727
      %v733 = vsel %vm662, %v729, 0.0
      %v734 = vsel %vm663, %v730, 0.0
      %735 = vrot.lane.b32.xlu0 %v690, 96
      %v736 = vpop.permute.xlu0 %735
      %737 = vrot.lane.b32.xlu0 %v686, 96
      %v738 = vpop.permute.xlu0 %737
      %739 = vrot.lane.b32.xlu0 %v691, 96
      %v740 = vpop.permute.xlu0 %739
      %vm741 = vcmask 785408
      %v742 = vsel %vm741, %v736, %v738
      %v743 = vsel %vm741, %v738, %v740
      %v746 = vsel %vm660, %v742, 0.0
      %v747 = vsel %vm661, %v743, 0.0
      %748 = vrot.lane.b32.xlu0 %v690, 94
      %v749 = vpop.permute.xlu0 %748
      %750 = vrot.lane.b32.xlu0 %v686, 94
      %v751 = vpop.permute.xlu0 %750
      %752 = vrot.lane.b32.xlu0 %v691, 94
      %v753 = vpop.permute.xlu0 %752
      %vm754 = vcmask 769024
      %v755 = vsel %vm754, %v749, %v751
      %v756 = vsel %vm754, %v751, %v753
      %v759 = vsel %vm662, %v755, 0.0
      %v760 = vsel %vm663, %v756, 0.0
      %762 = vset.pattern.permute.xlu0 0
      %763 = vperm.xlu0 %762, %v670
      %v764 = vpop.permute.xlu0 %763
      %v766 = vlaneseq
      %v767 = vshrl.u32 %v766, 7
      %v768 = vsub.s32 0, %v767
      %v769 = vrot.slane %v692, %v768
      %v770 = vlaneseq
      %v771 = vshrl.u32 %v770, 7
      %v772 = vsub.s32 0, %v771
      %v773 = vrot.slane %v693, %v772
      %v774 = vmul.f32 %v764, %v769
      %v775 = vmul.f32 %v764, %v773
      %v776 = vadd.f32 %v774, 0.0
      %v777 = vadd.f32 %v775, 0.0
      %778 = vset.pattern.permute.xlu0 1
      %779 = vperm.xlu0 %778, %v670
      %v780 = vpop.permute.xlu0 %779
      %v782 = vlaneseq
      %v783 = vshrl.u32 %v782, 7
      %v784 = vsub.s32 0, %v783
      %v785 = vrot.slane %v690, %v784
      %v786 = vlaneseq
      %v787 = vshrl.u32 %v786, 7
      %v788 = vsub.s32 0, %v787
      %v789 = vrot.slane %v686, %v788
      %v790 = vlaneseq
      %v791 = vshrl.u32 %v790, 7
      %v792 = vsub.s32 0, %v791
      %v793 = vrot.slane %v691, %v792
      %v794 = vmul.f32 %v780, %v785
      %v795 = vmul.f32 %v780, %v789
      %v796 = vmul.f32 %v780, %v793
      %800 = vrot.lane.b32.xlu0 %v794, 127
      %v801 = vpop.permute.xlu0 %800
      %802 = vrot.lane.b32.xlu0 %v795, 127
      %v803 = vpop.permute.xlu0 %802
      %804 = vrot.lane.b32.xlu0 %v796, 127
      %v805 = vpop.permute.xlu0 %804
      %vm806 = vcmask 1039360
      %v807 = vsel %vm806, %v801, %v803
      %v808 = vsel %vm806, %v803, %v805
      %v811 = vadd.f32 %v776, %v807
      %v812 = vadd.f32 %v777, %v808
      %813 = vset.pattern.permute.xlu0 2
      %814 = vperm.xlu0 %813, %v670
      %v815 = vpop.permute.xlu0 %814
      %v817 = vlaneseq
      %v818 = vshrl.u32 %v817, 7
      %v819 = vsub.s32 0, %v818
      %v820 = vrot.slane %v707, %v819
      %v821 = vlaneseq
      %v822 = vshrl.u32 %v821, 7
      %v823 = vsub.s32 0, %v822
      %v824 = vrot.slane %v708, %v823
      %v825 = vmul.f32 %v815, %v820
      %v826 = vmul.f32 %v815, %v824
      %v827 = vadd.f32 %v811, %v825
      %v828 = vadd.f32 %v812, %v826
      %829 = vset.pattern.permute.xlu0 3
      %830 = vperm.xlu0 %829, %v670
      %v831 = vpop.permute.xlu0 %830
      %v833 = vlaneseq
      %v834 = vshrl.u32 %v833, 7
      %v835 = vsub.s32 0, %v834
      %v836 = vrot.slane %v720, %v835
      %v837 = vlaneseq
      %v838 = vshrl.u32 %v837, 7
      %v839 = vsub.s32 0, %v838
      %v840 = vrot.slane %v721, %v839
      %v841 = vmul.f32 %v831, %v836
      %v842 = vmul.f32 %v831, %v840
      %v843 = vadd.f32 %v827, %v841
      %v844 = vadd.f32 %v828, %v842
      %845 = vset.pattern.permute.xlu0 4
      %846 = vperm.xlu0 %845, %v670
      %v847 = vpop.permute.xlu0 %846
      %v849 = vmul.f32 %v847, %v785
      %v850 = vmul.f32 %v847, %v789
      %v851 = vmul.f32 %v847, %v793
      %855 = vrot.lane.b32.xlu0 %v849, 111
      %v856 = vpop.permute.xlu0 %855
      %857 = vrot.lane.b32.xlu0 %v850, 111
      %v858 = vpop.permute.xlu0 %857
      %859 = vrot.lane.b32.xlu0 %v851, 111
      %v860 = vpop.permute.xlu0 %859
      %vm861 = vcmask 908288
      %v862 = vsel %vm861, %v856, %v858
      %v863 = vsel %vm861, %v858, %v860
      %v866 = vadd.f32 %v843, %v862
      %v867 = vadd.f32 %v844, %v863
      %868 = vset.pattern.permute.xlu0 5
      %869 = vperm.xlu0 %868, %v670
      %v870 = vpop.permute.xlu0 %869
      %v872 = vlaneseq
      %v873 = vshrl.u32 %v872, 7
      %v874 = vsub.s32 0, %v873
      %v875 = vrot.slane %v733, %v874
      %v876 = vlaneseq
      %v877 = vshrl.u32 %v876, 7
      %v878 = vsub.s32 0, %v877
      %v879 = vrot.slane %v734, %v878
      %v880 = vmul.f32 %v870, %v875
      %v881 = vmul.f32 %v870, %v879
      %v882 = vadd.f32 %v866, %v880
      %v883 = vadd.f32 %v867, %v881
      %884 = vset.pattern.permute.xlu0 6
      %885 = vperm.xlu0 %884, %v670
      %v886 = vpop.permute.xlu0 %885
      %v888 = vlaneseq
      %v889 = vshrl.u32 %v888, 7
      %v890 = vsub.s32 0, %v889
      %v891 = vrot.slane %v746, %v890
      %v892 = vlaneseq
      %v893 = vshrl.u32 %v892, 7
      %v894 = vsub.s32 0, %v893
      %v895 = vrot.slane %v747, %v894
      %v896 = vmul.f32 %v886, %v891
      %v897 = vmul.f32 %v886, %v895
      %v898 = vadd.f32 %v882, %v896
      %v899 = vadd.f32 %v883, %v897
      %900 = vset.pattern.permute.xlu0 7
      %901 = vperm.xlu0 %900, %v670
      %v902 = vpop.permute.xlu0 %901
      %v904 = vmul.f32 %v902, %v785
      %v905 = vmul.f32 %v902, %v789
      %v906 = vmul.f32 %v902, %v793
      %910 = vrot.lane.b32.xlu0 %v904, 95
      %v911 = vpop.permute.xlu0 %910
      %912 = vrot.lane.b32.xlu0 %v905, 95
      %v913 = vpop.permute.xlu0 %912
      %914 = vrot.lane.b32.xlu0 %v906, 95
      %v915 = vpop.permute.xlu0 %914
      %vm916 = vcmask 777216
      %v917 = vsel %vm916, %v911, %v913
      %v918 = vsel %vm916, %v913, %v915
      %v921 = vadd.f32 %v898, %v917
      %v922 = vadd.f32 %v899, %v918
      %923 = vset.pattern.permute.xlu0 8
      %924 = vperm.xlu0 %923, %v670
      %v925 = vpop.permute.xlu0 %924
      %v927 = vlaneseq
      %v928 = vshrl.u32 %v927, 7
      %v929 = vsub.s32 0, %v928
      %v930 = vrot.slane %v759, %v929
      %v931 = vlaneseq
      %v932 = vshrl.u32 %v931, 7
      %v933 = vsub.s32 0, %v932
      %v934 = vrot.slane %v760, %v933
      %v935 = vmul.f32 %v925, %v930
      %v936 = vmul.f32 %v925, %v934
      %v937 = vadd.f32 %v921, %v935
      %v938 = vadd.f32 %v922, %v936
      %940 = vset.pattern.permute.xlu0 0
      %941 = vperm.xlu0 %940, %v671
      %v942 = vpop.permute.xlu0 %941
      %v944 = vadd.f32 %v937, %v942
      %v945 = vadd.f32 %v938, %v942
      %v946 = vmax.f32 %v944, 0.0
      %v947 = vmax.f32 %v945, 0.0
      %v948 = vld [vmem:[%s15] sm:$0xff]
      %v949 = vld [vmem:[%s15 + $0x8] sm:$0xff]
      %v950 = vld [vmem:[%s15 + $0x10] sm:$0xff]
      %v951 = vld [vmem:[%s15 + $0x18] sm:$0xff]
      %v952 = vld [vmem:[%s15 + $0x20] sm:$0xff]
      %v953 = vld [vmem:[%s15 + $0x28] sm:$0xff]
      %v954 = vld [vmem:[%s15 + $0x30] sm:$0xff]
      %v955 = vld [vmem:[%s15 + $0x38] sm:$0xff]
      %v956 = vld [vmem:[%s15 + $0x40] sm:$0xff]
      %v957 = vld [vmem:[%s15 + $0x48] sm:$0xff]
      %v958 = vld [vmem:[%s15 + $0x50] sm:$0xff]
      %v959 = vld [vmem:[%s15 + $0x58] sm:$0xff]
      %v960 = vld [vmem:[%s15 + $0x60] sm:$0xff]
      %v961 = vld [vmem:[%s15 + $0x68] sm:$0xff]
      %v962 = vld [vmem:[%s15 + $0x70] sm:$0xff]
      %v963 = vld [vmem:[%s15 + $0x78] sm:$0xff]
      %v964 = vld [vmem:[%s15 + $0x80] sm:$0xff]
      %v965 = vld [vmem:[%s15 + $0x88] sm:$0xff]
      %v966 = vld [vmem:[%s15 + $0x90] sm:$0xff]
      %v967 = vld [vmem:[%s15 + $0x98] sm:$0xff]
      %v968 = vld [vmem:[%s15 + $0xa0] sm:$0xff]
      %v969 = vld [vmem:[%s15 + $0xa8] sm:$0xff]
      %v970 = vld [vmem:[%s15 + $0xb0] sm:$0xff]
      %v971 = vld [vmem:[%s15 + $0xb8] sm:$0xff]
      %v972 = vld [vmem:[%s15 + $0xc0] sm:$0xff]
      %v973 = vld [vmem:[%s15 + $0xc8] sm:$0xff]
      %v974 = vld [vmem:[%s15 + $0xd0] sm:$0xff]
      %v975 = vld [vmem:[%s15 + $0xd8] sm:$0xff]
      %v976 = vld [vmem:[%s15 + $0xe0] sm:$0xff]
      %v977 = vld [vmem:[%s15 + $0xe8] sm:$0xff]
      %v978 = vld [vmem:[%s15 + $0xf0] sm:$0xff]
      %v979 = vld [vmem:[%s15 + $0xf8] sm:$0xff]
      %982 = vrot.lane.b32.xlu0 %v946, 17
      %v983 = vpop.permute.xlu0 %982
      %984 = vrot.lane.b32.xlu0 %v947, 17
      %v985 = vpop.permute.xlu0 %984
      %v986 = vsel %vm685, %v983, %v985
      %v990 = vsel %vm685, 0.0, %v983
      %v991 = vsel %vm685, %v985, 0.0
      %994 = vrot.lane.b32.xlu0 %v990, 110
      %v995 = vpop.permute.xlu0 %994
      %996 = vrot.lane.b32.xlu0 %v986, 110
      %v997 = vpop.permute.xlu0 %996
      %998 = vrot.lane.b32.xlu0 %v991, 110
      %v999 = vpop.permute.xlu0 %998
      %v1000 = vsel %vm728, %v995, %v997
      %v1001 = vsel %vm728, %v997, %v999
      %v1004 = vmax.f32 %v946, %v1000
      %v1005 = vmax.f32 %v947, %v1001
      %1006 = vrot.lane.b32.xlu0 %v990, 127
      %v1007 = vpop.permute.xlu0 %1006
      %1008 = vrot.lane.b32.xlu0 %v986, 127
      %v1009 = vpop.permute.xlu0 %1008
      %1010 = vrot.lane.b32.xlu0 %v991, 127
      %v1011 = vpop.permute.xlu0 %1010
      %v1012 = vsel %vm806, %v1007, %v1009
      %v1013 = vsel %vm806, %v1009, %v1011
      %v1017 = vmax.f32 %v990, %v1012
      %v1018 = vmax.f32 %v986, %v1013
      %v1019 = vmax.f32 %v991, %v1011
      %1023 = vrot.lane.b32.xlu0 %v1017, 95
      %v1024 = vpop.permute.xlu0 %1023
      %1025 = vrot.lane.b32.xlu0 %v1018, 95
      %v1026 = vpop.permute.xlu0 %1025
      %1027 = vrot.lane.b32.xlu0 %v1019, 95
      %v1028 = vpop.permute.xlu0 %1027
      %v1029 = vsel %vm916, %v1024, %v1026
      %v1030 = vsel %vm916, %v1026, %v1028
      %v1033 = vmax.f32 %v1004, %v1029
      %v1034 = vmax.f32 %v1005, %v1030
      %1035 = vmatprep.subr.mxu0 0.0
      %1036 = vmatpush1.msra.mxu0 %v963
      %1037 = vmatprep.subr.mxu0 0.0
      %1038 = vmatpush1.msra.mxu0 %v962
      %1039 = vmatprep.subr.mxu0 0.0
      %1040 = vmatpush1.msra.mxu0 %v961
      %1041 = vmatprep.subr.mxu0 0.0
      %1042 = vmatpush1.msra.mxu0 %v960
      %1043 = vmatprep.subr.mxu0 0.0
      %1044 = vmatpush1.msra.mxu0 %v959
      %1045 = vmatprep.subr.mxu0 0.0
      %1046 = vmatpush1.msra.mxu0 %v958
      %1047 = vmatprep.subr.mxu0 0.0
      %1048 = vmatpush1.msra.mxu0 %v957
      %1049 = vmatprep.subr.mxu0 0.0
      %1050 = vmatpush1.msra.mxu0 %v956
      %1051 = vmatprep.subr.mxu0 0.0
      %1052 = vmatpush1.msra.mxu0 %v955
      %1053 = vmatprep.subr.mxu0 0.0
      %1054 = vmatpush1.msra.mxu0 %v954
      %1055 = vmatprep.subr.mxu0 0.0
      %1056 = vmatpush1.msra.mxu0 %v953
      %1057 = vmatprep.subr.mxu0 0.0
      %1058 = vmatpush1.msra.mxu0 %v952
      %1059 = vmatprep.subr.mxu0 0.0
      %1060 = vmatpush1.msra.mxu0 %v951
      %1061 = vmatprep.subr.mxu0 0.0
      %1062 = vmatpush1.msra.mxu0 %v950
      %1063 = vmatprep.subr.mxu0 0.0
      %1064 = vmatpush1.msra.mxu0 %v949
      %1065 = vmatprep.subr.mxu0 0.0
      %1066 = vmatpush1.msra.mxu0 %v948
      %1067 = vmatprep.subr.mxu0 0.0
      %1068 = vmatpush2.msra.mxu0 %v979
      %1069 = vmatprep.subr.mxu0 0.0
      %1070 = vmatpush2.msra.mxu0 %v978
      %1071 = vmatprep.subr.mxu0 0.0
      %1072 = vmatpush2.msra.mxu0 %v977
      %1073 = vmatprep.subr.mxu0 0.0
      %1074 = vmatpush2.msra.mxu0 %v976
      %1075 = vmatprep.subr.mxu0 0.0
      %1076 = vmatpush2.msra.mxu0 %v975
      %1077 = vmatprep.subr.mxu0 0.0
      %1078 = vmatpush2.msra.mxu0 %v974
      %1079 = vmatprep.subr.mxu0 0.0
      %1080 = vmatpush2.msra.mxu0 %v973
      %1081 = vmatprep.subr.mxu0 0.0
      %1082 = vmatpush2.msra.mxu0 %v972
      %1083 = vmatprep.subr.mxu0 0.0
      %1084 = vmatpush2.msra.mxu0 %v971
      %1085 = vmatprep.subr.mxu0 0.0
      %1086 = vmatpush2.msra.mxu0 %v970
      %1087 = vmatprep.subr.mxu0 0.0
      %1088 = vmatpush2.msra.mxu0 %v969
      %1089 = vmatprep.subr.mxu0 0.0
      %1090 = vmatpush2.msra.mxu0 %v968
      %1091 = vmatprep.subr.mxu0 0.0
      %1092 = vmatpush2.msra.mxu0 %v967
      %1093 = vmatprep.subr.mxu0 0.0
      %1094 = vmatpush2.msra.mxu0 %v966
      %1095 = vmatprep.subr.mxu0 0.0
      %1096 = vmatpush2.msra.mxu0 %v965
      %1097 = vmatprep.subr.mxu0 0.0
      %1098 = vmatpush2.msra.mxu0 %v964
      %1099 = vmatprep.mubr.f32.mxu0 %v1034
      %1100 = vmatmul.mubr.f32.gmra.mxu0 %v1033
      %v1101 = vpop.f32.mrf.mxu0
      %v1102 = vadd.f32 0.0, %v1101
      %v1103 = vpop.f32.mrf.mxu0
      %1104 = vdwg.mxu0
      %v1105 = vld [vmem:[%s3] sm:$0xff]
      %v1106 = vld [vmem:[%s3 + $0x8] sm:$0xff]
      %v1107 = vld [vmem:[%s4] sm:$0xff]
      %v1108 = vld [vmem:[%s4 + $0x8] sm:$0xff]
      %1110 = vrot.lane.b32.xlu0 %v1102, 9
      %v1111 = vpop.permute.xlu0 %1110
      %vm1113 = vcmask 72704
      %v1114 = vsel %vm1113, 0.0, %v1111
      %vm1115 = vcmask 596992
      %v1116 = vsel %vm1115, %v1114, 0.0
      %v1117 = vsel %vm665, 1, 0
      %vm1118 = vcmp.eq.s32.totalorder %v1117, 1
      %v1119 = vsel %vm1118, %v1116, 0.0
      %v1120 = vsel %vm666, 1, 0
      %vm1121 = vcmp.eq.s32.totalorder %v1120, 1
      %1123 = vrot.lane.b32.xlu0 %v1116, 126
      %v1124 = vpop.permute.xlu0 %1123
      %v1126 = vsel %vm1121, %v1124, 0.0
      %1127 = vrot.lane.b32.xlu0 %v1116, 120
      %v1128 = vpop.permute.xlu0 %1127
      %v1130 = vsel %vm1118, %v1128, 0.0
      %1131 = vrot.lane.b32.xlu0 %v1116, 118
      %v1132 = vpop.permute.xlu0 %1131
      %v1134 = vsel %vm1121, %v1132, 0.0
      %1135 = vrot.lane.b32.xlu0 %v1116, 112
      %v1136 = vpop.permute.xlu0 %1135
      %v1138 = vsel %vm1118, %v1136, 0.0
      %1139 = vrot.lane.b32.xlu0 %v1116, 110
      %v1140 = vpop.permute.xlu0 %1139
      %v1142 = vsel %vm1121, %v1140, 0.0
      %1143 = vrot.lane.b32.xlu0 %v1116, 127
      %v1144 = vpop.permute.xlu0 %1143
      %1146 = vrot.lane.b32.xlu0 %v1116, 119
      %v1147 = vpop.permute.xlu0 %1146
      %1149 = vrot.lane.b32.xlu0 %v1116, 111
      %v1150 = vpop.permute.xlu0 %1149
      %1153 = vset.pattern.permute.xlu0 0
      %1154 = vperm.xlu0 %1153, %v1107
      %v1155 = vpop.permute.xlu0 %1154
      %1158 = vset.pattern.permute.xlu0 0
      %1159 = vperm.xlu0 %1158, %v1108
      %v1160 = vpop.permute.xlu0 %1159
      %vm1162 = vcmask 588800
      %v1164 = vsel %vm1162, %v1105, 0
      %v1167 = vsel %vm1162, %v1106, 0
      %1169 = vmatprep.subr.mxu0 0.0
      %1170 = vmatpush1.msra.mxu0 0.0
      %1171 = vmatprep.subr.mxu0 0.0
      %1172 = vmatpush1.msra.mxu0 0.0
      %1173 = vmatprep.subr.mxu0 0.0
      %1174 = vmatpush1.msra.mxu0 0.0
      %1175 = vmatprep.subr.mxu0 0.0
      %1176 = vmatpush1.msra.mxu0 0.0
      %1177 = vmatprep.subr.mxu0 0.0
      %1178 = vmatpush1.msra.mxu0 0.0
      %1179 = vmatprep.subr.mxu0 0.0
      %1180 = vmatpush1.msra.mxu0 0.0
      %1181 = vmatprep.subr.mxu0 0.0
      %1182 = vmatpush1.msra.mxu0 0.0
      %1183 = vmatprep.subr.mxu0 0.0
      %1184 = vmatpush1.msra.mxu0 %v1142
      %1185 = vmatprep.subr.mxu0 0.0
      %1186 = vmatpush1.msra.mxu0 %v1150
      %1187 = vmatprep.subr.mxu0 0.0
      %1188 = vmatpush1.msra.mxu0 %v1138
      %1189 = vmatprep.subr.mxu0 0.0
      %1190 = vmatpush1.msra.mxu0 %v1134
      %1191 = vmatprep.subr.mxu0 0.0
      %1192 = vmatpush1.msra.mxu0 %v1147
      %1193 = vmatprep.subr.mxu0 0.0
      %1194 = vmatpush1.msra.mxu0 %v1130
      %1195 = vmatprep.subr.mxu0 0.0
      %1196 = vmatpush1.msra.mxu0 %v1126
      %1197 = vmatprep.subr.mxu0 0.0
      %1198 = vmatpush1.msra.mxu0 %v1144
      %1199 = vmatprep.subr.mxu0 0.0
      %1200 = vmatpush1.msra.mxu0 %v1119
      %1201 = vmatprep.subr.mxu0 0.0
      %1202 = vmatpush2.msra.mxu0 0.0
      %1203 = vmatprep.subr.mxu0 0.0
      %1204 = vmatpush2.msra.mxu0 0.0
      %1205 = vmatprep.subr.mxu0 0.0
      %1206 = vmatpush2.msra.mxu0 0.0
      %1207 = vmatprep.subr.mxu0 0.0
      %1208 = vmatpush2.msra.mxu0 0.0
      %1209 = vmatprep.subr.mxu0 0.0
      %1210 = vmatpush2.msra.mxu0 0.0
      %1211 = vmatprep.subr.mxu0 0.0
      %1212 = vmatpush2.msra.mxu0 0.0
      %1213 = vmatprep.subr.mxu0 0.0
      %1214 = vmatpush2.msra.mxu0 0.0
      %1215 = vmatprep.subr.mxu0 0.0
      %1216 = vmatpush2.msra.mxu0 0.0
      %1217 = vmatprep.subr.mxu0 0.0
      %1218 = vmatpush2.msra.mxu0 0.0
      %1219 = vmatprep.subr.mxu0 0.0
      %1220 = vmatpush2.msra.mxu0 0.0
      %1221 = vmatprep.subr.mxu0 0.0
      %1222 = vmatpush2.msra.mxu0 0.0
      %1223 = vmatprep.subr.mxu0 0.0
      %1224 = vmatpush2.msra.mxu0 0.0
      %1225 = vmatprep.subr.mxu0 0.0
      %1226 = vmatpush2.msra.mxu0 0.0
      %1227 = vmatprep.subr.mxu0 0.0
      %1228 = vmatpush2.msra.mxu0 0.0
      %1229 = vmatprep.subr.mxu0 0.0
      %1230 = vmatpush2.msra.mxu0 0.0
      %1231 = vmatprep.subr.mxu0 0.0
      %1232 = vmatpush2.msra.mxu0 0.0
      %1233 = vmatprep.mubr.f32.mxu0 0.0
      %1234 = vmatmul.mubr.f32.gmra.mxu0 %v1164
      %v1235 = vpop.f32.mrf.mxu0
      %v1236 = vadd.f32 %v1155, %v1235
      %v1237 = vpop.f32.mrf.mxu0
      %1238 = vmatprep.mubr.f32.mxu0 0.0
      %1239 = vmatmul.mubr.f32.gmra.mxu0 %v1167
      %v1240 = vpop.f32.mrf.mxu0
      %v1241 = vadd.f32 %v1160, %v1240
      %v1242 = vpop.f32.mrf.mxu0
      %1243 = vdwg.mxu0
      %v1244 = vmax.f32 %v1236, 0.0
      %v1245 = vmax.f32 %v1241, 0.0
      %v1246 = vld [vmem:[%s17] sm:$0xff]
      %v1247 = vld [vmem:[%s17 + $0x8] sm:$0xff]
      %v1248 = vld [vmem:[%s17 + $0x10] sm:$0xff]
      %v1249 = vld [vmem:[%s17 + $0x18] sm:$0xff]
      %v1250 = vld [vmem:[%s17 + $0x20] sm:$0xff]
      %v1251 = vld [vmem:[%s17 + $0x28] sm:$0xff]
      %v1252 = vld [vmem:[%s17 + $0x30] sm:$0xff]
      %v1253 = vld [vmem:[%s17 + $0x38] sm:$0xff]
      %1256 = vrot.lane.b32.xlu0 %v1244, 9
      %v1257 = vpop.permute.xlu0 %1256
      %1258 = vrot.lane.b32.xlu0 %v1245, 9
      %v1259 = vpop.permute.xlu0 %1258
      %v1262 = vsel %vm1113, 0.0, %v1257
      %v1263 = vsel %vm1113, 0.0, %v1259
      %v1264 = vsel %vm1115, %v1262, 0.0
      %v1265 = vsel %vm1115, %v1263, 0.0
      %1268 = vrot.lane.b32.xlu0 %v1264, 118
      %v1269 = vpop.permute.xlu0 %1268
      %1270 = vrot.lane.b32.xlu0 %v1265, 118
      %v1271 = vpop.permute.xlu0 %1270
      %v1274 = vmax.f32 %v1244, %v1269
      %v1275 = vmax.f32 %v1245, %v1271
      %1276 = vrot.lane.b32.xlu0 %v1264, 127
      %v1277 = vpop.permute.xlu0 %1276
      %1278 = vrot.lane.b32.xlu0 %v1265, 127
      %v1279 = vpop.permute.xlu0 %1278
      %v1282 = vmax.f32 %v1264, %v1277
      %v1283 = vmax.f32 %v1265, %v1279
      %1286 = vrot.lane.b32.xlu0 %v1282, 111
      %v1287 = vpop.permute.xlu0 %1286
      %1288 = vrot.lane.b32.xlu0 %v1283, 111
      %v1289 = vpop.permute.xlu0 %1288
      %v1292 = vmax.f32 %v1274, %v1287
      %v1293 = vmax.f32 %v1275, %v1289
      %vm1294 = vcmask 523264
      %v1296 = vsel %vm1294, %v1292, 0
      %v1299 = vsel %vm1294, %v1293, 0
      %1301 = vmatprep.subr.mxu0 0.0
      %1302 = vmatpush1.msra.mxu0 0.0
      %1303 = vmatprep.subr.mxu0 0.0
      %1304 = vmatpush1.msra.mxu0 0.0
      %1305 = vmatprep.subr.mxu0 0.0
      %1306 = vmatpush1.msra.mxu0 0.0
      %1307 = vmatprep.subr.mxu0 0.0
      %1308 = vmatpush1.msra.mxu0 0.0
      %1309 = vmatprep.subr.mxu0 0.0
      %1310 = vmatpush1.msra.mxu0 0.0
      %1311 = vmatprep.subr.mxu0 0.0
      %1312 = vmatpush1.msra.mxu0 0.0
      %1313 = vmatprep.subr.mxu0 0.0
      %1314 = vmatpush1.msra.mxu0 0.0
      %1315 = vmatprep.subr.mxu0 0.0
      %1316 = vmatpush1.msra.mxu0 0.0
      %1317 = vmatprep.subr.mxu0 0.0
      %1318 = vmatpush1.msra.mxu0 %v1253
      %1319 = vmatprep.subr.mxu0 0.0
      %1320 = vmatpush1.msra.mxu0 %v1252
      %1321 = vmatprep.subr.mxu0 0.0
      %1322 = vmatpush1.msra.mxu0 %v1251
      %1323 = vmatprep.subr.mxu0 0.0
      %1324 = vmatpush1.msra.mxu0 %v1250
      %1325 = vmatprep.subr.mxu0 0.0
      %1326 = vmatpush1.msra.mxu0 %v1249
      %1327 = vmatprep.subr.mxu0 0.0
      %1328 = vmatpush1.msra.mxu0 %v1248
      %1329 = vmatprep.subr.mxu0 0.0
      %1330 = vmatpush1.msra.mxu0 %v1247
      %1331 = vmatprep.subr.mxu0 0.0
      %1332 = vmatpush1.msra.mxu0 %v1246
      %1333 = vmatprep.subr.mxu0 0.0
      %1334 = vmatpush2.msra.mxu0 0.0
      %1335 = vmatprep.subr.mxu0 0.0
      %1336 = vmatpush2.msra.mxu0 0.0
      %1337 = vmatprep.subr.mxu0 0.0
      %1338 = vmatpush2.msra.mxu0 0.0
      %1339 = vmatprep.subr.mxu0 0.0
      %1340 = vmatpush2.msra.mxu0 0.0
      %1341 = vmatprep.subr.mxu0 0.0
      %1342 = vmatpush2.msra.mxu0 0.0
      %1343 = vmatprep.subr.mxu0 0.0
      %1344 = vmatpush2.msra.mxu0 0.0
      %1345 = vmatprep.subr.mxu0 0.0
      %1346 = vmatpush2.msra.mxu0 0.0
      %1347 = vmatprep.subr.mxu0 0.0
      %1348 = vmatpush2.msra.mxu0 0.0
      %1349 = vmatprep.subr.mxu0 0.0
      %1350 = vmatpush2.msra.mxu0 0.0
      %1351 = vmatprep.subr.mxu0 0.0
      %1352 = vmatpush2.msra.mxu0 0.0
      %1353 = vmatprep.subr.mxu0 0.0
      %1354 = vmatpush2.msra.mxu0 0.0
      %1355 = vmatprep.subr.mxu0 0.0
      %1356 = vmatpush2.msra.mxu0 0.0
      %1357 = vmatprep.subr.mxu0 0.0
      %1358 = vmatpush2.msra.mxu0 0.0
      %1359 = vmatprep.subr.mxu0 0.0
      %1360 = vmatpush2.msra.mxu0 0.0
      %1361 = vmatprep.subr.mxu0 0.0
      %1362 = vmatpush2.msra.mxu0 0.0
      %1363 = vmatprep.subr.mxu0 0.0
      %1364 = vmatpush2.msra.mxu0 0.0
      %1365 = vmatprep.mubr.f32.mxu0 0.0
      %1366 = vmatmul.mubr.f32.gmra.mxu0 %v1296
      %v1367 = vpop.f32.mrf.mxu0
      %v1368 = vadd.f32 0.0, %v1367
      %v1369 = vpop.f32.mrf.mxu0
      %1370 = vmatprep.mubr.f32.mxu0 0.0
      %1371 = vmatmul.mubr.f32.gmra.mxu0 %v1299
      %v1372 = vpop.f32.mrf.mxu0
      %v1373 = vadd.f32 0.0, %v1372
      %v1374 = vpop.f32.mrf.mxu0
      %1375 = vdwg.mxu0
      %v1376 = vld [vmem:[%s5] sm:$0xff]
      %v1377 = vld [vmem:[%s5 + $0x8] sm:$0xff]
      %v1378 = vld [vmem:[%s5 + $0x10] sm:$0xff]
      %v1379 = vld [vmem:[%s5 + $0x18] sm:$0xff]
      %v1380 = vld [vmem:[%s5 + $0x20] sm:$0xff]
      %v1381 = vld [vmem:[%s5 + $0x28] sm:$0xff]
      %v1382 = vld [vmem:[%s5 + $0x30] sm:$0xff]
      %v1383 = vld [vmem:[%s5 + $0x38] sm:$0xff]
      %v1384 = vld [vmem:[%s6] sm:$0xff]
      %v1385 = vld [vmem:[%s6 + $0x8] sm:$0xff]
      %v1386 = vld [vmem:[%s6 + $0x10] sm:$0xff]
      %v1387 = vld [vmem:[%s6 + $0x18] sm:$0xff]
      %1390 = vrot.lane.b32.xlu0 %v1368, 5
      %v1391 = vpop.permute.xlu0 %1390
      %1392 = vrot.lane.b32.xlu0 %v1373, 5
      %v1393 = vpop.permute.xlu0 %1392
      %vm1396 = vcmask 39936
      %v1397 = vsel %vm1396, 0.0, %v1391
      %v1398 = vsel %vm1396, 0.0, %v1393
      %vm1399 = vcmask 171008
      %v1400 = vsel %vm1399, %v1397, 0.0
      %v1401 = vsel %vm1399, %v1398, 0.0
      %v1402 = vsel %vm668, 1, 0
      %vm1403 = vcmp.eq.s32.totalorder %v1402, 1
      %v1404 = vsel %vm1403, %v1400, 0.0
      %v1405 = vsel %vm1403, %v1401, 0.0
      %v1406 = vsel %vm669, 1, 0
      %vm1407 = vcmp.eq.s32.totalorder %v1406, 1
      %1410 = vrot.lane.b32.xlu0 %v1400, 126
      %v1411 = vpop.permute.xlu0 %1410
      %1412 = vrot.lane.b32.xlu0 %v1401, 126
      %v1413 = vpop.permute.xlu0 %1412
      %v1416 = vsel %vm1407, %v1411, 0.0
      %v1417 = vsel %vm1407, %v1413, 0.0
      %1418 = vrot.lane.b32.xlu0 %v1400, 124
      %v1419 = vpop.permute.xlu0 %1418
      %1420 = vrot.lane.b32.xlu0 %v1401, 124
      %v1421 = vpop.permute.xlu0 %1420
      %v1424 = vsel %vm1403, %v1419, 0.0
      %v1425 = vsel %vm1403, %v1421, 0.0
      %1426 = vrot.lane.b32.xlu0 %v1400, 122
      %v1427 = vpop.permute.xlu0 %1426
      %1428 = vrot.lane.b32.xlu0 %v1401, 122
      %v1429 = vpop.permute.xlu0 %1428
      %v1432 = vsel %vm1407, %v1427, 0.0
      %v1433 = vsel %vm1407, %v1429, 0.0
      %1434 = vrot.lane.b32.xlu0 %v1400, 120
      %v1435 = vpop.permute.xlu0 %1434
      %1436 = vrot.lane.b32.xlu0 %v1401, 120
      %v1437 = vpop.permute.xlu0 %1436
      %v1440 = vsel %vm1403, %v1435, 0.0
      %v1441 = vsel %vm1403, %v1437, 0.0
      %1442 = vrot.lane.b32.xlu0 %v1400, 118
      %v1443 = vpop.permute.xlu0 %1442
      %1444 = vrot.lane.b32.xlu0 %v1401, 118
      %v1445 = vpop.permute.xlu0 %1444
      %v1448 = vsel %vm1407, %v1443, 0.0
      %v1449 = vsel %vm1407, %v1445, 0.0
      %1450 = vrot.lane.b32.xlu0 %v1400, 127
      %v1451 = vpop.permute.xlu0 %1450
      %1452 = vrot.lane.b32.xlu0 %v1401, 127
      %v1453 = vpop.permute.xlu0 %1452
      %1456 = vrot.lane.b32.xlu0 %v1400, 123
      %v1457 = vpop.permute.xlu0 %1456
      %1458 = vrot.lane.b32.xlu0 %v1401, 123
      %v1459 = vpop.permute.xlu0 %1458
      %1462 = vrot.lane.b32.xlu0 %v1400, 119
      %v1463 = vpop.permute.xlu0 %1462
      %1464 = vrot.lane.b32.xlu0 %v1401, 119
      %v1465 = vpop.permute.xlu0 %1464
      %1469 = vset.pattern.permute.xlu0 0
      %1470 = vperm.xlu0 %1469, %v1384
      %v1471 = vpop.permute.xlu0 %1470
      %1474 = vset.pattern.permute.xlu0 0
      %1475 = vperm.xlu0 %1474, %v1385
      %v1476 = vpop.permute.xlu0 %1475
      %1479 = vset.pattern.permute.xlu0 0
      %1480 = vperm.xlu0 %1479, %v1386
      %v1481 = vpop.permute.xlu0 %1480
      %1484 = vset.pattern.permute.xlu0 0
      %1485 = vperm.xlu0 %1484, %v1387
      %v1486 = vpop.permute.xlu0 %1485
      %vm1488 = vcmask 130048
      %v1490 = vsel %vm1488, %v1377, 0
      %v1493 = vsel %vm1488, %v1379, 0
      %v1496 = vsel %vm1488, %v1381, 0
      %v1499 = vsel %vm1488, %v1383, 0
      %1501 = vmatprep.subr.mxu0 0.0
      %1502 = vmatpush1.msra.mxu0 %v1465
      %1503 = vmatprep.subr.mxu0 0.0
      %1504 = vmatpush1.msra.mxu0 %v1463
      %1505 = vmatprep.subr.mxu0 0.0
      %1506 = vmatpush1.msra.mxu0 %v1441
      %1507 = vmatprep.subr.mxu0 0.0
      %1508 = vmatpush1.msra.mxu0 %v1440
      %1509 = vmatprep.subr.mxu0 0.0
      %1510 = vmatpush1.msra.mxu0 %v1433
      %1511 = vmatprep.subr.mxu0 0.0
      %1512 = vmatpush1.msra.mxu0 %v1432
      %1513 = vmatprep.subr.mxu0 0.0
      %1514 = vmatpush1.msra.mxu0 %v1459
      %1515 = vmatprep.subr.mxu0 0.0
      %1516 = vmatpush1.msra.mxu0 %v1457
      %1517 = vmatprep.subr.mxu0 0.0
      %1518 = vmatpush1.msra.mxu0 %v1425
      %1519 = vmatprep.subr.mxu0 0.0
      %1520 = vmatpush1.msra.mxu0 %v1424
      %1521 = vmatprep.subr.mxu0 0.0
      %1522 = vmatpush1.msra.mxu0 %v1417
      %1523 = vmatprep.subr.mxu0 0.0
      %1524 = vmatpush1.msra.mxu0 %v1416
      %1525 = vmatprep.subr.mxu0 0.0
      %1526 = vmatpush1.msra.mxu0 %v1453
      %1527 = vmatprep.subr.mxu0 0.0
      %1528 = vmatpush1.msra.mxu0 %v1451
      %1529 = vmatprep.subr.mxu0 0.0
      %1530 = vmatpush1.msra.mxu0 %v1405
      %1531 = vmatprep.subr.mxu0 0.0
      %1532 = vmatpush1.msra.mxu0 %v1404
      %1533 = vmatprep.subr.mxu0 0.0
      %1534 = vmatpush2.msra.mxu0 0.0
      %1535 = vmatprep.subr.mxu0 0.0
      %1536 = vmatpush2.msra.mxu0 0.0
      %1537 = vmatprep.subr.mxu0 0.0
      %1538 = vmatpush2.msra.mxu0 0.0
      %1539 = vmatprep.subr.mxu0 0.0
      %1540 = vmatpush2.msra.mxu0 0.0
      %1541 = vmatprep.subr.mxu0 0.0
      %1542 = vmatpush2.msra.mxu0 0.0
      %1543 = vmatprep.subr.mxu0 0.0
      %1544 = vmatpush2.msra.mxu0 0.0
      %1545 = vmatprep.subr.mxu0 0.0
      %1546 = vmatpush2.msra.mxu0 0.0
      %1547 = vmatprep.subr.mxu0 0.0
      %1548 = vmatpush2.msra.mxu0 0.0
      %1549 = vmatprep.subr.mxu0 0.0
      %1550 = vmatpush2.msra.mxu0 0.0
      %1551 = vmatprep.subr.mxu0 0.0
      %1552 = vmatpush2.msra.mxu0 0.0
      %1553 = vmatprep.subr.mxu0 0.0
      %1554 = vmatpush2.msra.mxu0 0.0
      %1555 = vmatprep.subr.mxu0 0.0
      %1556 = vmatpush2.msra.mxu0 0.0
      %1557 = vmatprep.subr.mxu0 0.0
      %1558 = vmatpush2.msra.mxu0 0.0
      %1559 = vmatprep.subr.mxu0 0.0
      %1560 = vmatpush2.msra.mxu0 0.0
      %1561 = vmatprep.subr.mxu0 0.0
      %1562 = vmatpush2.msra.mxu0 %v1449
      %1563 = vmatprep.subr.mxu0 0.0
      %1564 = vmatpush2.msra.mxu0 %v1448
      %1565 = vmatprep.mubr.f32.mxu0 %v1490
      %1566 = vmatmul.mubr.f32.gmra.mxu0 %v1376
      %v1567 = vpop.f32.mrf.mxu0
      %v1568 = vadd.f32 %v1471, %v1567
      %v1569 = vpop.f32.mrf.mxu0
      %1570 = vmatprep.mubr.f32.mxu0 %v1493
      %1571 = vmatmul.mubr.f32.gmra.mxu0 %v1378
      %v1572 = vpop.f32.mrf.mxu0
      %v1573 = vadd.f32 %v1476, %v1572
      %v1574 = vpop.f32.mrf.mxu0
      %1575 = vmatprep.mubr.f32.mxu0 %v1496
      %1576 = vmatmul.mubr.f32.gmra.mxu0 %v1380
      %v1577 = vpop.f32.mrf.mxu0
      %v1578 = vadd.f32 %v1481, %v1577
      %v1579 = vpop.f32.mrf.mxu0
      %1580 = vmatprep.mubr.f32.mxu0 %v1499
      %1581 = vmatmul.mubr.f32.gmra.mxu0 %v1382
      %v1582 = vpop.f32.mrf.mxu0
      %v1583 = vadd.f32 %v1486, %v1582
      %v1584 = vpop.f32.mrf.mxu0
      %1585 = vdwg.mxu0
      %v1586 = vmax.f32 %v1568, 0.0
      %v1587 = vmax.f32 %v1573, 0.0
      %v1588 = vmax.f32 %v1578, 0.0
      %v1589 = vmax.f32 %v1583, 0.0
      %v1590 = vld [vmem:[%s19] sm:$0xff]
      %v1591 = vld [vmem:[%s19 + $0x8] sm:$0xff]
      %1596 = vrot.lane.b32.xlu0 %v1586, 5
      %v1597 = vpop.permute.xlu0 %1596
      %1598 = vrot.lane.b32.xlu0 %v1587, 5
      %v1599 = vpop.permute.xlu0 %1598
      %1600 = vrot.lane.b32.xlu0 %v1588, 5
      %v1601 = vpop.permute.xlu0 %1600
      %1602 = vrot.lane.b32.xlu0 %v1589, 5
      %v1603 = vpop.permute.xlu0 %1602
      %v1608 = vsel %vm1396, 0.0, %v1597
      %v1609 = vsel %vm1396, 0.0, %v1599
      %v1610 = vsel %vm1396, 0.0, %v1601
      %v1611 = vsel %vm1396, 0.0, %v1603
      %v1612 = vsel %vm1399, %v1608, 0.0
      %v1613 = vsel %vm1399, %v1609, 0.0
      %v1614 = vsel %vm1399, %v1610, 0.0
      %v1615 = vsel %vm1399, %v1611, 0.0
      %1620 = vrot.lane.b32.xlu0 %v1612, 122
      %v1621 = vpop.permute.xlu0 %1620
      %1622 = vrot.lane.b32.xlu0 %v1613, 122
      %v1623 = vpop.permute.xlu0 %1622
      %1624 = vrot.lane.b32.xlu0 %v1614, 122
      %v1625 = vpop.permute.xlu0 %1624
      %1626 = vrot.lane.b32.xlu0 %v1615, 122
      %v1627 = vpop.permute.xlu0 %1626
      %v1632 = vmax.f32 %v1586, %v1621
      %v1633 = vmax.f32 %v1587, %v1623
      %v1634 = vmax.f32 %v1588, %v1625
      %v1635 = vmax.f32 %v1589, %v1627
      %1636 = vrot.lane.b32.xlu0 %v1612, 127
      %v1637 = vpop.permute.xlu0 %1636
      %1638 = vrot.lane.b32.xlu0 %v1613, 127
      %v1639 = vpop.permute.xlu0 %1638
      %1640 = vrot.lane.b32.xlu0 %v1614, 127
      %v1641 = vpop.permute.xlu0 %1640
      %1642 = vrot.lane.b32.xlu0 %v1615, 127
      %v1643 = vpop.permute.xlu0 %1642
      %v1648 = vmax.f32 %v1612, %v1637
      %v1649 = vmax.f32 %v1613, %v1639
      %v1650 = vmax.f32 %v1614, %v1641
      %v1651 = vmax.f32 %v1615, %v1643
      %1656 = vrot.lane.b32.xlu0 %v1648, 119
      %v1657 = vpop.permute.xlu0 %1656
      %1658 = vrot.lane.b32.xlu0 %v1649, 119
      %v1659 = vpop.permute.xlu0 %1658
      %1660 = vrot.lane.b32.xlu0 %v1650, 119
      %v1661 = vpop.permute.xlu0 %1660
      %1662 = vrot.lane.b32.xlu0 %v1651, 119
      %v1663 = vpop.permute.xlu0 %1662
      %v1668 = vmax.f32 %v1632, %v1657
      %v1669 = vmax.f32 %v1633, %v1659
      %v1670 = vmax.f32 %v1634, %v1661
      %v1671 = vmax.f32 %v1635, %v1663
      %v1673 = vsel %vm1488, %v1668, 0
      %v1676 = vsel %vm1488, %v1669, 0
      %v1679 = vsel %vm1488, %v1670, 0
      %v1682 = vsel %vm1488, %v1671, 0
      %1684 = vmatprep.subr.mxu0 0.0
      %1685 = vmatpush1.msra.mxu0 0.0
      %1686 = vmatprep.subr.mxu0 0.0
      %1687 = vmatpush1.msra.mxu0 0.0
      %1688 = vmatprep.subr.mxu0 0.0
      %1689 = vmatpush1.msra.mxu0 0.0
      %1690 = vmatprep.subr.mxu0 0.0
      %1691 = vmatpush1.msra.mxu0 0.0
      %1692 = vmatprep.subr.mxu0 0.0
      %1693 = vmatpush1.msra.mxu0 0.0
      %1694 = vmatprep.subr.mxu0 0.0
      %1695 = vmatpush1.msra.mxu0 0.0
      %1696 = vmatprep.subr.mxu0 0.0
      %1697 = vmatpush1.msra.mxu0 0.0
      %1698 = vmatprep.subr.mxu0 0.0
      %1699 = vmatpush1.msra.mxu0 0.0
      %1700 = vmatprep.subr.mxu0 0.0
      %1701 = vmatpush1.msra.mxu0 0.0
      %1702 = vmatprep.subr.mxu0 0.0
      %1703 = vmatpush1.msra.mxu0 0.0
      %1704 = vmatprep.subr.mxu0 0.0
      %1705 = vmatpush1.msra.mxu0 0.0
      %1706 = vmatprep.subr.mxu0 0.0
      %1707 = vmatpush1.msra.mxu0 0.0
      %1708 = vmatprep.subr.mxu0 0.0
      %1709 = vmatpush1.msra.mxu0 0.0
      %1710 = vmatprep.subr.mxu0 0.0
      %1711 = vmatpush1.msra.mxu0 0.0
      %1712 = vmatprep.subr.mxu0 0.0
      %1713 = vmatpush1.msra.mxu0 %v1591
      %1714 = vmatprep.subr.mxu0 0.0
      %1715 = vmatpush1.msra.mxu0 %v1590
      %1716 = vmatprep.subr.mxu0 0.0
      %1717 = vmatpush2.msra.mxu0 0.0
      %1718 = vmatprep.subr.mxu0 0.0
      %1719 = vmatpush2.msra.mxu0 0.0
      %1720 = vmatprep.subr.mxu0 0.0
      %1721 = vmatpush2.msra.mxu0 0.0
      %1722 = vmatprep.subr.mxu0 0.0
      %1723 = vmatpush2.msra.mxu0 0.0
      %1724 = vmatprep.subr.mxu0 0.0
      %1725 = vmatpush2.msra.mxu0 0.0
      %1726 = vmatprep.subr.mxu0 0.0
      %1727 = vmatpush2.msra.mxu0 0.0
      %1728 = vmatprep.subr.mxu0 0.0
      %1729 = vmatpush2.msra.mxu0 0.0
      %1730 = vmatprep.subr.mxu0 0.0
      %1731 = vmatpush2.msra.mxu0 0.0
      %1732 = vmatprep.subr.mxu0 0.0
      %1733 = vmatpush2.msra.mxu0 0.0
      %1734 = vmatprep.subr.mxu0 0.0
      %1735 = vmatpush2.msra.mxu0 0.0
      %1736 = vmatprep.subr.mxu0 0.0
      %1737 = vmatpush2.msra.mxu0 0.0
      %1738 = vmatprep.subr.mxu0 0.0
      %1739 = vmatpush2.msra.mxu0 0.0
      %1740 = vmatprep.subr.mxu0 0.0
      %1741 = vmatpush2.msra.mxu0 0.0
      %1742 = vmatprep.subr.mxu0 0.0
      %1743 = vmatpush2.msra.mxu0 0.0
      %1744 = vmatprep.subr.mxu0 0.0
      %1745 = vmatpush2.msra.mxu0 0.0
      %1746 = vmatprep.subr.mxu0 0.0
      %1747 = vmatpush2.msra.mxu0 0.0
      %1748 = vmatprep.mubr.f32.mxu0 0.0
      %1749 = vmatmul.mubr.f32.gmra.mxu0 %v1673
      %v1750 = vpop.f32.mrf.mxu0
      %v1751 = vadd.f32 0.0, %v1750
      %v1752 = vpop.f32.mrf.mxu0
      %1753 = vmatprep.mubr.f32.mxu0 0.0
      %1754 = vmatmul.mubr.f32.gmra.mxu0 %v1676
      %v1755 = vpop.f32.mrf.mxu0
      %v1756 = vadd.f32 0.0, %v1755
      %v1757 = vpop.f32.mrf.mxu0
      %1758 = vmatprep.mubr.f32.mxu0 0.0
      %1759 = vmatmul.mubr.f32.gmra.mxu0 %v1679
      %v1760 = vpop.f32.mrf.mxu0
      %v1761 = vadd.f32 0.0, %v1760
      %v1762 = vpop.f32.mrf.mxu0
      %1763 = vmatprep.mubr.f32.mxu0 0.0
      %1764 = vmatmul.mubr.f32.gmra.mxu0 %v1682
      %v1765 = vpop.f32.mrf.mxu0
      %v1766 = vadd.f32 0.0, %v1765
      %v1767 = vpop.f32.mrf.mxu0
      %1768 = vdwg.mxu0
      %v1769 = vld [vmem:[%s20] sm:$0xf]
      %vm1770 = vcmask 31744
      %v1772 = vsel %vm1770, %v1751, 0
      %v1775 = vsel %vm1770, %v1756, 0
      %v1778 = vsel %vm1770, %v1761, 0
      %v1781 = vsel %vm1770, %v1766, 0
      %vm1783 = vcmask 1043456
      %v1785 = vsel %vm1783, %v1769, 0
      %1787 = vmatprep.subr.mxu0 0.0
      %1788 = vmatpush1.msra.mxu0 0.0
      %1789 = vmatprep.subr.mxu0 0.0
      %1790 = vmatpush1.msra.mxu0 0.0
      %1791 = vmatprep.subr.mxu0 0.0
      %1792 = vmatpush1.msra.mxu0 0.0
      %1793 = vmatprep.subr.mxu0 0.0
      %1794 = vmatpush1.msra.mxu0 0.0
      %1795 = vmatprep.subr.mxu0 0.0
      %1796 = vmatpush1.msra.mxu0 0.0
      %1797 = vmatprep.subr.mxu0 0.0
      %1798 = vmatpush1.msra.mxu0 0.0
      %1799 = vmatprep.subr.mxu0 0.0
      %1800 = vmatpush1.msra.mxu0 0.0
      %1801 = vmatprep.subr.mxu0 0.0
      %1802 = vmatpush1.msra.mxu0 0.0
      %1803 = vmatprep.subr.mxu0 0.0
      %1804 = vmatpush1.msra.mxu0 0.0
      %1805 = vmatprep.subr.mxu0 0.0
      %1806 = vmatpush1.msra.mxu0 0.0
      %1807 = vmatprep.subr.mxu0 0.0
      %1808 = vmatpush1.msra.mxu0 0.0
      %1809 = vmatprep.subr.mxu0 0.0
      %1810 = vmatpush1.msra.mxu0 0.0
      %1811 = vmatprep.subr.mxu0 0.0
      %1812 = vmatpush1.msra.mxu0 0.0
      %1813 = vmatprep.subr.mxu0 0.0
      %1814 = vmatpush1.msra.mxu0 0.0
      %1815 = vmatprep.subr.mxu0 0.0
      %1816 = vmatpush1.msra.mxu0 0.0
      %1817 = vmatprep.subr.mxu0 0.0
      %1818 = vmatpush1.msra.mxu0 %v1785
      %1819 = vmatprep.subr.mxu0 0.0
      %1820 = vmatpush2.msra.mxu0 0.0
      %1821 = vmatprep.subr.mxu0 0.0
      %1822 = vmatpush2.msra.mxu0 0.0
      %1823 = vmatprep.subr.mxu0 0.0
      %1824 = vmatpush2.msra.mxu0 0.0
      %1825 = vmatprep.subr.mxu0 0.0
      %1826 = vmatpush2.msra.mxu0 0.0
      %1827 = vmatprep.subr.mxu0 0.0
      %1828 = vmatpush2.msra.mxu0 0.0
      %1829 = vmatprep.subr.mxu0 0.0
      %1830 = vmatpush2.msra.mxu0 0.0
      %1831 = vmatprep.subr.mxu0 0.0
      %1832 = vmatpush2.msra.mxu0 0.0
      %1833 = vmatprep.subr.mxu0 0.0
      %1834 = vmatpush2.msra.mxu0 0.0
      %1835 = vmatprep.subr.mxu0 0.0
      %1836 = vmatpush2.msra.mxu0 0.0
      %1837 = vmatprep.subr.mxu0 0.0
      %1838 = vmatpush2.msra.mxu0 0.0
      %1839 = vmatprep.subr.mxu0 0.0
      %1840 = vmatpush2.msra.mxu0 0.0
      %1841 = vmatprep.subr.mxu0 0.0
      %1842 = vmatpush2.msra.mxu0 0.0
      %1843 = vmatprep.subr.mxu0 0.0
      %1844 = vmatpush2.msra.mxu0 0.0
      %1845 = vmatprep.subr.mxu0 0.0
      %1846 = vmatpush2.msra.mxu0 0.0
      %1847 = vmatprep.subr.mxu0 0.0
      %1848 = vmatpush2.msra.mxu0 0.0
      %1849 = vmatprep.subr.mxu0 0.0
      %1850 = vmatpush2.msra.mxu0 0.0
      %1851 = vmatprep.mubr.f32.mxu0 0.0
      %1852 = vmatmul.mubr.f32.gmra.mxu0 %v1772
      %v1853 = vpop.f32.mrf.mxu0
      %v1854 = vadd.f32 0.0, %v1853
      %v1855 = vpop.f32.mrf.mxu0
      %1856 = vmatprep.mubr.f32.mxu0 0.0
      %1857 = vmatmul.mubr.f32.gmra.mxu0 %v1775
      %v1858 = vpop.f32.mrf.mxu0
      %v1859 = vadd.f32 0.0, %v1858
      %v1860 = vpop.f32.mrf.mxu0
      %1861 = vmatprep.mubr.f32.mxu0 0.0
      %1862 = vmatmul.mubr.f32.gmra.mxu0 %v1778
      %v1863 = vpop.f32.mrf.mxu0
      %v1864 = vadd.f32 0.0, %v1863
      %v1865 = vpop.f32.mrf.mxu0
      %1866 = vmatprep.mubr.f32.mxu0 0.0
      %1867 = vmatmul.mubr.f32.gmra.mxu0 %v1781
      %v1868 = vpop.f32.mrf.mxu0
      %v1869 = vadd.f32 0.0, %v1868
      %v1870 = vpop.f32.mrf.mxu0
      %1871 = vdwg.mxu0
      %v1872 = vld [vmem:[%s7] sm:$0xff]
      %v1873 = vld [vmem:[%s7 + $0x8] sm:$0xff]
      %v1874 = vld [vmem:[%s7 + $0x10] sm:$0xff]
      %v1875 = vld [vmem:[%s7 + $0x18] sm:$0xff]
      %v1876 = vld [vmem:[%s7 + $0x20] sm:$0xff]
      %v1877 = vld [vmem:[%s7 + $0x28] sm:$0xff]
      %v1878 = vld [vmem:[%s8] sm:$0xff]
      %v1879 = vld [vmem:[%s8 + $0x8] sm:$0xff]
      %1884 = vrot.lane.b32.xlu0 %v1854, 5
      %v1885 = vpop.permute.xlu0 %1884
      %1886 = vrot.lane.b32.xlu0 %v1859, 5
      %v1887 = vpop.permute.xlu0 %1886
      %1888 = vrot.lane.b32.xlu0 %v1864, 5
      %v1889 = vpop.permute.xlu0 %1888
      %1890 = vrot.lane.b32.xlu0 %v1869, 5
      %v1891 = vpop.permute.xlu0 %1890
      %v1896 = vsel %vm1396, 0.0, %v1885
      %v1897 = vsel %vm1396, 0.0, %v1887
      %v1898 = vsel %vm1396, 0.0, %v1889
      %v1899 = vsel %vm1396, 0.0, %v1891
      %v1900 = vsel %vm1399, %v1896, 0.0
      %v1901 = vsel %vm1399, %v1897, 0.0
      %v1902 = vsel %vm1399, %v1898, 0.0
      %v1903 = vsel %vm1399, %v1899, 0.0
      %v1904 = vsel %vm1403, %v1900, 0.0
      %v1905 = vsel %vm1403, %v1901, 0.0
      %v1906 = vsel %vm1403, %v1902, 0.0
      %v1907 = vsel %vm1403, %v1903, 0.0
      %1912 = vrot.lane.b32.xlu0 %v1900, 126
      %v1913 = vpop.permute.xlu0 %1912
      %1914 = vrot.lane.b32.xlu0 %v1901, 126
      %v1915 = vpop.permute.xlu0 %1914
      %1916 = vrot.lane.b32.xlu0 %v1902, 126
      %v1917 = vpop.permute.xlu0 %1916
      %1918 = vrot.lane.b32.xlu0 %v1903, 126
      %v1919 = vpop.permute.xlu0 %1918
      %v1924 = vsel %vm1407, %v1913, 0.0
      %v1925 = vsel %vm1407, %v1915, 0.0
      %v1926 = vsel %vm1407, %v1917, 0.0
      %v1927 = vsel %vm1407, %v1919, 0.0
      %1928 = vrot.lane.b32.xlu0 %v1900, 124
      %v1929 = vpop.permute.xlu0 %1928
      %1930 = vrot.lane.b32.xlu0 %v1901, 124
      %v1931 = vpop.permute.xlu0 %1930
      %1932 = vrot.lane.b32.xlu0 %v1902, 124
      %v1933 = vpop.permute.xlu0 %1932
      %1934 = vrot.lane.b32.xlu0 %v1903, 124
      %v1935 = vpop.permute.xlu0 %1934
      %v1940 = vsel %vm1403, %v1929, 0.0
      %v1941 = vsel %vm1403, %v1931, 0.0
      %v1942 = vsel %vm1403, %v1933, 0.0
      %v1943 = vsel %vm1403, %v1935, 0.0
      %1944 = vrot.lane.b32.xlu0 %v1900, 122
      %v1945 = vpop.permute.xlu0 %1944
      %1946 = vrot.lane.b32.xlu0 %v1901, 122
      %v1947 = vpop.permute.xlu0 %1946
      %1948 = vrot.lane.b32.xlu0 %v1902, 122
      %v1949 = vpop.permute.xlu0 %1948
      %1950 = vrot.lane.b32.xlu0 %v1903, 122
      %v1951 = vpop.permute.xlu0 %1950
      %v1956 = vsel %vm1407, %v1945, 0.0
      %v1957 = vsel %vm1407, %v1947, 0.0
      %v1958 = vsel %vm1407, %v1949, 0.0
      %v1959 = vsel %vm1407, %v1951, 0.0
      %1960 = vrot.lane.b32.xlu0 %v1900, 120
      %v1961 = vpop.permute.xlu0 %1960
      %1962 = vrot.lane.b32.xlu0 %v1901, 120
      %v1963 = vpop.permute.xlu0 %1962
      %1964 = vrot.lane.b32.xlu0 %v1902, 120
      %v1965 = vpop.permute.xlu0 %1964
      %1966 = vrot.lane.b32.xlu0 %v1903, 120
      %v1967 = vpop.permute.xlu0 %1966
      %v1972 = vsel %vm1403, %v1961, 0.0
      %v1973 = vsel %vm1403, %v1963, 0.0
      %v1974 = vsel %vm1403, %v1965, 0.0
      %v1975 = vsel %vm1403, %v1967, 0.0
      %1976 = vrot.lane.b32.xlu0 %v1900, 118
      %v1977 = vpop.permute.xlu0 %1976
      %1978 = vrot.lane.b32.xlu0 %v1901, 118
      %v1979 = vpop.permute.xlu0 %1978
      %1980 = vrot.lane.b32.xlu0 %v1902, 118
      %v1981 = vpop.permute.xlu0 %1980
      %1982 = vrot.lane.b32.xlu0 %v1903, 118
      %v1983 = vpop.permute.xlu0 %1982
      %v1988 = vsel %vm1407, %v1977, 0.0
      %v1989 = vsel %vm1407, %v1979, 0.0
      %v1990 = vsel %vm1407, %v1981, 0.0
      %v1991 = vsel %vm1407, %v1983, 0.0
      %1992 = vrot.lane.b32.xlu0 %v1900, 127
      %v1993 = vpop.permute.xlu0 %1992
      %1994 = vrot.lane.b32.xlu0 %v1901, 127
      %v1995 = vpop.permute.xlu0 %1994
      %1996 = vrot.lane.b32.xlu0 %v1902, 127
      %v1997 = vpop.permute.xlu0 %1996
      %1998 = vrot.lane.b32.xlu0 %v1903, 127
      %v1999 = vpop.permute.xlu0 %1998
      %2004 = vrot.lane.b32.xlu0 %v1900, 123
      %v2005 = vpop.permute.xlu0 %2004
      %2006 = vrot.lane.b32.xlu0 %v1901, 123
      %v2007 = vpop.permute.xlu0 %2006
      %2008 = vrot.lane.b32.xlu0 %v1902, 123
      %v2009 = vpop.permute.xlu0 %2008
      %2010 = vrot.lane.b32.xlu0 %v1903, 123
      %v2011 = vpop.permute.xlu0 %2010
      %2016 = vrot.lane.b32.xlu0 %v1900, 119
      %v2017 = vpop.permute.xlu0 %2016
      %2018 = vrot.lane.b32.xlu0 %v1901, 119
      %v2019 = vpop.permute.xlu0 %2018
      %2020 = vrot.lane.b32.xlu0 %v1902, 119
      %v2021 = vpop.permute.xlu0 %2020
      %2022 = vrot.lane.b32.xlu0 %v1903, 119
      %v2023 = vpop.permute.xlu0 %2022
      %2029 = vset.pattern.permute.xlu0 0
      %2030 = vperm.xlu0 %2029, %v1878
      %v2031 = vpop.permute.xlu0 %2030
      %2034 = vset.pattern.permute.xlu0 0
      %2035 = vperm.xlu0 %2034, %v1879
      %v2036 = vpop.permute.xlu0 %2035
      %vm2038 = vcmask 261120
      %v2040 = vsel %vm2038, %v1874, 0
      %v2043 = vsel %vm2038, %v1877, 0
      %2045 = vmatprep.subr.mxu0 0.0
      %2046 = vmatpush1.msra.mxu0 %v1943
      %2047 = vmatprep.subr.mxu0 0.0
      %2048 = vmatpush1.msra.mxu0 %v1942
      %2049 = vmatprep.subr.mxu0 0.0
      %2050 = vmatpush1.msra.mxu0 %v1941
      %2051 = vmatprep.subr.mxu0 0.0
      %2052 = vmatpush1.msra.mxu0 %v1940
      %2053 = vmatprep.subr.mxu0 0.0
      %2054 = vmatpush1.msra.mxu0 %v1927
      %2055 = vmatprep.subr.mxu0 0.0
      %2056 = vmatpush1.msra.mxu0 %v1926
      %2057 = vmatprep.subr.mxu0 0.0
      %2058 = vmatpush1.msra.mxu0 %v1925
      %2059 = vmatprep.subr.mxu0 0.0
      %2060 = vmatpush1.msra.mxu0 %v1924
      %2061 = vmatprep.subr.mxu0 0.0
      %2062 = vmatpush1.msra.mxu0 %v1999
      %2063 = vmatprep.subr.mxu0 0.0
      %2064 = vmatpush1.msra.mxu0 %v1997
      %2065 = vmatprep.subr.mxu0 0.0
      %2066 = vmatpush1.msra.mxu0 %v1995
      %2067 = vmatprep.subr.mxu0 0.0
      %2068 = vmatpush1.msra.mxu0 %v1993
      %2069 = vmatprep.subr.mxu0 0.0
      %2070 = vmatpush1.msra.mxu0 %v1907
      %2071 = vmatprep.subr.mxu0 0.0
      %2072 = vmatpush1.msra.mxu0 %v1906
      %2073 = vmatprep.subr.mxu0 0.0
      %2074 = vmatpush1.msra.mxu0 %v1905
      %2075 = vmatprep.subr.mxu0 0.0
      %2076 = vmatpush1.msra.mxu0 %v1904
      %2077 = vmatprep.subr.mxu0 0.0
      %2078 = vmatpush2.msra.mxu0 %v2023
      %2079 = vmatprep.subr.mxu0 0.0
      %2080 = vmatpush2.msra.mxu0 %v2021
      %2081 = vmatprep.subr.mxu0 0.0
      %2082 = vmatpush2.msra.mxu0 %v2019
      %2083 = vmatprep.subr.mxu0 0.0
      %2084 = vmatpush2.msra.mxu0 %v2017
      %2085 = vmatprep.subr.mxu0 0.0
      %2086 = vmatpush2.msra.mxu0 %v1975
      %2087 = vmatprep.subr.mxu0 0.0
      %2088 = vmatpush2.msra.mxu0 %v1974
      %2089 = vmatprep.subr.mxu0 0.0
      %2090 = vmatpush2.msra.mxu0 %v1973
      %2091 = vmatprep.subr.mxu0 0.0
      %2092 = vmatpush2.msra.mxu0 %v1972
      %2093 = vmatprep.subr.mxu0 0.0
      %2094 = vmatpush2.msra.mxu0 %v1959
      %2095 = vmatprep.subr.mxu0 0.0
      %2096 = vmatpush2.msra.mxu0 %v1958
      %2097 = vmatprep.subr.mxu0 0.0
      %2098 = vmatpush2.msra.mxu0 %v1957
      %2099 = vmatprep.subr.mxu0 0.0
      %2100 = vmatpush2.msra.mxu0 %v1956
      %2101 = vmatprep.subr.mxu0 0.0
      %2102 = vmatpush2.msra.mxu0 %v2011
      %2103 = vmatprep.subr.mxu0 0.0
      %2104 = vmatpush2.msra.mxu0 %v2009
      %2105 = vmatprep.subr.mxu0 0.0
      %2106 = vmatpush2.msra.mxu0 %v2007
      %2107 = vmatprep.subr.mxu0 0.0
      %2108 = vmatpush2.msra.mxu0 %v2005
      %2109 = vmatprep.mubr.f32.mxu0 %v1873
      %2110 = vmatmul.mubr.f32.gmra.mxu0 %v1872
      %v2111 = vpop.f32.mrf.mxu0
      %v2112 = vadd.f32 %v2031, %v2111
      %v2113 = vpop.f32.mrf.mxu0
      %2114 = vmatprep.mubr.f32.mxu0 %v1876
      %2115 = vmatmul.mubr.f32.gmra.mxu0 %v1875
      %v2116 = vpop.f32.mrf.mxu0
      %v2117 = vadd.f32 %v2036, %v2116
      %v2118 = vpop.f32.mrf.mxu0
      %2119 = vdwg.mxu0
      %2120 = vmatprep.subr.mxu0 0.0
      %2121 = vmatpush1.msra.mxu0 0.0
      %2122 = vmatprep.subr.mxu0 0.0
      %2123 = vmatpush1.msra.mxu0 0.0
      %2124 = vmatprep.subr.mxu0 0.0
      %2125 = vmatpush1.msra.mxu0 0.0
      %2126 = vmatprep.subr.mxu0 0.0
      %2127 = vmatpush1.msra.mxu0 0.0
      %2128 = vmatprep.subr.mxu0 0.0
      %2129 = vmatpush1.msra.mxu0 0.0
      %2130 = vmatprep.subr.mxu0 0.0
      %2131 = vmatpush1.msra.mxu0 0.0
      %2132 = vmatprep.subr.mxu0 0.0
      %2133 = vmatpush1.msra.mxu0 0.0
      %2134 = vmatprep.subr.mxu0 0.0
      %2135 = vmatpush1.msra.mxu0 0.0
      %2136 = vmatprep.subr.mxu0 0.0
      %2137 = vmatpush1.msra.mxu0 0.0
      %2138 = vmatprep.subr.mxu0 0.0
      %2139 = vmatpush1.msra.mxu0 0.0
      %2140 = vmatprep.subr.mxu0 0.0
      %2141 = vmatpush1.msra.mxu0 0.0
      %2142 = vmatprep.subr.mxu0 0.0
      %2143 = vmatpush1.msra.mxu0 0.0
      %2144 = vmatprep.subr.mxu0 0.0
      %2145 = vmatpush1.msra.mxu0 %v1991
      %2146 = vmatprep.subr.mxu0 0.0
      %2147 = vmatpush1.msra.mxu0 %v1990
      %2148 = vmatprep.subr.mxu0 0.0
      %2149 = vmatpush1.msra.mxu0 %v1989
      %2150 = vmatprep.subr.mxu0 0.0
      %2151 = vmatpush1.msra.mxu0 %v1988
      %2152 = vmatprep.subr.mxu0 0.0
      %2153 = vmatpush2.msra.mxu0 0.0
      %2154 = vmatprep.subr.mxu0 0.0
      %2155 = vmatpush2.msra.mxu0 0.0
      %2156 = vmatprep.subr.mxu0 0.0
      %2157 = vmatpush2.msra.mxu0 0.0
      %2158 = vmatprep.subr.mxu0 0.0
      %2159 = vmatpush2.msra.mxu0 0.0
      %2160 = vmatprep.subr.mxu0 0.0
      %2161 = vmatpush2.msra.mxu0 0.0
      %2162 = vmatprep.subr.mxu0 0.0
      %2163 = vmatpush2.msra.mxu0 0.0
      %2164 = vmatprep.subr.mxu0 0.0
      %2165 = vmatpush2.msra.mxu0 0.0
      %2166 = vmatprep.subr.mxu0 0.0
      %2167 = vmatpush2.msra.mxu0 0.0
      %2168 = vmatprep.subr.mxu0 0.0
      %2169 = vmatpush2.msra.mxu0 0.0
      %2170 = vmatprep.subr.mxu0 0.0
      %2171 = vmatpush2.msra.mxu0 0.0
      %2172 = vmatprep.subr.mxu0 0.0
      %2173 = vmatpush2.msra.mxu0 0.0
      %2174 = vmatprep.subr.mxu0 0.0
      %2175 = vmatpush2.msra.mxu0 0.0
      %2176 = vmatprep.subr.mxu0 0.0
      %2177 = vmatpush2.msra.mxu0 0.0
      %2178 = vmatprep.subr.mxu0 0.0
      %2179 = vmatpush2.msra.mxu0 0.0
      %2180 = vmatprep.subr.mxu0 0.0
      %2181 = vmatpush2.msra.mxu0 0.0
      %2182 = vmatprep.subr.mxu0 0.0
      %2183 = vmatpush2.msra.mxu0 0.0
      %2184 = vmatprep.mubr.f32.mxu0 0.0
      %2185 = vmatmul.mubr.f32.gmra.mxu0 %v2040
      %v2186 = vpop.f32.mrf.mxu0
      %v2187 = vadd.f32 %v2112, %v2186
      %v2188 = vpop.f32.mrf.mxu0
      %2189 = vmatprep.mubr.f32.mxu0 0.0
      %2190 = vmatmul.mubr.f32.gmra.mxu0 %v2043
      %v2191 = vpop.f32.mrf.mxu0
      %v2192 = vadd.f32 %v2117, %v2191
      %v2193 = vpop.f32.mrf.mxu0
      %2194 = vdwg.mxu0
      %v2195 = vmax.f32 %v2187, 0.0
      %v2196 = vmax.f32 %v2192, 0.0
      %v2197 = vld [vmem:[%s18] sm:$0xff]
      %v2198 = vld [vmem:[%s18 + $0x8] sm:$0xff]
      %v2200 = vsel %vm1488, %v2195, 0
      %v2203 = vsel %vm1488, %v2196, 0
      %v2205 = vsel %vm1488, %v1586, 0
      %v2207 = vsel %vm1488, %v1587, 0
      %v2209 = vsel %vm1488, %v1588, 0
      %v2211 = vsel %vm1488, %v1589, 0
      %2213 = vmatprep.subr.mxu0 0.0
      %2214 = vmatpush1.msra.mxu0 0.0
      %2215 = vmatprep.subr.mxu0 0.0
      %2216 = vmatpush1.msra.mxu0 0.0
      %2217 = vmatprep.subr.mxu0 0.0
      %2218 = vmatpush1.msra.mxu0 0.0
      %2219 = vmatprep.subr.mxu0 0.0
      %2220 = vmatpush1.msra.mxu0 0.0
      %2221 = vmatprep.subr.mxu0 0.0
      %2222 = vmatpush1.msra.mxu0 0.0
      %2223 = vmatprep.subr.mxu0 0.0
      %2224 = vmatpush1.msra.mxu0 0.0
      %2225 = vmatprep.subr.mxu0 0.0
      %2226 = vmatpush1.msra.mxu0 0.0
      %2227 = vmatprep.subr.mxu0 0.0
      %2228 = vmatpush1.msra.mxu0 0.0
      %2229 = vmatprep.subr.mxu0 0.0
      %2230 = vmatpush1.msra.mxu0 0.0
      %2231 = vmatprep.subr.mxu0 0.0
      %2232 = vmatpush1.msra.mxu0 0.0
      %2233 = vmatprep.subr.mxu0 0.0
      %2234 = vmatpush1.msra.mxu0 0.0
      %2235 = vmatprep.subr.mxu0 0.0
      %2236 = vmatpush1.msra.mxu0 0.0
      %2237 = vmatprep.subr.mxu0 0.0
      %2238 = vmatpush1.msra.mxu0 0.0
      %2239 = vmatprep.subr.mxu0 0.0
      %2240 = vmatpush1.msra.mxu0 0.0
      %2241 = vmatprep.subr.mxu0 0.0
      %2242 = vmatpush1.msra.mxu0 %v2198
      %2243 = vmatprep.subr.mxu0 0.0
      %2244 = vmatpush1.msra.mxu0 %v2197
      %2245 = vmatprep.subr.mxu0 0.0
      %2246 = vmatpush2.msra.mxu0 0.0
      %2247 = vmatprep.subr.mxu0 0.0
      %2248 = vmatpush2.msra.mxu0 0.0
      %2249 = vmatprep.subr.mxu0 0.0
      %2250 = vmatpush2.msra.mxu0 0.0
      %2251 = vmatprep.subr.mxu0 0.0
      %2252 = vmatpush2.msra.mxu0 0.0
      %2253 = vmatprep.subr.mxu0 0.0
      %2254 = vmatpush2.msra.mxu0 0.0
      %2255 = vmatprep.subr.mxu0 0.0
      %2256 = vmatpush2.msra.mxu0 0.0
      %2257 = vmatprep.subr.mxu0 0.0
      %2258 = vmatpush2.msra.mxu0 0.0
      %2259 = vmatprep.subr.mxu0 0.0
      %2260 = vmatpush2.msra.mxu0 0.0
      %2261 = vmatprep.subr.mxu0 0.0
      %2262 = vmatpush2.msra.mxu0 0.0
      %2263 = vmatprep.subr.mxu0 0.0
      %2264 = vmatpush2.msra.mxu0 0.0
      %2265 = vmatprep.subr.mxu0 0.0
      %2266 = vmatpush2.msra.mxu0 0.0
      %2267 = vmatprep.subr.mxu0 0.0
      %2268 = vmatpush2.msra.mxu0 0.0
      %2269 = vmatprep.subr.mxu0 0.0
      %2270 = vmatpush2.msra.mxu0 0.0
      %2271 = vmatprep.subr.mxu0 0.0
      %2272 = vmatpush2.msra.mxu0 0.0
      %2273 = vmatprep.subr.mxu0 0.0
      %2274 = vmatpush2.msra.mxu0 0.0
      %2275 = vmatprep.subr.mxu0 0.0
      %2276 = vmatpush2.msra.mxu0 0.0
      %2277 = vmatprep.mubr.f32.mxu0 0.0
      %2278 = vmatmul.mubr.f32.gmra.mxu0 %v2200
      %v2279 = vpop.f32.mrf.mxu0
      %v2280 = vadd.f32 0.0, %v2279
      %v2281 = vpop.f32.mrf.mxu0
      %2282 = vmatprep.mubr.f32.mxu0 0.0
      %2283 = vmatmul.mubr.f32.gmra.mxu0 %v2203
      %v2284 = vpop.f32.mrf.mxu0
      %v2285 = vadd.f32 0.0, %v2284
      %v2286 = vpop.f32.mrf.mxu0
      %2287 = vmatprep.mubr.f32.mxu0 0.0
      %2288 = vmatmul.mubr.f32.gmra.mxu0 %v2205
      %v2289 = vpop.f32.mrf.mxu0
      %v2290 = vadd.f32 0.0, %v2289
      %v2291 = vpop.f32.mrf.mxu0
      %2292 = vmatprep.mubr.f32.mxu0 0.0
      %2293 = vmatmul.mubr.f32.gmra.mxu0 %v2207
      %v2294 = vpop.f32.mrf.mxu0
      %v2295 = vadd.f32 0.0, %v2294
      %v2296 = vpop.f32.mrf.mxu0
      %2297 = vmatprep.mubr.f32.mxu0 0.0
      %2298 = vmatmul.mubr.f32.gmra.mxu0 %v2209
      %v2299 = vpop.f32.mrf.mxu0
      %v2300 = vadd.f32 0.0, %v2299
      %v2301 = vpop.f32.mrf.mxu0
      %2302 = vmatprep.mubr.f32.mxu0 0.0
      %2303 = vmatmul.mubr.f32.gmra.mxu0 %v2211
      %v2304 = vpop.f32.mrf.mxu0
      %v2305 = vadd.f32 0.0, %v2304
      %v2306 = vpop.f32.mrf.mxu0
      %2307 = vdwg.mxu0
      %v2308 = vld [vmem:[%s9] sm:$0xff]
      %v2309 = vld [vmem:[%s9 + $0x8] sm:$0xff]
      %v2310 = vld [vmem:[%s9 + $0x10] sm:$0xff]
      %v2311 = vld [vmem:[%s9 + $0x18] sm:$0xff]
      %v2312 = vld [vmem:[%s10] sm:$0xff]
      %2319 = vrot.lane.b32.xlu0 %v2280, 9
      %v2320 = vpop.permute.xlu0 %2319
      %2321 = vrot.lane.b32.xlu0 %v2285, 9
      %v2322 = vpop.permute.xlu0 %2321
      %2323 = vrot.lane.b32.xlu0 %v2290, 9
      %v2324 = vpop.permute.xlu0 %2323
      %2325 = vrot.lane.b32.xlu0 %v2295, 9
      %v2326 = vpop.permute.xlu0 %2325
      %2327 = vrot.lane.b32.xlu0 %v2300, 9
      %v2328 = vpop.permute.xlu0 %2327
      %2329 = vrot.lane.b32.xlu0 %v2305, 9
      %v2330 = vpop.permute.xlu0 %2329
      %v2337 = vsel %vm1113, 0.0, %v2320
      %v2338 = vsel %vm1113, 0.0, %v2322
      %v2339 = vsel %vm1113, 0.0, %v2324
      %v2340 = vsel %vm1113, 0.0, %v2326
      %v2341 = vsel %vm1113, 0.0, %v2328
      %v2342 = vsel %vm1113, 0.0, %v2330
      %v2343 = vsel %vm1115, %v2337, 0.0
      %v2344 = vsel %vm1115, %v2338, 0.0
      %v2345 = vsel %vm1115, %v2339, 0.0
      %v2346 = vsel %vm1115, %v2340, 0.0
      %v2347 = vsel %vm1115, %v2341, 0.0
      %v2348 = vsel %vm1115, %v2342, 0.0
      %v2349 = vsel %vm1118, %v2343, 0.0
      %v2350 = vsel %vm1118, %v2344, 0.0
      %v2351 = vsel %vm1118, %v2345, 0.0
      %v2352 = vsel %vm1118, %v2346, 0.0
      %v2353 = vsel %vm1118, %v2347, 0.0
      %v2354 = vsel %vm1118, %v2348, 0.0
      %2361 = vrot.lane.b32.xlu0 %v2343, 126
      %v2362 = vpop.permute.xlu0 %2361
      %2363 = vrot.lane.b32.xlu0 %v2344, 126
      %v2364 = vpop.permute.xlu0 %2363
      %2365 = vrot.lane.b32.xlu0 %v2345, 126
      %v2366 = vpop.permute.xlu0 %2365
      %2367 = vrot.lane.b32.xlu0 %v2346, 126
      %v2368 = vpop.permute.xlu0 %2367
      %2369 = vrot.lane.b32.xlu0 %v2347, 126
      %v2370 = vpop.permute.xlu0 %2369
      %2371 = vrot.lane.b32.xlu0 %v2348, 126
      %v2372 = vpop.permute.xlu0 %2371
      %v2379 = vsel %vm1121, %v2362, 0.0
      %v2380 = vsel %vm1121, %v2364, 0.0
      %v2381 = vsel %vm1121, %v2366, 0.0
      %v2382 = vsel %vm1121, %v2368, 0.0
      %v2383 = vsel %vm1121, %v2370, 0.0
      %v2384 = vsel %vm1121, %v2372, 0.0
      %2385 = vrot.lane.b32.xlu0 %v2343, 120
      %v2386 = vpop.permute.xlu0 %2385
      %2387 = vrot.lane.b32.xlu0 %v2344, 120
      %v2388 = vpop.permute.xlu0 %2387
      %2389 = vrot.lane.b32.xlu0 %v2345, 120
      %v2390 = vpop.permute.xlu0 %2389
      %2391 = vrot.lane.b32.xlu0 %v2346, 120
      %v2392 = vpop.permute.xlu0 %2391
      %2393 = vrot.lane.b32.xlu0 %v2347, 120
      %v2394 = vpop.permute.xlu0 %2393
      %2395 = vrot.lane.b32.xlu0 %v2348, 120
      %v2396 = vpop.permute.xlu0 %2395
      %v2403 = vsel %vm1118, %v2386, 0.0
      %v2404 = vsel %vm1118, %v2388, 0.0
      %v2405 = vsel %vm1118, %v2390, 0.0
      %v2406 = vsel %vm1118, %v2392, 0.0
      %v2407 = vsel %vm1118, %v2394, 0.0
      %v2408 = vsel %vm1118, %v2396, 0.0
      %2409 = vrot.lane.b32.xlu0 %v2343, 118
      %v2410 = vpop.permute.xlu0 %2409
      %2411 = vrot.lane.b32.xlu0 %v2344, 118
      %v2412 = vpop.permute.xlu0 %2411
      %2413 = vrot.lane.b32.xlu0 %v2345, 118
      %v2414 = vpop.permute.xlu0 %2413
      %2415 = vrot.lane.b32.xlu0 %v2346, 118
      %v2416 = vpop.permute.xlu0 %2415
      %2417 = vrot.lane.b32.xlu0 %v2347, 118
      %v2418 = vpop.permute.xlu0 %2417
      %2419 = vrot.lane.b32.xlu0 %v2348, 118
      %v2420 = vpop.permute.xlu0 %2419
      %v2427 = vsel %vm1121, %v2410, 0.0
      %v2428 = vsel %vm1121, %v2412, 0.0
      %v2429 = vsel %vm1121, %v2414, 0.0
      %v2430 = vsel %vm1121, %v2416, 0.0
      %v2431 = vsel %vm1121, %v2418, 0.0
      %v2432 = vsel %vm1121, %v2420, 0.0
      %2433 = vrot.lane.b32.xlu0 %v2343, 112
      %v2434 = vpop.permute.xlu0 %2433
      %2435 = vrot.lane.b32.xlu0 %v2344, 112
      %v2436 = vpop.permute.xlu0 %2435
      %2437 = vrot.lane.b32.xlu0 %v2345, 112
      %v2438 = vpop.permute.xlu0 %2437
      %2439 = vrot.lane.b32.xlu0 %v2346, 112
      %v2440 = vpop.permute.xlu0 %2439
      %2441 = vrot.lane.b32.xlu0 %v2347, 112
      %v2442 = vpop.permute.xlu0 %2441
      %2443 = vrot.lane.b32.xlu0 %v2348, 112
      %v2444 = vpop.permute.xlu0 %2443
      %v2451 = vsel %vm1118, %v2434, 0.0
      %v2452 = vsel %vm1118, %v2436, 0.0
      %v2453 = vsel %vm1118, %v2438, 0.0
      %v2454 = vsel %vm1118, %v2440, 0.0
      %v2455 = vsel %vm1118, %v2442, 0.0
      %v2456 = vsel %vm1118, %v2444, 0.0
      %2457 = vrot.lane.b32.xlu0 %v2343, 110
      %v2458 = vpop.permute.xlu0 %2457
      %2459 = vrot.lane.b32.xlu0 %v2344, 110
      %v2460 = vpop.permute.xlu0 %2459
      %2461 = vrot.lane.b32.xlu0 %v2345, 110
      %v2462 = vpop.permute.xlu0 %2461
      %2463 = vrot.lane.b32.xlu0 %v2346, 110
      %v2464 = vpop.permute.xlu0 %2463
      %2465 = vrot.lane.b32.xlu0 %v2347, 110
      %v2466 = vpop.permute.xlu0 %2465
      %2467 = vrot.lane.b32.xlu0 %v2348, 110
      %v2468 = vpop.permute.xlu0 %2467
      %v2475 = vsel %vm1121, %v2458, 0.0
      %v2476 = vsel %vm1121, %v2460, 0.0
      %v2477 = vsel %vm1121, %v2462, 0.0
      %v2478 = vsel %vm1121, %v2464, 0.0
      %v2479 = vsel %vm1121, %v2466, 0.0
      %v2480 = vsel %vm1121, %v2468, 0.0
      %2481 = vrot.lane.b32.xlu0 %v2343, 127
      %v2482 = vpop.permute.xlu0 %2481
      %2483 = vrot.lane.b32.xlu0 %v2344, 127
      %v2484 = vpop.permute.xlu0 %2483
      %2485 = vrot.lane.b32.xlu0 %v2345, 127
      %v2486 = vpop.permute.xlu0 %2485
      %2487 = vrot.lane.b32.xlu0 %v2346, 127
      %v2488 = vpop.permute.xlu0 %2487
      %2489 = vrot.lane.b32.xlu0 %v2347, 127
      %v2490 = vpop.permute.xlu0 %2489
      %2491 = vrot.lane.b32.xlu0 %v2348, 127
      %v2492 = vpop.permute.xlu0 %2491
      %2499 = vrot.lane.b32.xlu0 %v2343, 119
      %v2500 = vpop.permute.xlu0 %2499
      %2501 = vrot.lane.b32.xlu0 %v2344, 119
      %v2502 = vpop.permute.xlu0 %2501
      %2503 = vrot.lane.b32.xlu0 %v2345, 119
      %v2504 = vpop.permute.xlu0 %2503
      %2505 = vrot.lane.b32.xlu0 %v2346, 119
      %v2506 = vpop.permute.xlu0 %2505
      %2507 = vrot.lane.b32.xlu0 %v2347, 119
      %v2508 = vpop.permute.xlu0 %2507
      %2509 = vrot.lane.b32.xlu0 %v2348, 119
      %v2510 = vpop.permute.xlu0 %2509
      %2517 = vrot.lane.b32.xlu0 %v2343, 111
      %v2518 = vpop.permute.xlu0 %2517
      %2519 = vrot.lane.b32.xlu0 %v2344, 111
      %v2520 = vpop.permute.xlu0 %2519
      %2521 = vrot.lane.b32.xlu0 %v2345, 111
      %v2522 = vpop.permute.xlu0 %2521
      %2523 = vrot.lane.b32.xlu0 %v2346, 111
      %v2524 = vpop.permute.xlu0 %2523
      %2525 = vrot.lane.b32.xlu0 %v2347, 111
      %v2526 = vpop.permute.xlu0 %2525
      %2527 = vrot.lane.b32.xlu0 %v2348, 111
      %v2528 = vpop.permute.xlu0 %2527
      %2536 = vset.pattern.permute.xlu0 0
      %2537 = vperm.xlu0 %2536, %v2312
      %v2538 = vpop.permute.xlu0 %2537
      %vm2540 = vcmask 392192
      %v2542 = vsel %vm2540, %v2311, 0
      %2544 = vmatprep.subr.mxu0 0.0
      %2545 = vmatpush1.msra.mxu0 %v2382
      %2546 = vmatprep.subr.mxu0 0.0
      %2547 = vmatpush1.msra.mxu0 %v2381
      %2548 = vmatprep.subr.mxu0 0.0
      %2549 = vmatpush1.msra.mxu0 %v2380
      %2550 = vmatprep.subr.mxu0 0.0
      %2551 = vmatpush1.msra.mxu0 %v2379
      %2552 = vmatprep.subr.mxu0 0.0
      %2553 = vmatpush1.msra.mxu0 %v2492
      %2554 = vmatprep.subr.mxu0 0.0
      %2555 = vmatpush1.msra.mxu0 %v2490
      %2556 = vmatprep.subr.mxu0 0.0
      %2557 = vmatpush1.msra.mxu0 %v2488
      %2558 = vmatprep.subr.mxu0 0.0
      %2559 = vmatpush1.msra.mxu0 %v2486
      %2560 = vmatprep.subr.mxu0 0.0
      %2561 = vmatpush1.msra.mxu0 %v2484
      %2562 = vmatprep.subr.mxu0 0.0
      %2563 = vmatpush1.msra.mxu0 %v2482
      %2564 = vmatprep.subr.mxu0 0.0
      %2565 = vmatpush1.msra.mxu0 %v2354
      %2566 = vmatprep.subr.mxu0 0.0
      %2567 = vmatpush1.msra.mxu0 %v2353
      %2568 = vmatprep.subr.mxu0 0.0
      %2569 = vmatpush1.msra.mxu0 %v2352
      %2570 = vmatprep.subr.mxu0 0.0
      %2571 = vmatpush1.msra.mxu0 %v2351
      %2572 = vmatprep.subr.mxu0 0.0
      %2573 = vmatpush1.msra.mxu0 %v2350
      %2574 = vmatprep.subr.mxu0 0.0
      %2575 = vmatpush1.msra.mxu0 %v2349
      %2576 = vmatprep.subr.mxu0 0.0
      %2577 = vmatpush2.msra.mxu0 %v2428
      %2578 = vmatprep.subr.mxu0 0.0
      %2579 = vmatpush2.msra.mxu0 %v2427
      %2580 = vmatprep.subr.mxu0 0.0
      %2581 = vmatpush2.msra.mxu0 %v2510
      %2582 = vmatprep.subr.mxu0 0.0
      %2583 = vmatpush2.msra.mxu0 %v2508
      %2584 = vmatprep.subr.mxu0 0.0
      %2585 = vmatpush2.msra.mxu0 %v2506
      %2586 = vmatprep.subr.mxu0 0.0
      %2587 = vmatpush2.msra.mxu0 %v2504
      %2588 = vmatprep.subr.mxu0 0.0
      %2589 = vmatpush2.msra.mxu0 %v2502
      %2590 = vmatprep.subr.mxu0 0.0
      %2591 = vmatpush2.msra.mxu0 %v2500
      %2592 = vmatprep.subr.mxu0 0.0
      %2593 = vmatpush2.msra.mxu0 %v2408
      %2594 = vmatprep.subr.mxu0 0.0
      %2595 = vmatpush2.msra.mxu0 %v2407
      %2596 = vmatprep.subr.mxu0 0.0
      %2597 = vmatpush2.msra.mxu0 %v2406
      %2598 = vmatprep.subr.mxu0 0.0
      %2599 = vmatpush2.msra.mxu0 %v2405
      %2600 = vmatprep.subr.mxu0 0.0
      %2601 = vmatpush2.msra.mxu0 %v2404
      %2602 = vmatprep.subr.mxu0 0.0
      %2603 = vmatpush2.msra.mxu0 %v2403
      %2604 = vmatprep.subr.mxu0 0.0
      %2605 = vmatpush2.msra.mxu0 %v2384
      %2606 = vmatprep.subr.mxu0 0.0
      %2607 = vmatpush2.msra.mxu0 %v2383
      %2608 = vmatprep.mubr.f32.mxu0 %v2309
      %2609 = vmatmul.mubr.f32.gmra.mxu0 %v2308
      %v2610 = vpop.f32.mrf.mxu0
      %v2611 = vadd.f32 %v2538, %v2610
      %v2612 = vpop.f32.mrf.mxu0
      %2613 = vdwg.mxu0
      %2614 = vmatprep.subr.mxu0 0.0
      %2615 = vmatpush1.msra.mxu0 %v2528
      %2616 = vmatprep.subr.mxu0 0.0
      %2617 = vmatpush1.msra.mxu0 %v2526
      %2618 = vmatprep.subr.mxu0 0.0
      %2619 = vmatpush1.msra.mxu0 %v2524
      %2620 = vmatprep.subr.mxu0 0.0
      %2621 = vmatpush1.msra.mxu0 %v2522
      %2622 = vmatprep.subr.mxu0 0.0
      %2623 = vmatpush1.msra.mxu0 %v2520
      %2624 = vmatprep.subr.mxu0 0.0
      %2625 = vmatpush1.msra.mxu0 %v2518
      %2626 = vmatprep.subr.mxu0 0.0
      %2627 = vmatpush1.msra.mxu0 %v2456
      %2628 = vmatprep.subr.mxu0 0.0
      %2629 = vmatpush1.msra.mxu0 %v2455
      %2630 = vmatprep.subr.mxu0 0.0
      %2631 = vmatpush1.msra.mxu0 %v2454
      %2632 = vmatprep.subr.mxu0 0.0
      %2633 = vmatpush1.msra.mxu0 %v2453
      %2634 = vmatprep.subr.mxu0 0.0
      %2635 = vmatpush1.msra.mxu0 %v2452
      %2636 = vmatprep.subr.mxu0 0.0
      %2637 = vmatpush1.msra.mxu0 %v2451
      %2638 = vmatprep.subr.mxu0 0.0
      %2639 = vmatpush1.msra.mxu0 %v2432
      %2640 = vmatprep.subr.mxu0 0.0
      %2641 = vmatpush1.msra.mxu0 %v2431
      %2642 = vmatprep.subr.mxu0 0.0
      %2643 = vmatpush1.msra.mxu0 %v2430
      %2644 = vmatprep.subr.mxu0 0.0
      %2645 = vmatpush1.msra.mxu0 %v2429
      %2646 = vmatprep.subr.mxu0 0.0
      %2647 = vmatpush2.msra.mxu0 0.0
      %2648 = vmatprep.subr.mxu0 0.0
      %2649 = vmatpush2.msra.mxu0 0.0
      %2650 = vmatprep.subr.mxu0 0.0
      %2651 = vmatpush2.msra.mxu0 0.0
      %2652 = vmatprep.subr.mxu0 0.0
      %2653 = vmatpush2.msra.mxu0 0.0
      %2654 = vmatprep.subr.mxu0 0.0
      %2655 = vmatpush2.msra.mxu0 0.0
      %2656 = vmatprep.subr.mxu0 0.0
      %2657 = vmatpush2.msra.mxu0 0.0
      %2658 = vmatprep.subr.mxu0 0.0
      %2659 = vmatpush2.msra.mxu0 0.0
      %2660 = vmatprep.subr.mxu0 0.0
      %2661 = vmatpush2.msra.mxu0 0.0
      %2662 = vmatprep.subr.mxu0 0.0
      %2663 = vmatpush2.msra.mxu0 0.0
      %2664 = vmatprep.subr.mxu0 0.0
      %2665 = vmatpush2.msra.mxu0 0.0
      %2666 = vmatprep.subr.mxu0 0.0
      %2667 = vmatpush2.msra.mxu0 %v2480
      %2668 = vmatprep.subr.mxu0 0.0
      %2669 = vmatpush2.msra.mxu0 %v2479
      %2670 = vmatprep.subr.mxu0 0.0
      %2671 = vmatpush2.msra.mxu0 %v2478
      %2672 = vmatprep.subr.mxu0 0.0
      %2673 = vmatpush2.msra.mxu0 %v2477
      %2674 = vmatprep.subr.mxu0 0.0
      %2675 = vmatpush2.msra.mxu0 %v2476
      %2676 = vmatprep.subr.mxu0 0.0
      %2677 = vmatpush2.msra.mxu0 %v2475
      %2678 = vmatprep.mubr.f32.mxu0 %v2542
      %2679 = vmatmul.mubr.f32.gmra.mxu0 %v2310
      %v2680 = vpop.f32.mrf.mxu0
      %v2681 = vadd.f32 %v2611, %v2680
      %v2682 = vpop.f32.mrf.mxu0
      %2683 = vdwg.mxu0
      %v2684 = vmax.f32 %v2681, 0.0
      %v2685 = vld [vmem:[%s16] sm:$0xff]
      %v2686 = vld [vmem:[%s16 + $0x8] sm:$0xff]
      %v2687 = vld [vmem:[%s16 + $0x10] sm:$0xff]
      %v2688 = vld [vmem:[%s16 + $0x18] sm:$0xff]
      %v2689 = vld [vmem:[%s16 + $0x20] sm:$0xff]
      %v2690 = vld [vmem:[%s16 + $0x28] sm:$0xff]
      %v2691 = vld [vmem:[%s16 + $0x30] sm:$0xff]
      %v2692 = vld [vmem:[%s16 + $0x38] sm:$0xff]
      %v2693 = vld [vmem:[%s16 + $0x40] sm:$0xff]
      %v2694 = vld [vmem:[%s16 + $0x48] sm:$0xff]
      %v2695 = vld [vmem:[%s16 + $0x50] sm:$0xff]
      %v2696 = vld [vmem:[%s16 + $0x58] sm:$0xff]
      %v2697 = vld [vmem:[%s16 + $0x60] sm:$0xff]
      %v2698 = vld [vmem:[%s16 + $0x68] sm:$0xff]
      %v2699 = vld [vmem:[%s16 + $0x70] sm:$0xff]
      %v2700 = vld [vmem:[%s16 + $0x78] sm:$0xff]
      %v2702 = vsel %vm1294, %v2684, 0
      %v2704 = vsel %vm1294, %v1244, 0
      %v2706 = vsel %vm1294, %v1245, 0
      %2708 = vmatprep.subr.mxu0 0.0
      %2709 = vmatpush1.msra.mxu0 0.0
      %2710 = vmatprep.subr.mxu0 0.0
      %2711 = vmatpush1.msra.mxu0 0.0
      %2712 = vmatprep.subr.mxu0 0.0
      %2713 = vmatpush1.msra.mxu0 0.0
      %2714 = vmatprep.subr.mxu0 0.0
      %2715 = vmatpush1.msra.mxu0 0.0
      %2716 = vmatprep.subr.mxu0 0.0
      %2717 = vmatpush1.msra.mxu0 0.0
      %2718 = vmatprep.subr.mxu0 0.0
      %2719 = vmatpush1.msra.mxu0 0.0
      %2720 = vmatprep.subr.mxu0 0.0
      %2721 = vmatpush1.msra.mxu0 0.0
      %2722 = vmatprep.subr.mxu0 0.0
      %2723 = vmatpush1.msra.mxu0 0.0
      %2724 = vmatprep.subr.mxu0 %v2700
      %2725 = vmatpush1.msra.mxu0 %v2699
      %2726 = vmatprep.subr.mxu0 %v2698
      %2727 = vmatpush1.msra.mxu0 %v2697
      %2728 = vmatprep.subr.mxu0 %v2696
      %2729 = vmatpush1.msra.mxu0 %v2695
      %2730 = vmatprep.subr.mxu0 %v2694
      %2731 = vmatpush1.msra.mxu0 %v2693
      %2732 = vmatprep.subr.mxu0 %v2692
      %2733 = vmatpush1.msra.mxu0 %v2691
      %2734 = vmatprep.subr.mxu0 %v2690
      %2735 = vmatpush1.msra.mxu0 %v2689
      %2736 = vmatprep.subr.mxu0 %v2688
      %2737 = vmatpush1.msra.mxu0 %v2687
      %2738 = vmatprep.subr.mxu0 %v2686
      %2739 = vmatpush1.msra.mxu0 %v2685
      %2740 = vmatprep.subr.mxu0 0.0
      %2741 = vmatpush2.msra.mxu0 0.0
      %2742 = vmatprep.subr.mxu0 0.0
      %2743 = vmatpush2.msra.mxu0 0.0
      %2744 = vmatprep.subr.mxu0 0.0
      %2745 = vmatpush2.msra.mxu0 0.0
      %2746 = vmatprep.subr.mxu0 0.0
      %2747 = vmatpush2.msra.mxu0 0.0
      %2748 = vmatprep.subr.mxu0 0.0
      %2749 = vmatpush2.msra.mxu0 0.0
      %2750 = vmatprep.subr.mxu0 0.0
      %2751 = vmatpush2.msra.mxu0 0.0
      %2752 = vmatprep.subr.mxu0 0.0
      %2753 = vmatpush2.msra.mxu0 0.0
      %2754 = vmatprep.subr.mxu0 0.0
      %2755 = vmatpush2.msra.mxu0 0.0
      %2756 = vmatprep.subr.mxu0 0.0
      %2757 = vmatpush2.msra.mxu0 0.0
      %2758 = vmatprep.subr.mxu0 0.0
      %2759 = vmatpush2.msra.mxu0 0.0
      %2760 = vmatprep.subr.mxu0 0.0
      %2761 = vmatpush2.msra.mxu0 0.0
      %2762 = vmatprep.subr.mxu0 0.0
      %2763 = vmatpush2.msra.mxu0 0.0
      %2764 = vmatprep.subr.mxu0 0.0
      %2765 = vmatpush2.msra.mxu0 0.0
      %2766 = vmatprep.subr.mxu0 0.0
      %2767 = vmatpush2.msra.mxu0 0.0
      %2768 = vmatprep.subr.mxu0 0.0
      %2769 = vmatpush2.msra.mxu0 0.0
      %2770 = vmatprep.subr.mxu0 0.0
      %2771 = vmatpush2.msra.mxu0 0.0
      %2772 = vmatprep.mubr.f32.mxu0 0.0
      %2773 = vmatmul.mubr.f32.gmra.mxu0 %v2702
      %v2774 = vpop.f32.mrf.mxu0
      %v2775 = vadd.f32 0.0, %v2774
      %v2776 = vpop.f32.mrf.mxu0
      %v2777 = vadd.f32 0.0, %v2776
      %2778 = vmatprep.mubr.f32.mxu0 0.0
      %2779 = vmatmul.mubr.f32.gmra.mxu0 %v2704
      %v2780 = vpop.f32.mrf.mxu0
      %v2781 = vadd.f32 0.0, %v2780
      %v2782 = vpop.f32.mrf.mxu0
      %v2783 = vadd.f32 0.0, %v2782
      %2784 = vmatprep.mubr.f32.mxu0 0.0
      %2785 = vmatmul.mubr.f32.gmra.mxu0 %v2706
      %v2786 = vpop.f32.mrf.mxu0
      %v2787 = vadd.f32 0.0, %v2786
      %v2788 = vpop.f32.mrf.mxu0
      %v2789 = vadd.f32 0.0, %v2788
      %2790 = vdwg.mxu0
      %v2791 = vld [vmem:[%s11] sm:$0xff]
      %v2792 = vld [vmem:[%s11 + $0x8] sm:$0xff]
      %v2793 = vld [vmem:[%s12] sm:$0xff]
      %2800 = vrot.lane.b32.xlu0 %v2775, 17
      %v2801 = vpop.permute.xlu0 %2800
      %2802 = vrot.lane.b32.xlu0 %v2777, 17
      %v2803 = vpop.permute.xlu0 %2802
      %2804 = vrot.lane.b32.xlu0 %v2781, 17
      %v2805 = vpop.permute.xlu0 %2804
      %2806 = vrot.lane.b32.xlu0 %v2783, 17
      %v2807 = vpop.permute.xlu0 %2806
      %2808 = vrot.lane.b32.xlu0 %v2787, 17
      %v2809 = vpop.permute.xlu0 %2808
      %2810 = vrot.lane.b32.xlu0 %v2789, 17
      %v2811 = vpop.permute.xlu0 %2810
      %v2812 = vsel %vm685, %v2801, %v2803
      %v2813 = vsel %vm685, %v2805, %v2807
      %v2814 = vsel %vm685, %v2809, %v2811
      %v2824 = vsel %vm685, 0.0, %v2801
      %v2825 = vsel %vm685, 0.0, %v2805
      %v2826 = vsel %vm685, 0.0, %v2809
      %v2827 = vsel %vm685, %v2803, 0.0
      %v2828 = vsel %vm685, %v2807, 0.0
      %v2829 = vsel %vm685, %v2811, 0.0
      %v2830 = vsel %vm660, 1, 0
      %v2831 = vsel %vm661, 1, 0
      %vm2832 = vcmp.eq.s32.totalorder %v2830, 1
      %vm2833 = vcmp.eq.s32.totalorder %v2831, 1
      %v2834 = vsel %vm2832, %v2824, 0.0
      %v2835 = vsel %vm2833, %v2812, 0.0
      %v2836 = vsel %vm2832, %v2825, 0.0
      %v2837 = vsel %vm2833, %v2813, 0.0
      %v2838 = vsel %vm2832, %v2826, 0.0
      %v2839 = vsel %vm2833, %v2814, 0.0
      %v2840 = vsel %vm662, 1, 0
      %v2841 = vsel %vm663, 1, 0
      %vm2842 = vcmp.eq.s32.totalorder %v2840, 1
      %vm2843 = vcmp.eq.s32.totalorder %v2841, 1
      %2850 = vrot.lane.b32.xlu0 %v2824, 126
      %v2851 = vpop.permute.xlu0 %2850
      %2852 = vrot.lane.b32.xlu0 %v2812, 126
      %v2853 = vpop.permute.xlu0 %2852
      %2854 = vrot.lane.b32.xlu0 %v2827, 126
      %v2855 = vpop.permute.xlu0 %2854
      %2856 = vrot.lane.b32.xlu0 %v2825, 126
      %v2857 = vpop.permute.xlu0 %2856
      %2858 = vrot.lane.b32.xlu0 %v2813, 126
      %v2859 = vpop.permute.xlu0 %2858
      %2860 = vrot.lane.b32.xlu0 %v2828, 126
      %v2861 = vpop.permute.xlu0 %2860
      %2862 = vrot.lane.b32.xlu0 %v2826, 126
      %v2863 = vpop.permute.xlu0 %2862
      %2864 = vrot.lane.b32.xlu0 %v2814, 126
      %v2865 = vpop.permute.xlu0 %2864
      %2866 = vrot.lane.b32.xlu0 %v2829, 126
      %v2867 = vpop.permute.xlu0 %2866
      %v2868 = vsel %vm702, %v2851, %v2853
      %v2869 = vsel %vm702, %v2853, %v2855
      %v2870 = vsel %vm702, %v2857, %v2859
      %v2871 = vsel %vm702, %v2859, %v2861
      %v2872 = vsel %vm702, %v2863, %v2865
      %v2873 = vsel %vm702, %v2865, %v2867
      %v2880 = vsel %vm2842, %v2868, 0.0
      %v2881 = vsel %vm2843, %v2869, 0.0
      %v2882 = vsel %vm2842, %v2870, 0.0
      %v2883 = vsel %vm2843, %v2871, 0.0
      %v2884 = vsel %vm2842, %v2872, 0.0
      %v2885 = vsel %vm2843, %v2873, 0.0
      %2886 = vrot.lane.b32.xlu0 %v2824, 112
      %v2887 = vpop.permute.xlu0 %2886
      %2888 = vrot.lane.b32.xlu0 %v2812, 112
      %v2889 = vpop.permute.xlu0 %2888
      %2890 = vrot.lane.b32.xlu0 %v2827, 112
      %v2891 = vpop.permute.xlu0 %2890
      %2892 = vrot.lane.b32.xlu0 %v2825, 112
      %v2893 = vpop.permute.xlu0 %2892
      %2894 = vrot.lane.b32.xlu0 %v2813, 112
      %v2895 = vpop.permute.xlu0 %2894
      %2896 = vrot.lane.b32.xlu0 %v2828, 112
      %v2897 = vpop.permute.xlu0 %2896
      %2898 = vrot.lane.b32.xlu0 %v2826, 112
      %v2899 = vpop.permute.xlu0 %2898
      %2900 = vrot.lane.b32.xlu0 %v2814, 112
      %v2901 = vpop.permute.xlu0 %2900
      %2902 = vrot.lane.b32.xlu0 %v2829, 112
      %v2903 = vpop.permute.xlu0 %2902
      %v2904 = vsel %vm715, %v2887, %v2889
      %v2905 = vsel %vm715, %v2889, %v2891
      %v2906 = vsel %vm715, %v2893, %v2895
      %v2907 = vsel %vm715, %v2895, %v2897
      %v2908 = vsel %vm715, %v2899, %v2901
      %v2909 = vsel %vm715, %v2901, %v2903
      %v2916 = vsel %vm2832, %v2904, 0.0
      %v2917 = vsel %vm2833, %v2905, 0.0
      %v2918 = vsel %vm2832, %v2906, 0.0
      %v2919 = vsel %vm2833, %v2907, 0.0
      %v2920 = vsel %vm2832, %v2908, 0.0
      %v2921 = vsel %vm2833, %v2909, 0.0
      %2922 = vrot.lane.b32.xlu0 %v2824, 110
      %v2923 = vpop.permute.xlu0 %2922
      %2924 = vrot.lane.b32.xlu0 %v2812, 110
      %v2925 = vpop.permute.xlu0 %2924
      %2926 = vrot.lane.b32.xlu0 %v2827, 110
      %v2927 = vpop.permute.xlu0 %2926
      %2928 = vrot.lane.b32.xlu0 %v2825, 110
      %v2929 = vpop.permute.xlu0 %2928
      %2930 = vrot.lane.b32.xlu0 %v2813, 110
      %v2931 = vpop.permute.xlu0 %2930
      %2932 = vrot.lane.b32.xlu0 %v2828, 110
      %v2933 = vpop.permute.xlu0 %2932
      %2934 = vrot.lane.b32.xlu0 %v2826, 110
      %v2935 = vpop.permute.xlu0 %2934
      %2936 = vrot.lane.b32.xlu0 %v2814, 110
      %v2937 = vpop.permute.xlu0 %2936
      %2938 = vrot.lane.b32.xlu0 %v2829, 110
      %v2939 = vpop.permute.xlu0 %2938
      %v2940 = vsel %vm728, %v2923, %v2925
      %v2941 = vsel %vm728, %v2925, %v2927
      %v2942 = vsel %vm728, %v2929, %v2931
      %v2943 = vsel %vm728, %v2931, %v2933
      %v2944 = vsel %vm728, %v2935, %v2937
      %v2945 = vsel %vm728, %v2937, %v2939
      %v2952 = vsel %vm2842, %v2940, 0.0
      %v2953 = vsel %vm2843, %v2941, 0.0
      %v2954 = vsel %vm2842, %v2942, 0.0
      %v2955 = vsel %vm2843, %v2943, 0.0
      %v2956 = vsel %vm2842, %v2944, 0.0
      %v2957 = vsel %vm2843, %v2945, 0.0
      %2958 = vrot.lane.b32.xlu0 %v2824, 96
      %v2959 = vpop.permute.xlu0 %2958
      %2960 = vrot.lane.b32.xlu0 %v2812, 96
      %v2961 = vpop.permute.xlu0 %2960
      %2962 = vrot.lane.b32.xlu0 %v2827, 96
      %v2963 = vpop.permute.xlu0 %2962
      %2964 = vrot.lane.b32.xlu0 %v2825, 96
      %v2965 = vpop.permute.xlu0 %2964
      %2966 = vrot.lane.b32.xlu0 %v2813, 96
      %v2967 = vpop.permute.xlu0 %2966
      %2968 = vrot.lane.b32.xlu0 %v2828, 96
      %v2969 = vpop.permute.xlu0 %2968
      %2970 = vrot.lane.b32.xlu0 %v2826, 96
      %v2971 = vpop.permute.xlu0 %2970
      %2972 = vrot.lane.b32.xlu0 %v2814, 96
      %v2973 = vpop.permute.xlu0 %2972
      %2974 = vrot.lane.b32.xlu0 %v2829, 96
      %v2975 = vpop.permute.xlu0 %2974
      %v2976 = vsel %vm741, %v2959, %v2961
      %v2977 = vsel %vm741, %v2961, %v2963
      %v2978 = vsel %vm741, %v2965, %v2967
      %v2979 = vsel %vm741, %v2967, %v2969
      %v2980 = vsel %vm741, %v2971, %v2973
      %v2981 = vsel %vm741, %v2973, %v2975
      %v2988 = vsel %vm2832, %v2976, 0.0
      %v2989 = vsel %vm2833, %v2977, 0.0
      %v2990 = vsel %vm2832, %v2978, 0.0
      %v2991 = vsel %vm2833, %v2979, 0.0
      %v2992 = vsel %vm2832, %v2980, 0.0
      %v2993 = vsel %vm2833, %v2981, 0.0
      %2994 = vrot.lane.b32.xlu0 %v2824, 94
      %v2995 = vpop.permute.xlu0 %2994
      %2996 = vrot.lane.b32.xlu0 %v2812, 94
      %v2997 = vpop.permute.xlu0 %2996
      %2998 = vrot.lane.b32.xlu0 %v2827, 94
      %v2999 = vpop.permute.xlu0 %2998
      %3000 = vrot.lane.b32.xlu0 %v2825, 94
      %v3001 = vpop.permute.xlu0 %3000
      %3002 = vrot.lane.b32.xlu0 %v2813, 94
      %v3003 = vpop.permute.xlu0 %3002
      %3004 = vrot.lane.b32.xlu0 %v2828, 94
      %v3005 = vpop.permute.xlu0 %3004
      %3006 = vrot.lane.b32.xlu0 %v2826, 94
      %v3007 = vpop.permute.xlu0 %3006
      %3008 = vrot.lane.b32.xlu0 %v2814, 94
      %v3009 = vpop.permute.xlu0 %3008
      %3010 = vrot.lane.b32.xlu0 %v2829, 94
      %v3011 = vpop.permute.xlu0 %3010
      %v3012 = vsel %vm754, %v2995, %v2997
      %v3013 = vsel %vm754, %v2997, %v2999
      %v3014 = vsel %vm754, %v3001, %v3003
      %v3015 = vsel %vm754, %v3003, %v3005
      %v3016 = vsel %vm754, %v3007, %v3009
      %v3017 = vsel %vm754, %v3009, %v3011
      %v3024 = vsel %vm2842, %v3012, 0.0
      %v3025 = vsel %vm2843, %v3013, 0.0
      %v3026 = vsel %vm2842, %v3014, 0.0
      %v3027 = vsel %vm2843, %v3015, 0.0
      %v3028 = vsel %vm2842, %v3016, 0.0
      %v3029 = vsel %vm2843, %v3017, 0.0
      %3030 = vrot.lane.b32.xlu0 %v2824, 127
      %v3031 = vpop.permute.xlu0 %3030
      %3032 = vrot.lane.b32.xlu0 %v2812, 127
      %v3033 = vpop.permute.xlu0 %3032
      %3034 = vrot.lane.b32.xlu0 %v2827, 127
      %v3035 = vpop.permute.xlu0 %3034
      %3036 = vrot.lane.b32.xlu0 %v2825, 127
      %v3037 = vpop.permute.xlu0 %3036
      %3038 = vrot.lane.b32.xlu0 %v2813, 127
      %v3039 = vpop.permute.xlu0 %3038
      %3040 = vrot.lane.b32.xlu0 %v2828, 127
      %v3041 = vpop.permute.xlu0 %3040
      %3042 = vrot.lane.b32.xlu0 %v2826, 127
      %v3043 = vpop.permute.xlu0 %3042
      %3044 = vrot.lane.b32.xlu0 %v2814, 127
      %v3045 = vpop.permute.xlu0 %3044
      %3046 = vrot.lane.b32.xlu0 %v2829, 127
      %v3047 = vpop.permute.xlu0 %3046
      %v3048 = vsel %vm806, %v3031, %v3033
      %v3049 = vsel %vm806, %v3033, %v3035
      %v3050 = vsel %vm806, %v3037, %v3039
      %v3051 = vsel %vm806, %v3039, %v3041
      %v3052 = vsel %vm806, %v3043, %v3045
      %v3053 = vsel %vm806, %v3045, %v3047
      %3060 = vrot.lane.b32.xlu0 %v2824, 111
      %v3061 = vpop.permute.xlu0 %3060
      %3062 = vrot.lane.b32.xlu0 %v2812, 111
      %v3063 = vpop.permute.xlu0 %3062
      %3064 = vrot.lane.b32.xlu0 %v2827, 111
      %v3065 = vpop.permute.xlu0 %3064
      %3066 = vrot.lane.b32.xlu0 %v2825, 111
      %v3067 = vpop.permute.xlu0 %3066
      %3068 = vrot.lane.b32.xlu0 %v2813, 111
      %v3069 = vpop.permute.xlu0 %3068
      %3070 = vrot.lane.b32.xlu0 %v2828, 111
      %v3071 = vpop.permute.xlu0 %3070
      %3072 = vrot.lane.b32.xlu0 %v2826, 111
      %v3073 = vpop.permute.xlu0 %3072
      %3074 = vrot.lane.b32.xlu0 %v2814, 111
      %v3075 = vpop.permute.xlu0 %3074
      %3076 = vrot.lane.b32.xlu0 %v2829, 111
      %v3077 = vpop.permute.xlu0 %3076
      %v3078 = vsel %vm861, %v3061, %v3063
      %v3079 = vsel %vm861, %v3063, %v3065
      %v3080 = vsel %vm861, %v3067, %v3069
      %v3081 = vsel %vm861, %v3069, %v3071
      %v3082 = vsel %vm861, %v3073, %v3075
      %v3083 = vsel %vm861, %v3075, %v3077
      %3090 = vrot.lane.b32.xlu0 %v2824, 95
      %v3091 = vpop.permute.xlu0 %3090
      %3092 = vrot.lane.b32.xlu0 %v2812, 95
      %v3093 = vpop.permute.xlu0 %3092
      %3094 = vrot.lane.b32.xlu0 %v2827, 95
      %v3095 = vpop.permute.xlu0 %3094
      %3096 = vrot.lane.b32.xlu0 %v2825, 95
      %v3097 = vpop.permute.xlu0 %3096
      %3098 = vrot.lane.b32.xlu0 %v2813, 95
      %v3099 = vpop.permute.xlu0 %3098
      %3100 = vrot.lane.b32.xlu0 %v2828, 95
      %v3101 = vpop.permute.xlu0 %3100
      %3102 = vrot.lane.b32.xlu0 %v2826, 95
      %v3103 = vpop.permute.xlu0 %3102
      %3104 = vrot.lane.b32.xlu0 %v2814, 95
      %v3105 = vpop.permute.xlu0 %3104
      %3106 = vrot.lane.b32.xlu0 %v2829, 95
      %v3107 = vpop.permute.xlu0 %3106
      %v3108 = vsel %vm916, %v3091, %v3093
      %v3109 = vsel %vm916, %v3093, %v3095
      %v3110 = vsel %vm916, %v3097, %v3099
      %v3111 = vsel %vm916, %v3099, %v3101
      %v3112 = vsel %vm916, %v3103, %v3105
      %v3113 = vsel %vm916, %v3105, %v3107
      %3121 = vset.pattern.permute.xlu0 0
      %3122 = vperm.xlu0 %3121, %v2793
      %v3123 = vpop.permute.xlu0 %3122
      %vm3125 = vcmask 719872
      %v3127 = vsel %vm3125, %v2792, 0
      %3129 = vmatprep.subr.mxu0 %v2953
      %3130 = vmatpush1.msra.mxu0 %v2952
      %3131 = vmatprep.subr.mxu0 %v3083
      %3132 = vmatpush1.msra.mxu0 %v3082
      %3133 = vmatprep.subr.mxu0 %v3081
      %3134 = vmatpush1.msra.mxu0 %v3080
      %3135 = vmatprep.subr.mxu0 %v3079
      %3136 = vmatpush1.msra.mxu0 %v3078
      %3137 = vmatprep.subr.mxu0 %v2921
      %3138 = vmatpush1.msra.mxu0 %v2920
      %3139 = vmatprep.subr.mxu0 %v2919
      %3140 = vmatpush1.msra.mxu0 %v2918
      %3141 = vmatprep.subr.mxu0 %v2917
      %3142 = vmatpush1.msra.mxu0 %v2916
      %3143 = vmatprep.subr.mxu0 %v2885
      %3144 = vmatpush1.msra.mxu0 %v2884
      %3145 = vmatprep.subr.mxu0 %v2883
      %3146 = vmatpush1.msra.mxu0 %v2882
      %3147 = vmatprep.subr.mxu0 %v2881
      %3148 = vmatpush1.msra.mxu0 %v2880
      %3149 = vmatprep.subr.mxu0 %v3053
      %3150 = vmatpush1.msra.mxu0 %v3052
      %3151 = vmatprep.subr.mxu0 %v3051
      %3152 = vmatpush1.msra.mxu0 %v3050
      %3153 = vmatprep.subr.mxu0 %v3049
      %3154 = vmatpush1.msra.mxu0 %v3048
      %3155 = vmatprep.subr.mxu0 %v2839
      %3156 = vmatpush1.msra.mxu0 %v2838
      %3157 = vmatprep.subr.mxu0 %v2837
      %3158 = vmatpush1.msra.mxu0 %v2836
      %3159 = vmatprep.subr.mxu0 %v2835
      %3160 = vmatpush1.msra.mxu0 %v2834
      %3161 = vmatprep.subr.mxu0 0.0
      %3162 = vmatpush2.msra.mxu0 0.0
      %3163 = vmatprep.subr.mxu0 0.0
      %3164 = vmatpush2.msra.mxu0 0.0
      %3165 = vmatprep.subr.mxu0 0.0
      %3166 = vmatpush2.msra.mxu0 0.0
      %3167 = vmatprep.subr.mxu0 0.0
      %3168 = vmatpush2.msra.mxu0 0.0
      %3169 = vmatprep.subr.mxu0 0.0
      %3170 = vmatpush2.msra.mxu0 0.0
      %3171 = vmatprep.subr.mxu0 %v3029
      %3172 = vmatpush2.msra.mxu0 %v3028
      %3173 = vmatprep.subr.mxu0 %v3027
      %3174 = vmatpush2.msra.mxu0 %v3026
      %3175 = vmatprep.subr.mxu0 %v3025
      %3176 = vmatpush2.msra.mxu0 %v3024
      %3177 = vmatprep.subr.mxu0 %v3113
      %3178 = vmatpush2.msra.mxu0 %v3112
      %3179 = vmatprep.subr.mxu0 %v3111
      %3180 = vmatpush2.msra.mxu0 %v3110
      %3181 = vmatprep.subr.mxu0 %v3109
      %3182 = vmatpush2.msra.mxu0 %v3108
      %3183 = vmatprep.subr.mxu0 %v2993
      %3184 = vmatpush2.msra.mxu0 %v2992
      %3185 = vmatprep.subr.mxu0 %v2991
      %3186 = vmatpush2.msra.mxu0 %v2990
      %3187 = vmatprep.subr.mxu0 %v2989
      %3188 = vmatpush2.msra.mxu0 %v2988
      %3189 = vmatprep.subr.mxu0 %v2957
      %3190 = vmatpush2.msra.mxu0 %v2956
      %3191 = vmatprep.subr.mxu0 %v2955
      %3192 = vmatpush2.msra.mxu0 %v2954
      %3193 = vmatprep.mubr.f32.mxu0 %v3127
      %3194 = vmatmul.mubr.f32.gmra.mxu0 %v2791
      %v3195 = vpop.f32.mrf.mxu0
      %v3196 = vadd.f32 %v3123, %v3195
      %v3197 = vpop.f32.mrf.mxu0
      %v3198 = vadd.f32 %v3123, %v3197
      %3199 = vdwg.mxu0
      %v3200 = vmax.f32 %v3196, 0.0
      %v3201 = vmax.f32 %v3198, 0.0
      %v3202 = vld [vmem:[%s13] sm:$0xf]
      %v3203 = vld [vmem:[%s14] sm:$0x3]
      %3206 = vrot.lane.b32.xlu0 %v3200, 17
      %v3207 = vpop.permute.xlu0 %3206
      %3208 = vrot.lane.b32.xlu0 %v3201, 17
      %v3209 = vpop.permute.xlu0 %3208
      %v3210 = vsel %vm685, %v3207, %v3209
      %v3214 = vsel %vm685, 0.0, %v3207
      %v3215 = vsel %vm685, %v3209, 0.0
      %v3216 = vsel %vm2832, %v3214, 0.0
      %v3217 = vsel %vm2833, %v3210, 0.0
      %v3218 = vsel %vm2832, %v990, 0.0
      %v3219 = vsel %vm2833, %v986, 0.0
      %3222 = vrot.lane.b32.xlu0 %v3214, 126
      %v3223 = vpop.permute.xlu0 %3222
      %3224 = vrot.lane.b32.xlu0 %v3210, 126
      %v3225 = vpop.permute.xlu0 %3224
      %3226 = vrot.lane.b32.xlu0 %v3215, 126
      %v3227 = vpop.permute.xlu0 %3226
      %3228 = vrot.lane.b32.xlu0 %v990, 126
      %v3229 = vpop.permute.xlu0 %3228
      %3230 = vrot.lane.b32.xlu0 %v986, 126
      %v3231 = vpop.permute.xlu0 %3230
      %3232 = vrot.lane.b32.xlu0 %v991, 126
      %v3233 = vpop.permute.xlu0 %3232
      %v3234 = vsel %vm702, %v3223, %v3225
      %v3235 = vsel %vm702, %v3225, %v3227
      %v3236 = vsel %vm702, %v3229, %v3231
      %v3237 = vsel %vm702, %v3231, %v3233
      %v3242 = vsel %vm2842, %v3234, 0.0
      %v3243 = vsel %vm2843, %v3235, 0.0
      %v3244 = vsel %vm2842, %v3236, 0.0
      %v3245 = vsel %vm2843, %v3237, 0.0
      %3246 = vrot.lane.b32.xlu0 %v3214, 112
      %v3247 = vpop.permute.xlu0 %3246
      %3248 = vrot.lane.b32.xlu0 %v3210, 112
      %v3249 = vpop.permute.xlu0 %3248
      %3250 = vrot.lane.b32.xlu0 %v3215, 112
      %v3251 = vpop.permute.xlu0 %3250
      %3252 = vrot.lane.b32.xlu0 %v990, 112
      %v3253 = vpop.permute.xlu0 %3252
      %3254 = vrot.lane.b32.xlu0 %v986, 112
      %v3255 = vpop.permute.xlu0 %3254
      %3256 = vrot.lane.b32.xlu0 %v991, 112
      %v3257 = vpop.permute.xlu0 %3256
      %v3258 = vsel %vm715, %v3247, %v3249
      %v3259 = vsel %vm715, %v3249, %v3251
      %v3260 = vsel %vm715, %v3253, %v3255
      %v3261 = vsel %vm715, %v3255, %v3257
      %v3266 = vsel %vm2832, %v3258, 0.0
      %v3267 = vsel %vm2833, %v3259, 0.0
      %v3268 = vsel %vm2832, %v3260, 0.0
      %v3269 = vsel %vm2833, %v3261, 0.0
      %3270 = vrot.lane.b32.xlu0 %v3214, 110
      %v3271 = vpop.permute.xlu0 %3270
      %3272 = vrot.lane.b32.xlu0 %v3210, 110
      %v3273 = vpop.permute.xlu0 %3272
      %3274 = vrot.lane.b32.xlu0 %v3215, 110
      %v3275 = vpop.permute.xlu0 %3274
      %v3276 = vsel %vm728, %v3271, %v3273
      %v3277 = vsel %vm728, %v3273, %v3275
      %v3280 = vsel %vm2842, %v3276, 0.0
      %v3281 = vsel %vm2843, %v3277, 0.0
      %v3282 = vsel %vm2842, %v1000, 0.0
      %v3283 = vsel %vm2843, %v1001, 0.0
      %3284 = vrot.lane.b32.xlu0 %v3214, 96
      %v3285 = vpop.permute.xlu0 %3284
      %3286 = vrot.lane.b32.xlu0 %v3210, 96
      %v3287 = vpop.permute.xlu0 %3286
      %3288 = vrot.lane.b32.xlu0 %v3215, 96
      %v3289 = vpop.permute.xlu0 %3288
      %3290 = vrot.lane.b32.xlu0 %v990, 96
      %v3291 = vpop.permute.xlu0 %3290
      %3292 = vrot.lane.b32.xlu0 %v986, 96
      %v3293 = vpop.permute.xlu0 %3292
      %3294 = vrot.lane.b32.xlu0 %v991, 96
      %v3295 = vpop.permute.xlu0 %3294
      %v3296 = vsel %vm741, %v3285, %v3287
      %v3297 = vsel %vm741, %v3287, %v3289
      %v3298 = vsel %vm741, %v3291, %v3293
      %v3299 = vsel %vm741, %v3293, %v3295
      %v3304 = vsel %vm2832, %v3296, 0.0
      %v3305 = vsel %vm2833, %v3297, 0.0
      %v3306 = vsel %vm2832, %v3298, 0.0
      %v3307 = vsel %vm2833, %v3299, 0.0
      %3308 = vrot.lane.b32.xlu0 %v3214, 94
      %v3309 = vpop.permute.xlu0 %3308
      %3310 = vrot.lane.b32.xlu0 %v3210, 94
      %v3311 = vpop.permute.xlu0 %3310
      %3312 = vrot.lane.b32.xlu0 %v3215, 94
      %v3313 = vpop.permute.xlu0 %3312
      %3314 = vrot.lane.b32.xlu0 %v990, 94
      %v3315 = vpop.permute.xlu0 %3314
      %3316 = vrot.lane.b32.xlu0 %v986, 94
      %v3317 = vpop.permute.xlu0 %3316
      %3318 = vrot.lane.b32.xlu0 %v991, 94
      %v3319 = vpop.permute.xlu0 %3318
      %v3320 = vsel %vm754, %v3309, %v3311
      %v3321 = vsel %vm754, %v3311, %v3313
      %v3322 = vsel %vm754, %v3315, %v3317
      %v3323 = vsel %vm754, %v3317, %v3319
      %v3328 = vsel %vm2842, %v3320, 0.0
      %v3329 = vsel %vm2843, %v3321, 0.0
      %v3330 = vsel %vm2842, %v3322, 0.0
      %v3331 = vsel %vm2843, %v3323, 0.0
      %3332 = vrot.lane.b32.xlu0 %v3214, 127
      %v3333 = vpop.permute.xlu0 %3332
      %3334 = vrot.lane.b32.xlu0 %v3210, 127
      %v3335 = vpop.permute.xlu0 %3334
      %3336 = vrot.lane.b32.xlu0 %v3215, 127
      %v3337 = vpop.permute.xlu0 %3336
      %v3338 = vsel %vm806, %v3333, %v3335
      %v3339 = vsel %vm806, %v3335, %v3337
      %3342 = vrot.lane.b32.xlu0 %v3214, 111
      %v3343 = vpop.permute.xlu0 %3342
      %3344 = vrot.lane.b32.xlu0 %v3210, 111
      %v3345 = vpop.permute.xlu0 %3344
      %3346 = vrot.lane.b32.xlu0 %v3215, 111
      %v3347 = vpop.permute.xlu0 %3346
      %3348 = vrot.lane.b32.xlu0 %v990, 111
      %v3349 = vpop.permute.xlu0 %3348
      %3350 = vrot.lane.b32.xlu0 %v986, 111
      %v3351 = vpop.permute.xlu0 %3350
      %3352 = vrot.lane.b32.xlu0 %v991, 111
      %v3353 = vpop.permute.xlu0 %3352
      %v3354 = vsel %vm861, %v3343, %v3345
      %v3355 = vsel %vm861, %v3345, %v3347
      %v3356 = vsel %vm861, %v3349, %v3351
      %v3357 = vsel %vm861, %v3351, %v3353
      %3362 = vrot.lane.b32.xlu0 %v3214, 95
      %v3363 = vpop.permute.xlu0 %3362
      %3364 = vrot.lane.b32.xlu0 %v3210, 95
      %v3365 = vpop.permute.xlu0 %3364
      %3366 = vrot.lane.b32.xlu0 %v3215, 95
      %v3367 = vpop.permute.xlu0 %3366
      %3368 = vrot.lane.b32.xlu0 %v990, 95
      %v3369 = vpop.permute.xlu0 %3368
      %3370 = vrot.lane.b32.xlu0 %v986, 95
      %v3371 = vpop.permute.xlu0 %3370
      %3372 = vrot.lane.b32.xlu0 %v991, 95
      %v3373 = vpop.permute.xlu0 %3372
      %v3374 = vsel %vm916, %v3363, %v3365
      %v3375 = vsel %vm916, %v3365, %v3367
      %v3376 = vsel %vm916, %v3369, %v3371
      %v3377 = vsel %vm916, %v3371, %v3373
      %3383 = vset.pattern.permute.xlu0 0
      %3384 = vperm.xlu0 %3383, %v3203
      %v3385 = vpop.permute.xlu0 %3384
      %v3389 = vunpack.c.l.s4 1983009808
      %v3390 = vunpack.c.0.s8 %v3389
      %v3391 = vlaneseq
      %v3392 = vshrl.u32 %v3391, 7
      %v3393 = vsub.s32 %v3390, %v3392
      %v3394 = vrot.slane %v3202, %v3393
      %v3395 = vcombine.high %v3394, %v3394
      %v3397 = vsel %vm1488, %v3395, 0
      %3399 = vmatprep.subr.mxu0 %v3377
      %3400 = vmatpush1.msra.mxu0 %v3376
      %3401 = vmatprep.subr.mxu0 %v3375
      %3402 = vmatpush1.msra.mxu0 %v3374
      %3403 = vmatprep.subr.mxu0 %v3307
      %3404 = vmatpush1.msra.mxu0 %v3306
      %3405 = vmatprep.subr.mxu0 %v3305
      %3406 = vmatpush1.msra.mxu0 %v3304
      %3407 = vmatprep.subr.mxu0 %v3283
      %3408 = vmatpush1.msra.mxu0 %v3282
      %3409 = vmatprep.subr.mxu0 %v3281
      %3410 = vmatpush1.msra.mxu0 %v3280
      %3411 = vmatprep.subr.mxu0 %v3357
      %3412 = vmatpush1.msra.mxu0 %v3356
      %3413 = vmatprep.subr.mxu0 %v3355
      %3414 = vmatpush1.msra.mxu0 %v3354
      %3415 = vmatprep.subr.mxu0 %v3269
      %3416 = vmatpush1.msra.mxu0 %v3268
      %3417 = vmatprep.subr.mxu0 %v3267
      %3418 = vmatpush1.msra.mxu0 %v3266
      %3419 = vmatprep.subr.mxu0 %v3245
      %3420 = vmatpush1.msra.mxu0 %v3244
      %3421 = vmatprep.subr.mxu0 %v3243
      %3422 = vmatpush1.msra.mxu0 %v3242
      %3423 = vmatprep.subr.mxu0 %v1013
      %3424 = vmatpush1.msra.mxu0 %v1012
      %3425 = vmatprep.subr.mxu0 %v3339
      %3426 = vmatpush1.msra.mxu0 %v3338
      %3427 = vmatprep.subr.mxu0 %v3219
      %3428 = vmatpush1.msra.mxu0 %v3218
      %3429 = vmatprep.subr.mxu0 %v3217
      %3430 = vmatpush1.msra.mxu0 %v3216
      %3431 = vmatprep.subr.mxu0 0.0
      %3432 = vmatpush2.msra.mxu0 0.0
      %3433 = vmatprep.subr.mxu0 0.0
      %3434 = vmatpush2.msra.mxu0 0.0
      %3435 = vmatprep.subr.mxu0 0.0
      %3436 = vmatpush2.msra.mxu0 0.0
      %3437 = vmatprep.subr.mxu0 0.0
      %3438 = vmatpush2.msra.mxu0 0.0
      %3439 = vmatprep.subr.mxu0 0.0
      %3440 = vmatpush2.msra.mxu0 0.0
      %3441 = vmatprep.subr.mxu0 0.0
      %3442 = vmatpush2.msra.mxu0 0.0
      %3443 = vmatprep.subr.mxu0 0.0
      %3444 = vmatpush2.msra.mxu0 0.0
      %3445 = vmatprep.subr.mxu0 0.0
      %3446 = vmatpush2.msra.mxu0 0.0
      %3447 = vmatprep.subr.mxu0 0.0
      %3448 = vmatpush2.msra.mxu0 0.0
      %3449 = vmatprep.subr.mxu0 0.0
      %3450 = vmatpush2.msra.mxu0 0.0
      %3451 = vmatprep.subr.mxu0 0.0
      %3452 = vmatpush2.msra.mxu0 0.0
      %3453 = vmatprep.subr.mxu0 0.0
      %3454 = vmatpush2.msra.mxu0 0.0
      %3455 = vmatprep.subr.mxu0 0.0
      %3456 = vmatpush2.msra.mxu0 0.0
      %3457 = vmatprep.subr.mxu0 0.0
      %3458 = vmatpush2.msra.mxu0 0.0
      %3459 = vmatprep.subr.mxu0 %v3331
      %3460 = vmatpush2.msra.mxu0 %v3330
      %3461 = vmatprep.subr.mxu0 %v3329
      %3462 = vmatpush2.msra.mxu0 %v3328
      %3463 = vmatprep.mubr.f32.mxu0 %v3397
      %3464 = vmatmul.mubr.f32.gmra.mxu0 %v3394
      %v3465 = vpop.f32.mrf.mxu0
      %v3466 = vadd.f32 %v3385, %v3465
      %v3467 = vpop.f32.mrf.mxu0
      %v3468 = vadd.f32 %v3385, %v3467
      %3469 = vdwg.mxu0
      %v3470 = vmax.f32 %v3466, 0.0
      %v3471 = vmax.f32 %v3468, 0.0
      %v3474 = vcombine.low %v3470, %v3471
      %v3476 = vunpack.c.l.s4 1983009808
      %v3477 = vunpack.c.0.s8 %v3476
      %v3478 = vlaneseq
      %v3479 = vshrl.u32 %v3478, 7
      %v3480 = vsub.s32 %v3477, %v3479
      %v3481 = vrot.slane %v3474, %v3480
      %3483 = vst [vmem:[%s653] sm:$0xf] %v3481
      %p3484 = scmp.lt.s32.totalorder %s32, 1
      %s3485 = scalar_select %p3484, %s32, 1
      %s3486 = smul.addr %s3485, 2
      %s3487 = smul.addr %s3486, 2
      %s3488 = scalar_lea.vmem %s21, %s3487
      // Predicated region
      $region105: #{unet_forward.1} parent=103 // pred_check
        %p3489 = pneg %p496
      $region106: #{unet_forward.1} parent=103 // pred_check_branch
        %3491 = sbr.rel (%p3489) target = $region108
      $region107: #{unet_forward.1} parent=103 // pred_region
        _
      $region108: #{unet_forward.1} parent=103 // pred_fallthru
        _
    $region104: #{unet_forward.1} parent=5 // pred_fallthru
      _
    %p3492 = scmp.le.s32.totalorder 2, %s27
    // Predicated region
    $region109: #{unet_forward.1} parent=5 // pred_check
      %p3493 = pneg %p3492
    $region110: #{unet_forward.1} parent=5 // pred_check_branch
      %3495 = sbr.rel (%p3493) target = $region112
    $region111: #{unet_forward.1} parent=5 // pred_region
      %s3496 = ssub.s32 %s27, 2
      // Predicated region
      $region113: #{unet_forward.1} parent=111 // pred_check
        %p3497 = pneg %p502
      $region114: #{unet_forward.1} parent=111 // pred_check_branch
        %3499 = sbr.rel (%p3497) target = $region116
      $region115: #{unet_forward.1} parent=111 // pred_region
        %p3500 = scmp.lt.s32.totalorder %s33, 1
        %s3501 = scalar_select %p3500, %s33, 1
        %s3502 = smul.addr %s3501, 2
        %s3503 = smul.addr %s3502, 2
        %s3504 = scalar_lea.vmem %s21, %s3503
      $region116: #{unet_forward.1} parent=111 // pred_fallthru
        _
    $region112: #{unet_forward.1} parent=5 // pred_fallthru
      _
  $region6: #{unet_forward.1} parent=0 // loop_footer
    %s31 = sadd.s32 1, %s27
  $region7: #{unet_forward.1} parent=0 // loop_footer_branch
    %26 = sbr.rel target = $region3
  $region8: #{unet_forward.1} parent=0 // loop_exit
    _

</llo_original>
